<compile_context>
chip_gen: v7x
topology: tpu7x:2x2x1
jax: 0.10.0
libtpu: 0.0.40
codegen_flags: <defaults>
</compile_context>

<pallas_src>
import functools

import jax
import jax.numpy as jnp
import numpy as np
from jax.experimental import pallas as pl
from jax.experimental.pallas import tpu as pltpu

EXPANSION = 4
BN_EPS = 1e-5


# --------------------------------------------------------------------------
# Kernel
# --------------------------------------------------------------------------
def _bottleneck_kernel(stride, B, H, W, Ho, Wo, has_ds, groups, compute_dtype,
                       x_ref, w1_ref, b1_ref, w2_ref, b2_ref, w3_ref, b3_ref,
                       o_ref, pad_ref):
    Cin = x_ref.shape[-1]          # padded to a multiple of 128
    P = w1_ref.shape[-1]           # padded to a multiple of 128
    Cout = w3_ref.shape[-1]        # padded to a multiple of 128
    M = B * Ho * Wo

    x = x_ref[...]                                  # (B, H, W, Cin), input dtype
    xf = x.reshape(B * H * W, Cin)

    # ---- conv1 (1x1) + bn1 (scale folded into w1) + relu -------------------
    y1 = jnp.dot(xf.astype(compute_dtype), w1_ref[...],
                 preferred_element_type=jnp.float32)
    y1 = jnp.maximum(y1 + b1_ref[...], 0.0)         # (B*H*W, P) f32

    # ---- conv2 (3x3, pad=1, stride) via zero-haloed scratch + im2col -------
    # Scratch is compute-dtype (bf16 by default).  The column halo is folded
    # into the interior band (single aligned full-width store); only the
    # top/bottom rows are zeroed.  Border is re-zeroed every step so the
    # "parallel" batch axis stays safe under megacore sharding.
    y1c = y1.astype(compute_dtype).reshape(B, H, W, P)
    zcol = jnp.zeros((B, H, 1, P), compute_dtype)
    pad_ref[:, 1:H + 1, :, :] = jnp.concatenate([zcol, y1c, zcol], axis=2)
    zrow = jnp.zeros((B, 1, W + 2, P), compute_dtype)
    pad_ref[:, 0:1, :, :] = zrow
    pad_ref[:, H + 1:H + 2, :, :] = zrow

    def patch(kh, kw):
        if stride == 1:
            p = pad_ref[:, kh:kh + H, kw:kw + W, :]
        else:
            # stride built into the load -> only Ho*Wo rows are computed
            p = pad_ref[:, pl.ds(kh, Ho, stride), pl.ds(kw, Wo, stride), :]
        return p.reshape(M, P)

    offs = [(kh, kw) for kh in range(3) for kw in range(3)]
    per_g = 9 // groups
    acc = None
    for g in range(groups):
        cols = [patch(kh, kw) for kh, kw in offs[g * per_g:(g + 1) * per_g]]
        lhs = cols[0] if per_g == 1 else jnp.concatenate(cols, axis=-1)
        rhs = w2_ref[g * per_g * P:(g + 1) * per_g * P, :]
        d = jnp.dot(lhs, rhs, preferred_element_type=jnp.float32)
        acc = d if acc is None else acc + d
    y2 = jnp.maximum(acc + b2_ref[...], 0.0)         # (M, P) f32

    # ---- conv3 (1x1) + bn3 fused with downsample / identity residual -------
    if stride == 1:
        xs = xf
    else:
        xs = x[:, ::stride, ::stride, :].reshape(M, Cin)
    y2c = y2.astype(compute_dtype)
    if has_ds:
        # [y2 | x] @ [w3 ; w_ds]  (K = P + Cin fills the 256-deep MXU)
        lhs3 = jnp.concatenate([y2c, xs.astype(compute_dtype)], axis=-1)
        out = jnp.dot(lhs3, w3_ref[...], preferred_element_type=jnp.float32)
        out = out + b3_ref[...]
    else:
        out = jnp.dot(y2c, w3_ref[...], preferred_element_type=jnp.float32)
        # identity skip kept in f32 (exact when the caller passes f32 x)
        out = out + b3_ref[...] + xs.astype(jnp.float32)

    # ---- relu epilogue, lane-dense store ------------------------------------
    o_ref[...] = jnp.maximum(out, 0.0).reshape(B, Ho, Wo, Cout).astype(o_ref.dtype)


# --------------------------------------------------------------------------
# Wrappers
# --------------------------------------------------------------------------
def _pad128(n):
    return ((n + 127) // 128) * 128


def _pad2(a, rows, cols):
    """Zero-pad the last two dims of `a` up to (rows, cols)."""
    pad = [(0, 0)] * (a.ndim - 2) + [(0, rows - a.shape[-2]),
                                     (0, cols - a.shape[-1])]
    return jnp.pad(a, pad)


def _nbytes(shape, dtype):
    n = 1
    for s in shape:
        n *= int(s)
    return n * jnp.dtype(dtype).itemsize


def bottleneck_forward_nhwc(x_nhwc, params, stride=1,
                            compute_dtype=jnp.bfloat16, out_dtype=None,
                            conv2_groups=1, batch_tile=None):
    """Bottleneck forward on NHWC input.

    x_nhwc: (N, H, W, C) where C is either the true Cin or Cin padded to a
    multiple of 128 (extra channels must be zero, e.g. the output of a
    previous block).  Returns (N, Ho, Wo, Cout_padded_to_128) in `out_dtype`
    (default: x dtype) so stacked blocks can stay in padded-NHWC bf16.
    """
    (w1, s1, b1, w2, s2, b2, w3, s3, b3, ds) = params
    assert conv2_groups in (1, 3, 9)
    N, H, W, Cin_x = x_nhwc.shape
    Cin, P = w1.shape
    Cout = w3.shape[-1]
    has_ds = ds is not None
    if not has_ds:
        assert Cin == Cout, "identity residual requires Cin == Cout"
    Ho = (H - 1) // stride + 1
    Wo = (W - 1) // stride + 1
    Cin_p, P_p, Cout_p = _pad128(Cin), _pad128(P), _pad128(Cout)
    assert Cin_x in (Cin, Cin_p)
    if out_dtype is None:
        out_dtype = x_nhwc.dtype
    cbytes = jnp.dtype(compute_dtype).itemsize

    # x keeps its own dtype (f32 input -> exact f32 identity residual).
    x = x_nhwc
    if Cin_x != Cin_p:
        x = jnp.pad(x, ((0, 0), (0, 0), (0, 0), (0, Cin_p - Cin_x)))

    # ---- batch tile: big enough to amortise grid overhead, VMEM-aware ------
    if batch_tile is None:
        per_img = H * W * (Cin_p * jnp.dtype(x.dtype).itemsize
                           + P_p * (4 + cbytes)          # y1 f32 + halo
                           + 9 * P_p * cbytes            # im2col
                           + P_p * 4 + Cout_p * 8)       # y2, y3/out
        batch_tile = int(max(1, min(N, (12 << 20) // max(per_img, 1), 16)))
    bt = int(batch_tile)
    Np = ((N + bt - 1) // bt) * bt
    if Np != N:
        x = jnp.pad(x, ((0, Np - N), (0, 0), (0, 0), (0, 0)))

    # ---- fold BN scales into conv weights (f32), pad channels to 128 -------
    w1p = _pad2(w1 * s1, Cin_p, P_p).astype(compute_dtype)
    w2p = _pad2(w2 * s2, P_p, P_p).reshape(9 * P_p, P_p).astype(compute_dtype)
    w3p = _pad2(w3 * s3, P_p, Cout_p)
    b1p = _pad2(b1.reshape(1, -1), 1, P_p)
    b2p = _pad2(b2.reshape(1, -1), 1, P_p)
    b3p = _pad2(b3.reshape(1, -1), 1, Cout_p)
    if has_ds:
        wds, sds, bds = ds
        wdsp = _pad2(wds * sds, Cin_p, Cout_p)
        w3cat = jnp.concatenate([w3p, wdsp], axis=0).astype(compute_dtype)
        b3cat = b3p + _pad2(bds.reshape(1, -1), 1, Cout_p)
    else:
        w3cat = w3p.astype(compute_dtype)
        b3cat = b3p
    K3 = w3cat.shape[0]

    # ---- specs --------------------------------------------------------------
    # Weight/bias index maps are constant, so Pallas does not re-DMA them
    # across the batch grid.
    in_specs = [
        pl.BlockSpec((bt, H, W, Cin_p), lambda n: (n, 0, 0, 0)),
        pl.BlockSpec((Cin_p, P_p), lambda n: (0, 0)),
        pl.BlockSpec((1, P_p), lambda n: (0, 0)),
        pl.BlockSpec((9 * P_p, P_p), lambda n: (0, 0)),
        pl.BlockSpec((1, P_p), lambda n: (0, 0)),
        pl.BlockSpec((K3, Cout_p), lambda n: (0, 0)),
        pl.BlockSpec((1, Cout_p), lambda n: (0, 0)),
    ]
    out_spec = pl.BlockSpec((bt, Ho, Wo, Cout_p), lambda n: (n, 0, 0, 0))
    scratch_shapes = [pltpu.VMEM((bt, H + 2, W + 2, P_p), compute_dtype)]

    # ---- explicit VMEM budget (keeps the kernel valid on v7x's 64 MiB) -----
    block_bytes = (
        2 * _nbytes((bt, H, W, Cin_p), x.dtype) +
        2 * (_nbytes((Cin_p, P_p), compute_dtype) +
             _nbytes((9 * P_p, P_p), compute_dtype) +
             _nbytes((K3, Cout_p), compute_dtype) +
             2 * _nbytes((1, P_p), jnp.float32) +
             _nbytes((1, Cout_p), jnp.float32)) +
        2 * _nbytes((bt, Ho, Wo, Cout_p), out_dtype))
    scratch_bytes = _nbytes((bt, H + 2, W + 2, P_p), compute_dtype)
    interm_bytes = bt * (H * W * P_p * (4 + cbytes) +
                         Ho * Wo * (9 * P_p * cbytes + P_p * 4 +
                                    K3 * cbytes + Cout_p * 8))
    vmem_limit = int(min(max(block_bytes + scratch_bytes + 2 * interm_bytes,
                             32 << 20), 64 << 20))

    kernel = functools.partial(_bottleneck_kernel, stride, bt, H, W, Ho, Wo,
                               has_ds, conv2_groups, compute_dtype)
    out = pl.pallas_call(
        kernel,
        out_shape=jax.ShapeDtypeStruct((Np, Ho, Wo, Cout_p), out_dtype),
        grid_spec=pltpu.PrefetchScalarGridSpec(
            num_scalar_prefetch=0,
            grid=(Np // bt,),
            in_specs=in_specs,
            out_specs=out_spec,
            scratch_shapes=scratch_shapes,
        ),
        compiler_params=pltpu.CompilerParams(
            # batch tiles are fully independent -> shard across TensorCores
            dimension_semantics=("parallel",),
            vmem_limit_bytes=vmem_limit),
    )(x, w1p, b1p, w2p, b2p, w3cat, b3cat)

    return out[:N]                                  # drop batch padding


def bottleneck_forward(x_nchw, params, stride=1, compute_dtype=jnp.bfloat16,
                       conv2_groups=1, batch_tile=None):
    """PyTorch-compatible interface: (N, Cin, H, W) f32 -> (N, Cout, Ho, Wo) f32.

    For stacked blocks prefer `bottleneck_forward_nhwc` directly (padded NHWC
    bf16 activations) so these transpose/pad/cast passes happen only once.
    """
    x = jnp.transpose(x_nchw, (0, 2, 3, 1)).astype(jnp.float32)   # -> NHWC
    out = bottleneck_forward_nhwc(
        x, params, stride=stride, compute_dtype=compute_dtype,
        out_dtype=jnp.float32, conv2_groups=conv2_groups, batch_tile=batch_tile)
    Cout = params[6].shape[-1]                       # w3 output channels
    out = out[..., :Cout]                            # drop channel padding
    return jnp.transpose(out, (0, 3, 1, 2))          # -> NCHW


# --------------------------------------------------------------------------
# Synthetic params + pure-JAX reference (for correctness)
# --------------------------------------------------------------------------
def init_params(key, inplanes, planes):
    """Deterministic synthetic params (eval-mode BN as per-channel scale/bias)."""
    cout = planes * EXPANSION
    ks = jax.random.split(key, 8)

    def bn_fold(k, c):
        kg, kb, km, kv = jax.random.split(k, 4)
        gamma = jax.random.uniform(kg, (c,), jnp.float32, 0.5, 1.5)
        beta = 0.1 * jax.random.normal(kb, (c,), jnp.float32)
        mean = 0.1 * jax.random.normal(km, (c,), jnp.float32)
        var = jax.random.uniform(kv, (c,), jnp.float32, 0.5, 1.5)
        scale = gamma / jnp.sqrt(var + BN_EPS)
        bias = beta - mean * scale
        return scale, bias

    w1 = 0.1 * jax.random.normal(ks[0], (inplanes, planes), jnp.float32)
    s1, b1 = bn_fold(ks[1], planes)
    w2 = 0.1 * jax.random.normal(ks[2], (3, 3, planes, planes), jnp.float32)
    s2, b2 = bn_fold(ks[3], planes)
    w3 = 0.1 * jax.random.normal(ks[4], (planes, cout), jnp.float32)
    s3, b3 = bn_fold(ks[5], cout)
    if inplanes != cout:
        wds = 0.1 * jax.random.normal(ks[6], (inplanes, cout), jnp.float32)
        sds, bds = bn_fold(ks[7], cout)
        ds = (wds, sds, bds)
    else:
        ds = None                                    # identity residual
    return (w1, s1, b1, w2, s2, b2, w3, s3, b3, ds)


def reference_forward(x_nchw, params, stride=1):
    """Pure-JAX reference (lax.conv, f32) for correctness checking."""
    (w1, s1, b1, w2, s2, b2, w3, s3, b3, ds) = params
    x = jnp.transpose(x_nchw, (0, 2, 3, 1)).astype(jnp.float32)
    dn = ('NHWC', 'HWIO', 'NHWC')

    def conv(inp, w_hwio, s, pad):
        return jax.lax.conv_general_dilated(
            inp, w_hwio, (s, s), [(pad, pad), (pad, pad)],
            dimension_numbers=dn)

    cin, p = w1.shape
    cout = w3.shape[-1]
    y = conv(x, w1.reshape(1, 1, cin, p), 1, 0)
    y = jnp.maximum(y * s1 + b1, 0.0)
    y = conv(y, w2, stride, 1)
    y = jnp.maximum(y * s2 + b2, 0.0)
    y = conv(y, w3.reshape(1, 1, p, cout), 1, 0)
    y = y * s3 + b3
    if ds is not None:
        wds, sds, bds = ds
        idn = conv(x, wds.reshape(1, 1, cin, cout), stride, 0)
        idn = idn * sds + bds
    else:
        idn = x[:, ::stride, ::stride, :]
    out = jnp.maximum(y + idn, 0.0)
    return jnp.transpose(out, (0, 3, 1, 2))


# --------------------------------------------------------------------------
# Self-test
# --------------------------------------------------------------------------
if __name__ == "__main__":
    key = jax.random.PRNGKey(0)
    kx, kp1, kp2 = jax.random.split(key, 3)

    # Config 1: first block of a stage (downsample branch, fused with conv3).
    N, inplanes, planes, H, W, stride = 2, 16, 8, 16, 16, 1
    x = jax.random.normal(kx, (N, inplanes, H, W), jnp.float32)   # NCHW
    params = init_params(kp1, inplanes, planes)
    ref = jax.block_until_ready(reference_forward(x, params, stride=stride))

    # f32 compute: exact check of BN folding / padding / fusion / im2col.
    out32 = jax.block_until_ready(
        bottleneck_forward(x, params, stride=stride,
                           compute_dtype=jnp.float32))
    np.testing.assert_allclose(np.asarray(out32), np.asarray(ref),
                               rtol=1e-4, atol=1e-4)

    # Default bf16 MXU path (looser tolerance for bf16 operand rounding).
    out16 = jax.block_until_ready(
        bottleneck_forward(x, params, stride=stride))
    np.testing.assert_allclose(np.asarray(out16), np.asarray(ref),
                               rtol=1e-1, atol=1e-1)
    assert out16.shape == (N, planes * EXPANSION, H // stride, W // stride)

    # Config 2: non-first block (identity residual, f32 skip add) with the
    # grouped-accumulation conv2 path (conv2_groups=3, v7x-friendly).
    inplanes2, planes2 = 32, 8          # inplanes == expansion * planes
    x2 = jax.random.normal(kx, (N, inplanes2, H, W), jnp.float32)
    params2 = init_params(kp2, inplanes2, planes2)
    ref2 = jax.block_until_ready(reference_forward(x2, params2, stride=1))
    out2 = jax.block_until_ready(
        bottleneck_forward(x2, params2, stride=1, compute_dtype=jnp.float32,
                           conv2_groups=3))
    np.testing.assert_allclose(np.asarray(out2), np.asarray(ref2),
                               rtol=1e-4, atol=1e-4)

    print("KERNEL_OK")
</pallas_src>

<mosaic_0001>
module attributes {stable_mosaic.version = 11 : i64} {
  func.func @_bottleneck_kernel(%arg0: i32, %arg1: memref<2x16x16x128xf32, #tpu.memory_space<vmem>>, %arg2: memref<128x128xf32, #tpu.memory_space<vmem>>, %arg3: memref<1x128xf32, #tpu.memory_space<vmem>>, %arg4: memref<1152x128xf32, #tpu.memory_space<vmem>>, %arg5: memref<1x128xf32, #tpu.memory_space<vmem>>, %arg6: memref<256x128xf32, #tpu.memory_space<vmem>>, %arg7: memref<1x128xf32, #tpu.memory_space<vmem>>, %arg8: memref<2x16x16x128xf32, #tpu.memory_space<vmem>>, %arg9: memref<2x18x18x128xf32, #tpu.memory_space<vmem>>) attributes {dimension_semantics = [#tpu.dimension_semantics<parallel>], iteration_bounds = array<i64: 1>, scalar_prefetch = 0 : i64, scratch_operands = 1 : i64, tpu.core_type = #tpu.core_type<tc>, window_params = [{transform_indices = @transform_0, window_bounds = array<i64: 2, 16, 16, 128>}, {pipeline_mode = #tpu.pipeline_mode<synchronous>, transform_indices = @transform_1, window_bounds = array<i64: 128, 128>}, {pipeline_mode = #tpu.pipeline_mode<synchronous>, transform_indices = @transform_2, window_bounds = array<i64: 1, 128>}, {pipeline_mode = #tpu.pipeline_mode<synchronous>, transform_indices = @transform_3, window_bounds = array<i64: 1152, 128>}, {pipeline_mode = #tpu.pipeline_mode<synchronous>, transform_indices = @transform_4, window_bounds = array<i64: 1, 128>}, {pipeline_mode = #tpu.pipeline_mode<synchronous>, transform_indices = @transform_5, window_bounds = array<i64: 256, 128>}, {pipeline_mode = #tpu.pipeline_mode<synchronous>, transform_indices = @transform_6, window_bounds = array<i64: 1, 128>}, {transform_indices = @transform_7, window_bounds = array<i64: 2, 16, 16, 128>}]} {
    %c0 = arith.constant 0 : index
    %c0_0 = arith.constant 0 : index
    %c0_1 = arith.constant 0 : index
    %c0_2 = arith.constant 0 : index
    %0 = vector.load %arg1[%c0, %c0_0, %c0_1, %c0_2] : memref<2x16x16x128xf32, #tpu.memory_space<vmem>>, vector<2x16x16x128xf32>
    %1 = vector.shape_cast %0 : vector<2x16x16x128xf32> to vector<512x128xf32>
    %c0_3 = arith.constant 0 : index
    %c0_4 = arith.constant 0 : index
    %2 = vector.load %arg2[%c0_3, %c0_4] : memref<128x128xf32, #tpu.memory_space<vmem>>, vector<128x128xf32>
    %cst = arith.constant dense<0.000000e+00> : vector<512x128xf32>
    %3 = tpu.matmul %1, %2, %cst {dimension_numbers = #tpu.dot_dimension_numbers<[1], [0], [0], [1], [0, 0, 1, 1], [], []>} : vector<512x128xf32>, vector<128x128xf32>, vector<512x128xf32> -> vector<512x128xf32>
    %c0_5 = arith.constant 0 : index
    %c0_6 = arith.constant 0 : index
    %4 = vector.load %arg3[%c0_5, %c0_6] : memref<1x128xf32, #tpu.memory_space<vmem>>, vector<1x128xf32>
    %5 = vector.broadcast %4 : vector<1x128xf32> to vector<512x128xf32>
    %6 = arith.addf %3, %5 : vector<512x128xf32>
    %cst_7 = arith.constant 0.000000e+00 : f32
    %7 = vector.broadcast %cst_7 : f32 to vector<512x128xf32>
    %8 = arith.maximumf %6, %7 : vector<512x128xf32>
    %9 = vector.shape_cast %8 : vector<512x128xf32> to vector<2x16x16x128xf32>
    %cst_8 = arith.constant 0.000000e+00 : f32
    %10 = vector.broadcast %cst_8 : f32 to vector<2x16x1x128xf32>
    %11 = tpu.concatenate %10, %9, %10 in 2 : vector<2x16x1x128xf32>, vector<2x16x16x128xf32>, vector<2x16x1x128xf32> -> vector<2x16x18x128xf32>
    %c0_9 = arith.constant 0 : index
    %c1 = arith.constant 1 : index
    %c0_10 = arith.constant 0 : index
    %c0_11 = arith.constant 0 : index
    %12 = vector.load %arg9[%c0_9, %c1, %c0_10, %c0_11] : memref<2x18x18x128xf32, #tpu.memory_space<vmem>>, vector<2x16x18x128xf32>
    tpu.vector_store %arg9[%c0_9, %c1, %c0_10, %c0_11], %11 {strides = array<i32>} : memref<2x18x18x128xf32, #tpu.memory_space<vmem>>, vector<2x16x18x128xf32>,
    %cst_12 = arith.constant 0.000000e+00 : f32
    %13 = vector.broadcast %cst_12 : f32 to vector<2x1x18x128xf32>
    %c0_13 = arith.constant 0 : index
    %c0_14 = arith.constant 0 : index
    %c0_15 = arith.constant 0 : index
    %c0_16 = arith.constant 0 : index
    %14 = vector.load %arg9[%c0_13, %c0_14, %c0_15, %c0_16] : memref<2x18x18x128xf32, #tpu.memory_space<vmem>>, vector<2x1x18x128xf32>
    tpu.vector_store %arg9[%c0_13, %c0_14, %c0_15, %c0_16], %13 {strides = array<i32>} : memref<2x18x18x128xf32, #tpu.memory_space<vmem>>, vector<2x1x18x128xf32>,
    %c0_17 = arith.constant 0 : index
    %c17 = arith.constant 17 : index
    %c0_18 = arith.constant 0 : index
    %c0_19 = arith.constant 0 : index
    %15 = vector.load %arg9[%c0_17, %c17, %c0_18, %c0_19] : memref<2x18x18x128xf32, #tpu.memory_space<vmem>>, vector<2x1x18x128xf32>
    tpu.vector_store %arg9[%c0_17, %c17, %c0_18, %c0_19], %13 {strides = array<i32>} : memref<2x18x18x128xf32, #tpu.memory_space<vmem>>, vector<2x1x18x128xf32>,
    %c0_20 = arith.constant 0 : index
    %c0_21 = arith.constant 0 : index
    %c0_22 = arith.constant 0 : index
    %c0_23 = arith.constant 0 : index
    %16 = vector.load %arg9[%c0_20, %c0_21, %c0_22, %c0_23] : memref<2x18x18x128xf32, #tpu.memory_space<vmem>>, vector<2x16x16x128xf32>
    %17 = vector.shape_cast %16 : vector<2x16x16x128xf32> to vector<512x128xf32>
    %c0_24 = arith.constant 0 : index
    %c0_25 = arith.constant 0 : index
    %c1_26 = arith.constant 1 : index
    %c0_27 = arith.constant 0 : index
    %18 = vector.load %arg9[%c0_24, %c0_25, %c1_26, %c0_27] : memref<2x18x18x128xf32, #tpu.memory_space<vmem>>, vector<2x16x16x128xf32>
    %19 = vector.shape_cast %18 : vector<2x16x16x128xf32> to vector<512x128xf32>
    %c0_28 = arith.constant 0 : index
    %c0_29 = arith.constant 0 : index
    %c2 = arith.constant 2 : index
    %c0_30 = arith.constant 0 : index
    %20 = vector.load %arg9[%c0_28, %c0_29, %c2, %c0_30] : memref<2x18x18x128xf32, #tpu.memory_space<vmem>>, vector<2x16x16x128xf32>
    %21 = vector.shape_cast %20 : vector<2x16x16x128xf32> to vector<512x128xf32>
    %c0_31 = arith.constant 0 : index
    %c1_32 = arith.constant 1 : index
    %c0_33 = arith.constant 0 : index
    %c0_34 = arith.constant 0 : index
    %22 = vector.load %arg9[%c0_31, %c1_32, %c0_33, %c0_34] : memref<2x18x18x128xf32, #tpu.memory_space<vmem>>, vector<2x16x16x128xf32>
    %23 = vector.shape_cast %22 : vector<2x16x16x128xf32> to vector<512x128xf32>
    %c0_35 = arith.constant 0 : index
    %c1_36 = arith.constant 1 : index
    %c1_37 = arith.constant 1 : index
    %c0_38 = arith.constant 0 : index
    %24 = vector.load %arg9[%c0_35, %c1_36, %c1_37, %c0_38] : memref<2x18x18x128xf32, #tpu.memory_space<vmem>>, vector<2x16x16x128xf32>
    %25 = vector.shape_cast %24 : vector<2x16x16x128xf32> to vector<512x128xf32>
    %c0_39 = arith.constant 0 : index
    %c1_40 = arith.constant 1 : index
    %c2_41 = arith.constant 2 : index
    %c0_42 = arith.constant 0 : index
    %26 = vector.load %arg9[%c0_39, %c1_40, %c2_41, %c0_42] : memref<2x18x18x128xf32, #tpu.memory_space<vmem>>, vector<2x16x16x128xf32>
    %27 = vector.shape_cast %26 : vector<2x16x16x128xf32> to vector<512x128xf32>
    %c0_43 = arith.constant 0 : index
    %c2_44 = arith.constant 2 : index
    %c0_45 = arith.constant 0 : index
    %c0_46 = arith.constant 0 : index
    %28 = vector.load %arg9[%c0_43, %c2_44, %c0_45, %c0_46] : memref<2x18x18x128xf32, #tpu.memory_space<vmem>>, vector<2x16x16x128xf32>
    %29 = vector.shape_cast %28 : vector<2x16x16x128xf32> to vector<512x128xf32>
    %c0_47 = arith.constant 0 : index
    %c2_48 = arith.constant 2 : index
    %c1_49 = arith.constant 1 : index
    %c0_50 = arith.constant 0 : index
    %30 = vector.load %arg9[%c0_47, %c2_48, %c1_49, %c0_50] : memref<2x18x18x128xf32, #tpu.memory_space<vmem>>, vector<2x16x16x128xf32>
    %31 = vector.shape_cast %30 : vector<2x16x16x128xf32> to vector<512x128xf32>
    %c0_51 = arith.constant 0 : index
    %c2_52 = arith.constant 2 : index
    %c2_53 = arith.constant 2 : index
    %c0_54 = arith.constant 0 : index
    %32 = vector.load %arg9[%c0_51, %c2_52, %c2_53, %c0_54] : memref<2x18x18x128xf32, #tpu.memory_space<vmem>>, vector<2x16x16x128xf32>
    %33 = vector.shape_cast %32 : vector<2x16x16x128xf32> to vector<512x128xf32>
    %34 = tpu.concatenate %17, %19, %21, %23, %25, %27, %29, %31, %33 in 1 : vector<512x128xf32>, vector<512x128xf32>, vector<512x128xf32>, vector<512x128xf32>, vector<512x128xf32>, vector<512x128xf32>, vector<512x128xf32>, vector<512x128xf32>, vector<512x128xf32> -> vector<512x1152xf32>
    %c0_55 = arith.constant 0 : index
    %c0_56 = arith.constant 0 : index
    %35 = vector.load %arg4[%c0_55, %c0_56] : memref<1152x128xf32, #tpu.memory_space<vmem>>, vector<1152x128xf32>
    %cst_57 = arith.constant dense<0.000000e+00> : vector<512x128xf32>
    %36 = tpu.matmul %34, %35, %cst_57 {dimension_numbers = #tpu.dot_dimension_numbers<[1], [0], [0], [1], [0, 0, 1, 1], [], []>} : vector<512x1152xf32>, vector<1152x128xf32>, vector<512x128xf32> -> vector<512x128xf32>
    %c0_58 = arith.constant 0 : index
    %c0_59 = arith.constant 0 : index
    %37 = vector.load %arg5[%c0_58, %c0_59] : memref<1x128xf32, #tpu.memory_space<vmem>>, vector<1x128xf32>
    %38 = vector.broadcast %37 : vector<1x128xf32> to vector<512x128xf32>
    %39 = arith.addf %36, %38 : vector<512x128xf32>
    %cst_60 = arith.constant 0.000000e+00 : f32
    %40 = vector.broadcast %cst_60 : f32 to vector<512x128xf32>
    %41 = arith.maximumf %39, %40 : vector<512x128xf32>
    %42 = tpu.concatenate %41, %1 in 1 : vector<512x128xf32>, vector<512x128xf32> -> vector<512x256xf32>
    %c0_61 = arith.constant 0 : index
    %c0_62 = arith.constant 0 : index
    %43 = vector.load %arg6[%c0_61, %c0_62] : memref<256x128xf32, #tpu.memory_space<vmem>>, vector<256x128xf32>
    %cst_63 = arith.constant dense<0.000000e+00> : vector<512x128xf32>
    %44 = tpu.matmul %42, %43, %cst_63 {dimension_numbers = #tpu.dot_dimension_numbers<[1], [0], [0], [1], [0, 0, 1, 1], [], []>} : vector<512x256xf32>, vector<256x128xf32>, vector<512x128xf32> -> vector<512x128xf32>
    %c0_64 = arith.constant 0 : index
    %c0_65 = arith.constant 0 : index
    %45 = vector.load %arg7[%c0_64, %c0_65] : memref<1x128xf32, #tpu.memory_space<vmem>>, vector<1x128xf32>
    %46 = vector.broadcast %45 : vector<1x128xf32> to vector<512x128xf32>
    %47 = arith.addf %44, %46 : vector<512x128xf32>
    %cst_66 = arith.constant 0.000000e+00 : f32
    %48 = vector.broadcast %cst_66 : f32 to vector<512x128xf32>
    %49 = arith.maximumf %47, %48 : vector<512x128xf32>
    %50 = vector.shape_cast %49 : vector<512x128xf32> to vector<2x16x16x128xf32>
    %c0_67 = arith.constant 0 : index
    %c0_68 = arith.constant 0 : index
    %c0_69 = arith.constant 0 : index
    %c0_70 = arith.constant 0 : index
    %51 = vector.load %arg8[%c0_67, %c0_68, %c0_69, %c0_70] : memref<2x16x16x128xf32, #tpu.memory_space<vmem>>, vector<2x16x16x128xf32>
    tpu.vector_store %arg8[%c0_67, %c0_68, %c0_69, %c0_70], %50 {strides = array<i32>} : memref<2x16x16x128xf32, #tpu.memory_space<vmem>>, vector<2x16x16x128xf32>,
    return
  }
  func.func @transform_0(%arg0: i32) -> (i32, i32, i32, i32) {
    %c0_i32 = arith.constant 0 : i32
    %c0_i32_0 = arith.constant 0 : i32
    %c0_i32_1 = arith.constant 0 : i32
    %c0_i32_2 = arith.constant 0 : i32
    return %arg0, %c0_i32, %c0_i32_0, %c0_i32_1 : i32, i32, i32, i32
  }
  func.func @transform_1(%arg0: i32) -> (i32, i32) {
    %c0_i32 = arith.constant 0 : i32
    %c0_i32_0 = arith.constant 0 : i32
    %c0_i32_1 = arith.constant 0 : i32
    return %c0_i32, %c0_i32_0 : i32, i32
  }
  func.func @transform_2(%arg0: i32) -> (i32, i32) {
    %c0_i32 = arith.constant 0 : i32
    %c0_i32_0 = arith.constant 0 : i32
    %c0_i32_1 = arith.constant 0 : i32
    return %c0_i32, %c0_i32_0 : i32, i32
  }
  func.func @transform_3(%arg0: i32) -> (i32, i32) {
    %c0_i32 = arith.constant 0 : i32
    %c0_i32_0 = arith.constant 0 : i32
    %c0_i32_1 = arith.constant 0 : i32
    return %c0_i32, %c0_i32_0 : i32, i32
  }
  func.func @transform_4(%arg0: i32) -> (i32, i32) {
    %c0_i32 = arith.constant 0 : i32
    %c0_i32_0 = arith.constant 0 : i32
    %c0_i32_1 = arith.constant 0 : i32
    return %c0_i32, %c0_i32_0 : i32, i32
  }
  func.func @transform_5(%arg0: i32) -> (i32, i32) {
    %c0_i32 = arith.constant 0 : i32
    %c0_i32_0 = arith.constant 0 : i32
    %c0_i32_1 = arith.constant 0 : i32
    return %c0_i32, %c0_i32_0 : i32, i32
  }
  func.func @transform_6(%arg0: i32) -> (i32, i32) {
    %c0_i32 = arith.constant 0 : i32
    %c0_i32_0 = arith.constant 0 : i32
    %c0_i32_1 = arith.constant 0 : i32
    return %c0_i32, %c0_i32_0 : i32, i32
  }
  func.func @transform_7(%arg0: i32) -> (i32, i32, i32, i32) {
    %c0_i32 = arith.constant 0 : i32
    %c0_i32_0 = arith.constant 0 : i32
    %c0_i32_1 = arith.constant 0 : i32
    %c0_i32_2 = arith.constant 0 : i32
    return %arg0, %c0_i32, %c0_i32_0, %c0_i32_1 : i32, i32, i32, i32
  }
}

</mosaic_0001>

<llo_original>
// kernel: tpu_custom_call.1
$region0: #{tpu_custom_call.1}
  #allocation0 [shape = 'u32[]', space=smem, size = 0x4, offset = 0x4, fixed_abs, tag = 'smem constant byte address 0x4 - core index']
  #allocation1 [shape = 'u32[144,128]{1,0:T(1,128)}', space=vmem, size = 0x12000, scoped, tag = 'internal scratch']
  #allocation2 [shape = 'f32[2,18,18,128]{3,2,1,0:T(8,128)}', space=vmem, size = 0x6c000, scoped, tag = 'scratch operand']
  %s0 = inlined_call_operand.hbm [shape: f32[2,16,16,128], index: 0, kind: input, shape index: {}]
  %s1 = inlined_call_operand.hbm [shape: f32[128,128], index: 1, kind: input, shape index: {}]
  %s2 = inlined_call_operand.vmem [shape: f32[1,128], index: 2, kind: input, shape index: {}]
  %s3 = inlined_call_operand.hbm [shape: f32[1152,128], index: 3, kind: input, shape index: {}]
  %s4 = inlined_call_operand.vmem [shape: f32[1,128], index: 4, kind: input, shape index: {}]
  %s5 = inlined_call_operand.hbm [shape: f32[256,128], index: 5, kind: input, shape index: {}]
  %s6 = inlined_call_operand.vmem [shape: f32[1,128], index: 6, kind: input, shape index: {}]
  %s7 = inlined_call_operand.hbm [shape: f32[2,16,16,128], index: 7, kind: output, shape index: {}]
  %s8 = sld [smem:[#allocation0]]
  $region54: #{tpu_custom_call.1} parent=0
    _
  %s10 = ssub.s32 1, %s8
  %s11 = scalar_select 0, %s10, %s8
  $region1: #{tpu_custom_call.1} parent=0
    #allocation3 [shape = 'u8[262144]{0}', space=vmem, size = 0x40000, scoped, tag = 'input window, operand 0, single buffered']
    #allocation4 [shape = 's32[1]{0}', space=sflag, size = 0x4, scoped, tag = 'scoped memory for tpu_custom_call.1']
    #allocation5 [shape = 's32[1]{0}', space=sflag, size = 0x4, scoped, tag = 'scoped memory for tpu_custom_call.1']
    #allocation6 [shape = 'u8[65536]{0}', space=vmem, size = 0x10000, scoped, tag = 'input window, operand 1, single buffered']
    #allocation7 [shape = 's32[1]{0}', space=sflag, size = 0x4, scoped, tag = 'scoped memory for tpu_custom_call.1']
    #allocation8 [shape = 'u8[589824]{0}', space=vmem, size = 0x90000, scoped, tag = 'input window, operand 3, single buffered']
    #allocation9 [shape = 'u8[131072]{0}', space=vmem, size = 0x20000, scoped, tag = 'input window, operand 5, single buffered']
    #allocation10 [shape = 's32[1]{0}', space=sflag, size = 0x4, scoped, tag = 'scoped memory for tpu_custom_call.1']
    #allocation11 [shape = 'u8[262144]{0}', space=vmem, size = 0x40000, scoped, tag = 'output window, operand 0, single buffered']
    %12 = vsyncpa [#allocation4], 0
    %13 = vsyncpa [#allocation7], 0
    %14 = vsyncpa [#allocation10], 0
    %15 = vsyncpa [#allocation5], 0
    // Predicated region
    $region2: #{tpu_custom_call.1} parent=1 // pred_check
      _
    $region3: #{tpu_custom_call.1} parent=1 // pred_check_branch
      %17 = sbr.rel (0) target = $region5
    $region4: #{tpu_custom_call.1} parent=1 // pred_region
      %s19 = ssub.s32 8192, 8192
      %20 = vsyncadd [#allocation4], %s19
      %s21 = sshll.u32 [#allocation3], 4
      %s22 = int_to_ptr.vmem [resolvable:$true] %s21
      %27 = dma.hbm_to_vmem [thread:$0]  %s0, 8192, %s22, [#allocation4], 128, 128, 8
    $region5: #{tpu_custom_call.1} parent=1 // pred_fallthru
      _
    // Predicated region
    $region6: #{tpu_custom_call.1} parent=1 // pred_check
      _
    $region7: #{tpu_custom_call.1} parent=1 // pred_check_branch
      %29 = sbr.rel (0) target = $region9
    $region8: #{tpu_custom_call.1} parent=1 // pred_region
      %s31 = ssub.s32 2048, 2048
      %32 = vsyncadd [#allocation7], %s31
      %s33 = sshll.u32 [#allocation6], 4
      %s34 = int_to_ptr.vmem [resolvable:$true] %s33
      %39 = dma.hbm_to_vmem [thread:$0]  %s1, 2048, %s34, [#allocation7], 128, 128, 8
    $region9: #{tpu_custom_call.1} parent=1 // pred_fallthru
      _
    // Predicated region
    $region10: #{tpu_custom_call.1} parent=1 // pred_check
      _
    $region11: #{tpu_custom_call.1} parent=1 // pred_check_branch
      %41 = sbr.rel (0) target = $region13
    $region12: #{tpu_custom_call.1} parent=1 // pred_region
      _
    $region13: #{tpu_custom_call.1} parent=1 // pred_fallthru
      _
    // Predicated region
    $region14: #{tpu_custom_call.1} parent=1 // pred_check
      _
    $region15: #{tpu_custom_call.1} parent=1 // pred_check_branch
      %43 = sbr.rel (0) target = $region17
    $region16: #{tpu_custom_call.1} parent=1 // pred_region
      %s45 = ssub.s32 18432, 18432
      %46 = vsyncadd [#allocation7], %s45
      %s47 = sshll.u32 [#allocation8], 4
      %s48 = int_to_ptr.vmem [resolvable:$true] %s47
      %53 = dma.hbm_to_vmem [thread:$0]  %s3, 18432, %s48, [#allocation7], 128, 128, 8
    $region17: #{tpu_custom_call.1} parent=1 // pred_fallthru
      _
    // Predicated region
    $region18: #{tpu_custom_call.1} parent=1 // pred_check
      _
    $region19: #{tpu_custom_call.1} parent=1 // pred_check_branch
      %55 = sbr.rel (0) target = $region21
    $region20: #{tpu_custom_call.1} parent=1 // pred_region
      _
    $region21: #{tpu_custom_call.1} parent=1 // pred_fallthru
      _
    // Predicated region
    $region22: #{tpu_custom_call.1} parent=1 // pred_check
      _
    $region23: #{tpu_custom_call.1} parent=1 // pred_check_branch
      %57 = sbr.rel (0) target = $region25
    $region24: #{tpu_custom_call.1} parent=1 // pred_region
      %s59 = ssub.s32 4096, 4096
      %60 = vsyncadd [#allocation10], %s59
      %s61 = sshll.u32 [#allocation9], 4
      %s62 = int_to_ptr.vmem [resolvable:$true] %s61
      %67 = dma.hbm_to_vmem [thread:$0]  %s5, 4096, %s62, [#allocation10], 128, 128, 8
    $region25: #{tpu_custom_call.1} parent=1 // pred_fallthru
      _
    // Predicated region
    $region26: #{tpu_custom_call.1} parent=1 // pred_check
      _
    $region27: #{tpu_custom_call.1} parent=1 // pred_check_branch
      %69 = sbr.rel (0) target = $region29
    $region28: #{tpu_custom_call.1} parent=1 // pred_region
      _
    $region29: #{tpu_custom_call.1} parent=1 // pred_fallthru
      _
    // Predicated region
    $region30: #{tpu_custom_call.1} parent=1 // pred_check
      _
    $region31: #{tpu_custom_call.1} parent=1 // pred_check_branch
      %71 = sbr.rel (0) target = $region33
    $region32: #{tpu_custom_call.1} parent=1 // pred_region
      %72 = dma.done [#allocation4], 8192
    $region33: #{tpu_custom_call.1} parent=1 // pred_fallthru
      _
    // Predicated region
    $region34: #{tpu_custom_call.1} parent=1 // pred_check
      _
    $region35: #{tpu_custom_call.1} parent=1 // pred_check_branch
      %74 = sbr.rel (0) target = $region37
    $region36: #{tpu_custom_call.1} parent=1 // pred_region
      %75 = dma.done [#allocation7], 2048
    $region37: #{tpu_custom_call.1} parent=1 // pred_fallthru
      _
    // Predicated region
    $region38: #{tpu_custom_call.1} parent=1 // pred_check
      _
    $region39: #{tpu_custom_call.1} parent=1 // pred_check_branch
      %77 = sbr.rel (0) target = $region41
    $region40: #{tpu_custom_call.1} parent=1 // pred_region
      %78 = dma.done [#allocation7], 18432
    $region41: #{tpu_custom_call.1} parent=1 // pred_fallthru
      _
    // Predicated region
    $region42: #{tpu_custom_call.1} parent=1 // pred_check
      _
    $region43: #{tpu_custom_call.1} parent=1 // pred_check_branch
      %80 = sbr.rel (0) target = $region45
    $region44: #{tpu_custom_call.1} parent=1 // pred_region
      %81 = dma.done [#allocation10], 4096
    $region45: #{tpu_custom_call.1} parent=1 // pred_fallthru
      _
    %v82 = vld [vmem:[#allocation3] sm:$0xff]
    %v83 = vld [vmem:[#allocation3 + $0x8] sm:$0xff]
    %v84 = vld [vmem:[#allocation3 + $0x10] sm:$0xff]
    %v85 = vld [vmem:[#allocation3 + $0x18] sm:$0xff]
    %v86 = vld [vmem:[#allocation3 + $0x20] sm:$0xff]
    %v87 = vld [vmem:[#allocation3 + $0x28] sm:$0xff]
    %v88 = vld [vmem:[#allocation3 + $0x30] sm:$0xff]
    %v89 = vld [vmem:[#allocation3 + $0x38] sm:$0xff]
    %v90 = vld [vmem:[#allocation3 + $0x40] sm:$0xff]
    %v91 = vld [vmem:[#allocation3 + $0x48] sm:$0xff]
    %v92 = vld [vmem:[#allocation3 + $0x50] sm:$0xff]
    %v93 = vld [vmem:[#allocation3 + $0x58] sm:$0xff]
    %v94 = vld [vmem:[#allocation3 + $0x60] sm:$0xff]
    %v95 = vld [vmem:[#allocation3 + $0x68] sm:$0xff]
    %v96 = vld [vmem:[#allocation3 + $0x70] sm:$0xff]
    %v97 = vld [vmem:[#allocation3 + $0x78] sm:$0xff]
    %v98 = vld [vmem:[#allocation3 + $0x80] sm:$0xff]
    %v99 = vld [vmem:[#allocation3 + $0x88] sm:$0xff]
    %v100 = vld [vmem:[#allocation3 + $0x90] sm:$0xff]
    %v101 = vld [vmem:[#allocation3 + $0x98] sm:$0xff]
    %v102 = vld [vmem:[#allocation3 + $0xa0] sm:$0xff]
    %v103 = vld [vmem:[#allocation3 + $0xa8] sm:$0xff]
    %v104 = vld [vmem:[#allocation3 + $0xb0] sm:$0xff]
    %v105 = vld [vmem:[#allocation3 + $0xb8] sm:$0xff]
    %v106 = vld [vmem:[#allocation3 + $0xc0] sm:$0xff]
    %v107 = vld [vmem:[#allocation3 + $0xc8] sm:$0xff]
    %v108 = vld [vmem:[#allocation3 + $0xd0] sm:$0xff]
    %v109 = vld [vmem:[#allocation3 + $0xd8] sm:$0xff]
    %v110 = vld [vmem:[#allocation3 + $0xe0] sm:$0xff]
    %v111 = vld [vmem:[#allocation3 + $0xe8] sm:$0xff]
    %v112 = vld [vmem:[#allocation3 + $0xf0] sm:$0xff]
    %v113 = vld [vmem:[#allocation3 + $0xf8] sm:$0xff]
    %v114 = vld [vmem:[#allocation3 + $0x100] sm:$0xff]
    %v115 = vld [vmem:[#allocation3 + $0x108] sm:$0xff]
    %v116 = vld [vmem:[#allocation3 + $0x110] sm:$0xff]
    %v117 = vld [vmem:[#allocation3 + $0x118] sm:$0xff]
    %v118 = vld [vmem:[#allocation3 + $0x120] sm:$0xff]
    %v119 = vld [vmem:[#allocation3 + $0x128] sm:$0xff]
    %v120 = vld [vmem:[#allocation3 + $0x130] sm:$0xff]
    %v121 = vld [vmem:[#allocation3 + $0x138] sm:$0xff]
    %v122 = vld [vmem:[#allocation3 + $0x140] sm:$0xff]
    %v123 = vld [vmem:[#allocation3 + $0x148] sm:$0xff]
    %v124 = vld [vmem:[#allocation3 + $0x150] sm:$0xff]
    %v125 = vld [vmem:[#allocation3 + $0x158] sm:$0xff]
    %v126 = vld [vmem:[#allocation3 + $0x160] sm:$0xff]
    %v127 = vld [vmem:[#allocation3 + $0x168] sm:$0xff]
    %v128 = vld [vmem:[#allocation3 + $0x170] sm:$0xff]
    %v129 = vld [vmem:[#allocation3 + $0x178] sm:$0xff]
    %v130 = vld [vmem:[#allocation3 + $0x180] sm:$0xff]
    %v131 = vld [vmem:[#allocation3 + $0x188] sm:$0xff]
    %v132 = vld [vmem:[#allocation3 + $0x190] sm:$0xff]
    %v133 = vld [vmem:[#allocation3 + $0x198] sm:$0xff]
    %v134 = vld [vmem:[#allocation3 + $0x1a0] sm:$0xff]
    %v135 = vld [vmem:[#allocation3 + $0x1a8] sm:$0xff]
    %v136 = vld [vmem:[#allocation3 + $0x1b0] sm:$0xff]
    %v137 = vld [vmem:[#allocation3 + $0x1b8] sm:$0xff]
    %v138 = vld [vmem:[#allocation3 + $0x1c0] sm:$0xff]
    %v139 = vld [vmem:[#allocation3 + $0x1c8] sm:$0xff]
    %v140 = vld [vmem:[#allocation3 + $0x1d0] sm:$0xff]
    %v141 = vld [vmem:[#allocation3 + $0x1d8] sm:$0xff]
    %v142 = vld [vmem:[#allocation3 + $0x1e0] sm:$0xff]
    %v143 = vld [vmem:[#allocation3 + $0x1e8] sm:$0xff]
    %v144 = vld [vmem:[#allocation3 + $0x1f0] sm:$0xff]
    %v145 = vld [vmem:[#allocation3 + $0x1f8] sm:$0xff]
    %v146 = vld [vmem:[#allocation6] sm:$0xff]
    %v147 = vld [vmem:[#allocation6 + $0x8] sm:$0xff]
    %v148 = vld [vmem:[#allocation6 + $0x10] sm:$0xff]
    %v149 = vld [vmem:[#allocation6 + $0x18] sm:$0xff]
    %v150 = vld [vmem:[#allocation6 + $0x20] sm:$0xff]
    %v151 = vld [vmem:[#allocation6 + $0x28] sm:$0xff]
    %v152 = vld [vmem:[#allocation6 + $0x30] sm:$0xff]
    %v153 = vld [vmem:[#allocation6 + $0x38] sm:$0xff]
    %v154 = vld [vmem:[#allocation6 + $0x40] sm:$0xff]
    %v155 = vld [vmem:[#allocation6 + $0x48] sm:$0xff]
    %v156 = vld [vmem:[#allocation6 + $0x50] sm:$0xff]
    %v157 = vld [vmem:[#allocation6 + $0x58] sm:$0xff]
    %v158 = vld [vmem:[#allocation6 + $0x60] sm:$0xff]
    %v159 = vld [vmem:[#allocation6 + $0x68] sm:$0xff]
    %v160 = vld [vmem:[#allocation6 + $0x70] sm:$0xff]
    %v161 = vld [vmem:[#allocation6 + $0x78] sm:$0xff]
    %v162 = vld [vmem:[%s2] sm:$0x1]
    %v164 = vlaneseq
    %v165 = vshrl.u32 %v164, 7
    %v166 = vsub.s32 0, %v165
    %v167 = vrot.slane %v162, %v166
    %169 = vmatprep.subr.mxu0 0.0
    %170 = vmatpush1.msra.mxu0 %v146
    %171 = vmatprep.subr.mxu0 0.0
    %172 = vmatpush1.msra.mxu0 %v147
    %173 = vmatprep.subr.mxu0 0.0
    %174 = vmatpush1.msra.mxu0 %v148
    %175 = vmatprep.subr.mxu0 0.0
    %176 = vmatpush1.msra.mxu0 %v149
    %177 = vmatprep.subr.mxu0 0.0
    %178 = vmatpush1.msra.mxu0 %v150
    %179 = vmatprep.subr.mxu0 0.0
    %180 = vmatpush1.msra.mxu0 %v151
    %181 = vmatprep.subr.mxu0 0.0
    %182 = vmatpush1.msra.mxu0 %v152
    %183 = vmatprep.subr.mxu0 0.0
    %184 = vmatpush1.msra.mxu0 %v153
    %185 = vmatprep.subr.mxu0 0.0
    %186 = vmatpush1.msra.mxu0 %v154
    %187 = vmatprep.subr.mxu0 0.0
    %188 = vmatpush1.msra.mxu0 %v155
    %189 = vmatprep.subr.mxu0 0.0
    %190 = vmatpush1.msra.mxu0 %v156
    %191 = vmatprep.subr.mxu0 0.0
    %192 = vmatpush1.msra.mxu0 %v157
    %193 = vmatprep.subr.mxu0 0.0
    %194 = vmatpush1.msra.mxu0 %v158
    %195 = vmatprep.subr.mxu0 0.0
    %196 = vmatpush1.msra.mxu0 %v159
    %197 = vmatprep.subr.mxu0 0.0
    %198 = vmatpush1.msra.mxu0 %v160
    %199 = vmatprep.subr.mxu0 0.0
    %200 = vmatpush1.msra.mxu0 %v161
    %201 = vmatprep.subr.mxu0 0.0
    %202 = vmatpush1.msra.mxu0 0.0
    %203 = vmatprep.subr.mxu0 0.0
    %204 = vmatpush1.msra.mxu0 0.0
    %205 = vmatprep.subr.mxu0 0.0
    %206 = vmatpush1.msra.mxu0 0.0
    %207 = vmatprep.subr.mxu0 0.0
    %208 = vmatpush1.msra.mxu0 0.0
    %209 = vmatprep.subr.mxu0 0.0
    %210 = vmatpush1.msra.mxu0 0.0
    %211 = vmatprep.subr.mxu0 0.0
    %212 = vmatpush1.msra.mxu0 0.0
    %213 = vmatprep.subr.mxu0 0.0
    %214 = vmatpush1.msra.mxu0 0.0
    %215 = vmatprep.subr.mxu0 0.0
    %216 = vmatpush1.msra.mxu0 0.0
    %217 = vmatprep.subr.mxu0 0.0
    %218 = vmatpush1.msra.mxu0 0.0
    %219 = vmatprep.subr.mxu0 0.0
    %220 = vmatpush1.msra.mxu0 0.0
    %221 = vmatprep.subr.mxu0 0.0
    %222 = vmatpush1.msra.mxu0 0.0
    %223 = vmatprep.subr.mxu0 0.0
    %224 = vmatpush1.msra.mxu0 0.0
    %225 = vmatprep.subr.mxu0 0.0
    %226 = vmatpush1.msra.mxu0 0.0
    %227 = vmatprep.subr.mxu0 0.0
    %228 = vmatpush1.msra.mxu0 0.0
    %229 = vmatprep.subr.mxu0 0.0
    %230 = vmatpush1.msra.mxu0 0.0
    %231 = vmatprep.subr.mxu0 0.0
    %232 = vmatpush1.msra.mxu0 0.0
    %233 = vmatprep.mubr.f32.mxu0 0.0
    %234 = vmatmul.mubr.f32.gmra.mrb[0].mxu0 %v82
    %v235 = vpop.f32.mrb[0].mxu0
    %v236 = vadd.f32 %v167, %v235
    %v237 = vpop.f32.mrb[0].mxu0
    %238 = vmatprep.mubr.f32.mxu0 0.0
    %239 = vmatmul.mubr.f32.gmra.mrb[0].mxu0 %v83
    %v240 = vpop.f32.mrb[0].mxu0
    %v241 = vadd.f32 %v167, %v240
    %v242 = vpop.f32.mrb[0].mxu0
    %243 = vmatprep.mubr.f32.mxu0 0.0
    %244 = vmatmul.mubr.f32.gmra.mrb[0].mxu0 %v84
    %v245 = vpop.f32.mrb[0].mxu0
    %v246 = vadd.f32 %v167, %v245
    %v247 = vpop.f32.mrb[0].mxu0
    %248 = vmatprep.mubr.f32.mxu0 0.0
    %249 = vmatmul.mubr.f32.gmra.mrb[0].mxu0 %v85
    %v250 = vpop.f32.mrb[0].mxu0
    %v251 = vadd.f32 %v167, %v250
    %v252 = vpop.f32.mrb[0].mxu0
    %253 = vmatprep.mubr.f32.mxu0 0.0
    %254 = vmatmul.mubr.f32.gmra.mrb[0].mxu0 %v86
    %v255 = vpop.f32.mrb[0].mxu0
    %v256 = vadd.f32 %v167, %v255
    %v257 = vpop.f32.mrb[0].mxu0
    %258 = vmatprep.mubr.f32.mxu0 0.0
    %259 = vmatmul.mubr.f32.gmra.mrb[0].mxu0 %v87
    %v260 = vpop.f32.mrb[0].mxu0
    %v261 = vadd.f32 %v167, %v260
    %v262 = vpop.f32.mrb[0].mxu0
    %263 = vmatprep.mubr.f32.mxu0 0.0
    %264 = vmatmul.mubr.f32.gmra.mrb[0].mxu0 %v88
    %v265 = vpop.f32.mrb[0].mxu0
    %v266 = vadd.f32 %v167, %v265
    %v267 = vpop.f32.mrb[0].mxu0
    %268 = vmatprep.mubr.f32.mxu0 0.0
    %269 = vmatmul.mubr.f32.gmra.mrb[0].mxu0 %v89
    %v270 = vpop.f32.mrb[0].mxu0
    %v271 = vadd.f32 %v167, %v270
    %v272 = vpop.f32.mrb[0].mxu0
    %273 = vmatprep.mubr.f32.mxu0 0.0
    %274 = vmatmul.mubr.f32.gmra.mrb[0].mxu0 %v90
    %v275 = vpop.f32.mrb[0].mxu0
    %v276 = vadd.f32 %v167, %v275
    %v277 = vpop.f32.mrb[0].mxu0
    %278 = vmatprep.mubr.f32.mxu0 0.0
    %279 = vmatmul.mubr.f32.gmra.mrb[0].mxu0 %v91
    %v280 = vpop.f32.mrb[0].mxu0
    %v281 = vadd.f32 %v167, %v280
    %v282 = vpop.f32.mrb[0].mxu0
    %283 = vmatprep.mubr.f32.mxu0 0.0
    %284 = vmatmul.mubr.f32.gmra.mrb[0].mxu0 %v92
    %v285 = vpop.f32.mrb[0].mxu0
    %v286 = vadd.f32 %v167, %v285
    %v287 = vpop.f32.mrb[0].mxu0
    %288 = vmatprep.mubr.f32.mxu0 0.0
    %289 = vmatmul.mubr.f32.gmra.mrb[0].mxu0 %v93
    %v290 = vpop.f32.mrb[0].mxu0
    %v291 = vadd.f32 %v167, %v290
    %v292 = vpop.f32.mrb[0].mxu0
    %293 = vmatprep.mubr.f32.mxu0 0.0
    %294 = vmatmul.mubr.f32.gmra.mrb[0].mxu0 %v94
    %v295 = vpop.f32.mrb[0].mxu0
    %v296 = vadd.f32 %v167, %v295
    %v297 = vpop.f32.mrb[0].mxu0
    %298 = vmatprep.mubr.f32.mxu0 0.0
    %299 = vmatmul.mubr.f32.gmra.mrb[0].mxu0 %v95
    %v300 = vpop.f32.mrb[0].mxu0
    %v301 = vadd.f32 %v167, %v300
    %v302 = vpop.f32.mrb[0].mxu0
    %303 = vmatprep.mubr.f32.mxu0 0.0
    %304 = vmatmul.mubr.f32.gmra.mrb[0].mxu0 %v96
    %v305 = vpop.f32.mrb[0].mxu0
    %v306 = vadd.f32 %v167, %v305
    %v307 = vpop.f32.mrb[0].mxu0
    %308 = vmatprep.mubr.f32.mxu0 0.0
    %309 = vmatmul.mubr.f32.gmra.mrb[0].mxu0 %v97
    %v310 = vpop.f32.mrb[0].mxu0
    %v311 = vadd.f32 %v167, %v310
    %v312 = vpop.f32.mrb[0].mxu0
    %313 = vmatprep.mubr.f32.mxu0 0.0
    %314 = vmatmul.mubr.f32.gmra.mrb[0].mxu0 %v98
    %v315 = vpop.f32.mrb[0].mxu0
    %v316 = vadd.f32 %v167, %v315
    %v317 = vpop.f32.mrb[0].mxu0
    %318 = vmatprep.mubr.f32.mxu0 0.0
    %319 = vmatmul.mubr.f32.gmra.mrb[0].mxu0 %v99
    %v320 = vpop.f32.mrb[0].mxu0
    %v321 = vadd.f32 %v167, %v320
    %v322 = vpop.f32.mrb[0].mxu0
    %323 = vmatprep.mubr.f32.mxu0 0.0
    %324 = vmatmul.mubr.f32.gmra.mrb[0].mxu0 %v100
    %v325 = vpop.f32.mrb[0].mxu0
    %v326 = vadd.f32 %v167, %v325
    %v327 = vpop.f32.mrb[0].mxu0
    %328 = vmatprep.mubr.f32.mxu0 0.0
    %329 = vmatmul.mubr.f32.gmra.mrb[0].mxu0 %v101
    %v330 = vpop.f32.mrb[0].mxu0
    %v331 = vadd.f32 %v167, %v330
    %v332 = vpop.f32.mrb[0].mxu0
    %333 = vmatprep.mubr.f32.mxu0 0.0
    %334 = vmatmul.mubr.f32.gmra.mrb[0].mxu0 %v102
    %v335 = vpop.f32.mrb[0].mxu0
    %v336 = vadd.f32 %v167, %v335
    %v337 = vpop.f32.mrb[0].mxu0
    %338 = vmatprep.mubr.f32.mxu0 0.0
    %339 = vmatmul.mubr.f32.gmra.mrb[0].mxu0 %v103
    %v340 = vpop.f32.mrb[0].mxu0
    %v341 = vadd.f32 %v167, %v340
    %v342 = vpop.f32.mrb[0].mxu0
    %343 = vmatprep.mubr.f32.mxu0 0.0
    %344 = vmatmul.mubr.f32.gmra.mrb[0].mxu0 %v104
    %v345 = vpop.f32.mrb[0].mxu0
    %v346 = vadd.f32 %v167, %v345
    %v347 = vpop.f32.mrb[0].mxu0
    %348 = vmatprep.mubr.f32.mxu0 0.0
    %349 = vmatmul.mubr.f32.gmra.mrb[0].mxu0 %v105
    %v350 = vpop.f32.mrb[0].mxu0
    %v351 = vadd.f32 %v167, %v350
    %v352 = vpop.f32.mrb[0].mxu0
    %353 = vmatprep.mubr.f32.mxu0 0.0
    %354 = vmatmul.mubr.f32.gmra.mrb[0].mxu0 %v106
    %v355 = vpop.f32.mrb[0].mxu0
    %v356 = vadd.f32 %v167, %v355
    %v357 = vpop.f32.mrb[0].mxu0
    %358 = vmatprep.mubr.f32.mxu0 0.0
    %359 = vmatmul.mubr.f32.gmra.mrb[0].mxu0 %v107
    %v360 = vpop.f32.mrb[0].mxu0
    %v361 = vadd.f32 %v167, %v360
    %v362 = vpop.f32.mrb[0].mxu0
    %363 = vmatprep.mubr.f32.mxu0 0.0
    %364 = vmatmul.mubr.f32.gmra.mrb[0].mxu0 %v108
    %v365 = vpop.f32.mrb[0].mxu0
    %v366 = vadd.f32 %v167, %v365
    %v367 = vpop.f32.mrb[0].mxu0
    %368 = vmatprep.mubr.f32.mxu0 0.0
    %369 = vmatmul.mubr.f32.gmra.mrb[0].mxu0 %v109
    %v370 = vpop.f32.mrb[0].mxu0
    %v371 = vadd.f32 %v167, %v370
    %v372 = vpop.f32.mrb[0].mxu0
    %373 = vmatprep.mubr.f32.mxu0 0.0
    %374 = vmatmul.mubr.f32.gmra.mrb[0].mxu0 %v110
    %v375 = vpop.f32.mrb[0].mxu0
    %v376 = vadd.f32 %v167, %v375
    %v377 = vpop.f32.mrb[0].mxu0
    %378 = vmatprep.mubr.f32.mxu0 0.0
    %379 = vmatmul.mubr.f32.gmra.mrb[0].mxu0 %v111
    %v380 = vpop.f32.mrb[0].mxu0
    %v381 = vadd.f32 %v167, %v380
    %v382 = vpop.f32.mrb[0].mxu0
    %383 = vmatprep.mubr.f32.mxu0 0.0
    %384 = vmatmul.mubr.f32.gmra.mrb[0].mxu0 %v112
    %v385 = vpop.f32.mrb[0].mxu0
    %v386 = vadd.f32 %v167, %v385
    %v387 = vpop.f32.mrb[0].mxu0
    %388 = vmatprep.mubr.f32.mxu0 0.0
    %389 = vmatmul.mubr.f32.gmra.mrb[0].mxu0 %v113
    %v390 = vpop.f32.mrb[0].mxu0
    %v391 = vadd.f32 %v167, %v390
    %v392 = vpop.f32.mrb[0].mxu0
    %393 = vmatprep.mubr.f32.mxu0 0.0
    %394 = vmatmul.mubr.f32.gmra.mrb[0].mxu0 %v114
    %v395 = vpop.f32.mrb[0].mxu0
    %v396 = vadd.f32 %v167, %v395
    %v397 = vpop.f32.mrb[0].mxu0
    %398 = vmatprep.mubr.f32.mxu0 0.0
    %399 = vmatmul.mubr.f32.gmra.mrb[0].mxu0 %v115
    %v400 = vpop.f32.mrb[0].mxu0
    %v401 = vadd.f32 %v167, %v400
    %v402 = vpop.f32.mrb[0].mxu0
    %403 = vmatprep.mubr.f32.mxu0 0.0
    %404 = vmatmul.mubr.f32.gmra.mrb[0].mxu0 %v116
    %v405 = vpop.f32.mrb[0].mxu0
    %v406 = vadd.f32 %v167, %v405
    %v407 = vpop.f32.mrb[0].mxu0
    %408 = vmatprep.mubr.f32.mxu0 0.0
    %409 = vmatmul.mubr.f32.gmra.mrb[0].mxu0 %v117
    %v410 = vpop.f32.mrb[0].mxu0
    %v411 = vadd.f32 %v167, %v410
    %v412 = vpop.f32.mrb[0].mxu0
    %413 = vmatprep.mubr.f32.mxu0 0.0
    %414 = vmatmul.mubr.f32.gmra.mrb[0].mxu0 %v118
    %v415 = vpop.f32.mrb[0].mxu0
    %v416 = vadd.f32 %v167, %v415
    %v417 = vpop.f32.mrb[0].mxu0
    %418 = vmatprep.mubr.f32.mxu0 0.0
    %419 = vmatmul.mubr.f32.gmra.mrb[0].mxu0 %v119
    %v420 = vpop.f32.mrb[0].mxu0
    %v421 = vadd.f32 %v167, %v420
    %v422 = vpop.f32.mrb[0].mxu0
    %423 = vmatprep.mubr.f32.mxu0 0.0
    %424 = vmatmul.mubr.f32.gmra.mrb[0].mxu0 %v120
    %v425 = vpop.f32.mrb[0].mxu0
    %v426 = vadd.f32 %v167, %v425
    %v427 = vpop.f32.mrb[0].mxu0
    %428 = vmatprep.mubr.f32.mxu0 0.0
    %429 = vmatmul.mubr.f32.gmra.mrb[0].mxu0 %v121
    %v430 = vpop.f32.mrb[0].mxu0
    %v431 = vadd.f32 %v167, %v430
    %v432 = vpop.f32.mrb[0].mxu0
    %433 = vmatprep.mubr.f32.mxu0 0.0
    %434 = vmatmul.mubr.f32.gmra.mrb[0].mxu0 %v122
    %v435 = vpop.f32.mrb[0].mxu0
    %v436 = vadd.f32 %v167, %v435
    %v437 = vpop.f32.mrb[0].mxu0
    %438 = vmatprep.mubr.f32.mxu0 0.0
    %439 = vmatmul.mubr.f32.gmra.mrb[0].mxu0 %v123
    %v440 = vpop.f32.mrb[0].mxu0
    %v441 = vadd.f32 %v167, %v440
    %v442 = vpop.f32.mrb[0].mxu0
    %443 = vmatprep.mubr.f32.mxu0 0.0
    %444 = vmatmul.mubr.f32.gmra.mrb[0].mxu0 %v124
    %v445 = vpop.f32.mrb[0].mxu0
    %v446 = vadd.f32 %v167, %v445
    %v447 = vpop.f32.mrb[0].mxu0
    %448 = vmatprep.mubr.f32.mxu0 0.0
    %449 = vmatmul.mubr.f32.gmra.mrb[0].mxu0 %v125
    %v450 = vpop.f32.mrb[0].mxu0
    %v451 = vadd.f32 %v167, %v450
    %v452 = vpop.f32.mrb[0].mxu0
    %453 = vmatprep.mubr.f32.mxu0 0.0
    %454 = vmatmul.mubr.f32.gmra.mrb[0].mxu0 %v126
    %v455 = vpop.f32.mrb[0].mxu0
    %v456 = vadd.f32 %v167, %v455
    %v457 = vpop.f32.mrb[0].mxu0
    %458 = vmatprep.mubr.f32.mxu0 0.0
    %459 = vmatmul.mubr.f32.gmra.mrb[0].mxu0 %v127
    %v460 = vpop.f32.mrb[0].mxu0
    %v461 = vadd.f32 %v167, %v460
    %v462 = vpop.f32.mrb[0].mxu0
    %463 = vmatprep.mubr.f32.mxu0 0.0
    %464 = vmatmul.mubr.f32.gmra.mrb[0].mxu0 %v128
    %v465 = vpop.f32.mrb[0].mxu0
    %v466 = vadd.f32 %v167, %v465
    %v467 = vpop.f32.mrb[0].mxu0
    %468 = vmatprep.mubr.f32.mxu0 0.0
    %469 = vmatmul.mubr.f32.gmra.mrb[0].mxu0 %v129
    %v470 = vpop.f32.mrb[0].mxu0
    %v471 = vadd.f32 %v167, %v470
    %v472 = vpop.f32.mrb[0].mxu0
    %473 = vmatprep.mubr.f32.mxu0 0.0
    %474 = vmatmul.mubr.f32.gmra.mrb[0].mxu0 %v130
    %v475 = vpop.f32.mrb[0].mxu0
    %v476 = vadd.f32 %v167, %v475
    %v477 = vpop.f32.mrb[0].mxu0
    %478 = vmatprep.mubr.f32.mxu0 0.0
    %479 = vmatmul.mubr.f32.gmra.mrb[0].mxu0 %v131
    %v480 = vpop.f32.mrb[0].mxu0
    %v481 = vadd.f32 %v167, %v480
    %v482 = vpop.f32.mrb[0].mxu0
    %483 = vmatprep.mubr.f32.mxu0 0.0
    %484 = vmatmul.mubr.f32.gmra.mrb[0].mxu0 %v132
    %v485 = vpop.f32.mrb[0].mxu0
    %v486 = vadd.f32 %v167, %v485
    %v487 = vpop.f32.mrb[0].mxu0
    %488 = vmatprep.mubr.f32.mxu0 0.0
    %489 = vmatmul.mubr.f32.gmra.mrb[0].mxu0 %v133
    %v490 = vpop.f32.mrb[0].mxu0
    %v491 = vadd.f32 %v167, %v490
    %v492 = vpop.f32.mrb[0].mxu0
    %493 = vmatprep.mubr.f32.mxu0 0.0
    %494 = vmatmul.mubr.f32.gmra.mrb[0].mxu0 %v134
    %v495 = vpop.f32.mrb[0].mxu0
    %v496 = vadd.f32 %v167, %v495
    %v497 = vpop.f32.mrb[0].mxu0
    %498 = vmatprep.mubr.f32.mxu0 0.0
    %499 = vmatmul.mubr.f32.gmra.mrb[0].mxu0 %v135
    %v500 = vpop.f32.mrb[0].mxu0
    %v501 = vadd.f32 %v167, %v500
    %v502 = vpop.f32.mrb[0].mxu0
    %503 = vmatprep.mubr.f32.mxu0 0.0
    %504 = vmatmul.mubr.f32.gmra.mrb[0].mxu0 %v136
    %v505 = vpop.f32.mrb[0].mxu0
    %v506 = vadd.f32 %v167, %v505
    %v507 = vpop.f32.mrb[0].mxu0
    %508 = vmatprep.mubr.f32.mxu0 0.0
    %509 = vmatmul.mubr.f32.gmra.mrb[0].mxu0 %v137
    %v510 = vpop.f32.mrb[0].mxu0
    %v511 = vadd.f32 %v167, %v510
    %v512 = vpop.f32.mrb[0].mxu0
    %513 = vmatprep.mubr.f32.mxu0 0.0
    %514 = vmatmul.mubr.f32.gmra.mrb[0].mxu0 %v138
    %v515 = vpop.f32.mrb[0].mxu0
    %v516 = vadd.f32 %v167, %v515
    %v517 = vpop.f32.mrb[0].mxu0
    %518 = vmatprep.mubr.f32.mxu0 0.0
    %519 = vmatmul.mubr.f32.gmra.mrb[0].mxu0 %v139
    %v520 = vpop.f32.mrb[0].mxu0
    %v521 = vadd.f32 %v167, %v520
    %v522 = vpop.f32.mrb[0].mxu0
    %523 = vmatprep.mubr.f32.mxu0 0.0
    %524 = vmatmul.mubr.f32.gmra.mrb[0].mxu0 %v140
    %v525 = vpop.f32.mrb[0].mxu0
    %v526 = vadd.f32 %v167, %v525
    %v527 = vpop.f32.mrb[0].mxu0
    %528 = vmatprep.mubr.f32.mxu0 0.0
    %529 = vmatmul.mubr.f32.gmra.mrb[0].mxu0 %v141
    %v530 = vpop.f32.mrb[0].mxu0
    %v531 = vadd.f32 %v167, %v530
    %v532 = vpop.f32.mrb[0].mxu0
    %533 = vmatprep.mubr.f32.mxu0 0.0
    %534 = vmatmul.mubr.f32.gmra.mrb[0].mxu0 %v142
    %v535 = vpop.f32.mrb[0].mxu0
    %v536 = vadd.f32 %v167, %v535
    %v537 = vpop.f32.mrb[0].mxu0
    %538 = vmatprep.mubr.f32.mxu0 0.0
    %539 = vmatmul.mubr.f32.gmra.mrb[0].mxu0 %v143
    %v540 = vpop.f32.mrb[0].mxu0
    %v541 = vadd.f32 %v167, %v540
    %v542 = vpop.f32.mrb[0].mxu0
    %543 = vmatprep.mubr.f32.mxu0 0.0
    %544 = vmatmul.mubr.f32.gmra.mrb[0].mxu0 %v144
    %v545 = vpop.f32.mrb[0].mxu0
    %v546 = vadd.f32 %v167, %v545
    %v547 = vpop.f32.mrb[0].mxu0
    %548 = vmatprep.mubr.f32.mxu0 0.0
    %549 = vmatmul.mubr.f32.gmra.mrb[0].mxu0 %v145
    %v550 = vpop.f32.mrb[0].mxu0
    %v551 = vadd.f32 %v167, %v550
    %v552 = vpop.f32.mrb[0].mxu0
    %553 = vdwg.mxu0
    %v554 = vmax.f32 %v236, 0.0
    %v555 = vmax.f32 %v241, 0.0
    %v556 = vmax.f32 %v246, 0.0
    %v557 = vmax.f32 %v251, 0.0
    %v558 = vmax.f32 %v256, 0.0
    %v559 = vmax.f32 %v261, 0.0
    %v560 = vmax.f32 %v266, 0.0
    %v561 = vmax.f32 %v271, 0.0
    %v562 = vmax.f32 %v276, 0.0
    %v563 = vmax.f32 %v281, 0.0
    %v564 = vmax.f32 %v286, 0.0
    %v565 = vmax.f32 %v291, 0.0
    %v566 = vmax.f32 %v296, 0.0
    %v567 = vmax.f32 %v301, 0.0
    %v568 = vmax.f32 %v306, 0.0
    %v569 = vmax.f32 %v311, 0.0
    %v570 = vmax.f32 %v316, 0.0
    %v571 = vmax.f32 %v321, 0.0
    %v572 = vmax.f32 %v326, 0.0
    %v573 = vmax.f32 %v331, 0.0
    %v574 = vmax.f32 %v336, 0.0
    %v575 = vmax.f32 %v341, 0.0
    %v576 = vmax.f32 %v346, 0.0
    %v577 = vmax.f32 %v351, 0.0
    %v578 = vmax.f32 %v356, 0.0
    %v579 = vmax.f32 %v361, 0.0
    %v580 = vmax.f32 %v366, 0.0
    %v581 = vmax.f32 %v371, 0.0
    %v582 = vmax.f32 %v376, 0.0
    %v583 = vmax.f32 %v381, 0.0
    %v584 = vmax.f32 %v386, 0.0
    %v585 = vmax.f32 %v391, 0.0
    %v586 = vmax.f32 %v396, 0.0
    %v587 = vmax.f32 %v401, 0.0
    %v588 = vmax.f32 %v406, 0.0
    %v589 = vmax.f32 %v411, 0.0
    %v590 = vmax.f32 %v416, 0.0
    %v591 = vmax.f32 %v421, 0.0
    %v592 = vmax.f32 %v426, 0.0
    %v593 = vmax.f32 %v431, 0.0
    %v594 = vmax.f32 %v436, 0.0
    %v595 = vmax.f32 %v441, 0.0
    %v596 = vmax.f32 %v446, 0.0
    %v597 = vmax.f32 %v451, 0.0
    %v598 = vmax.f32 %v456, 0.0
    %v599 = vmax.f32 %v461, 0.0
    %v600 = vmax.f32 %v466, 0.0
    %v601 = vmax.f32 %v471, 0.0
    %v602 = vmax.f32 %v476, 0.0
    %v603 = vmax.f32 %v481, 0.0
    %v604 = vmax.f32 %v486, 0.0
    %v605 = vmax.f32 %v491, 0.0
    %v606 = vmax.f32 %v496, 0.0
    %v607 = vmax.f32 %v501, 0.0
    %v608 = vmax.f32 %v506, 0.0
    %v609 = vmax.f32 %v511, 0.0
    %v610 = vmax.f32 %v516, 0.0
    %v611 = vmax.f32 %v521, 0.0
    %v612 = vmax.f32 %v526, 0.0
    %v613 = vmax.f32 %v531, 0.0
    %v614 = vmax.f32 %v536, 0.0
    %v615 = vmax.f32 %v541, 0.0
    %v616 = vmax.f32 %v546, 0.0
    %v617 = vmax.f32 %v551, 0.0
    %vm682 = vcmask 1040384
    %v683 = vrot.slane %v554, 7
    %v684 = vrot.slane %v555, 7
    %v685 = vsel %vm682, %v683, %v684
    %v686 = vrot.slane %v556, 7
    %v687 = vrot.slane %v557, 7
    %v688 = vsel %vm682, %v686, %v687
    %v689 = vrot.slane %v558, 7
    %v690 = vrot.slane %v559, 7
    %v691 = vsel %vm682, %v689, %v690
    %v692 = vrot.slane %v560, 7
    %v693 = vrot.slane %v561, 7
    %v694 = vsel %vm682, %v692, %v693
    %v695 = vrot.slane %v562, 7
    %v696 = vrot.slane %v563, 7
    %v697 = vsel %vm682, %v695, %v696
    %v698 = vrot.slane %v564, 7
    %v699 = vrot.slane %v565, 7
    %v700 = vsel %vm682, %v698, %v699
    %v701 = vrot.slane %v566, 7
    %v702 = vrot.slane %v567, 7
    %v703 = vsel %vm682, %v701, %v702
    %v704 = vrot.slane %v568, 7
    %v705 = vrot.slane %v569, 7
    %v706 = vsel %vm682, %v704, %v705
    %v707 = vrot.slane %v570, 7
    %v708 = vrot.slane %v571, 7
    %v709 = vsel %vm682, %v707, %v708
    %v710 = vrot.slane %v572, 7
    %v711 = vrot.slane %v573, 7
    %v712 = vsel %vm682, %v710, %v711
    %v713 = vrot.slane %v574, 7
    %v714 = vrot.slane %v575, 7
    %v715 = vsel %vm682, %v713, %v714
    %v716 = vrot.slane %v576, 7
    %v717 = vrot.slane %v577, 7
    %v718 = vsel %vm682, %v716, %v717
    %v719 = vrot.slane %v578, 7
    %v720 = vrot.slane %v579, 7
    %v721 = vsel %vm682, %v719, %v720
    %v722 = vrot.slane %v580, 7
    %v723 = vrot.slane %v581, 7
    %v724 = vsel %vm682, %v722, %v723
    %v725 = vrot.slane %v582, 7
    %v726 = vrot.slane %v583, 7
    %v727 = vsel %vm682, %v725, %v726
    %v728 = vrot.slane %v584, 7
    %v729 = vrot.slane %v585, 7
    %v730 = vsel %vm682, %v728, %v729
    %v731 = vrot.slane %v586, 7
    %v732 = vrot.slane %v587, 7
    %v733 = vsel %vm682, %v731, %v732
    %v734 = vrot.slane %v588, 7
    %v735 = vrot.slane %v589, 7
    %v736 = vsel %vm682, %v734, %v735
    %v737 = vrot.slane %v590, 7
    %v738 = vrot.slane %v591, 7
    %v739 = vsel %vm682, %v737, %v738
    %v740 = vrot.slane %v592, 7
    %v741 = vrot.slane %v593, 7
    %v742 = vsel %vm682, %v740, %v741
    %v743 = vrot.slane %v594, 7
    %v744 = vrot.slane %v595, 7
    %v745 = vsel %vm682, %v743, %v744
    %v746 = vrot.slane %v596, 7
    %v747 = vrot.slane %v597, 7
    %v748 = vsel %vm682, %v746, %v747
    %v749 = vrot.slane %v598, 7
    %v750 = vrot.slane %v599, 7
    %v751 = vsel %vm682, %v749, %v750
    %v752 = vrot.slane %v600, 7
    %v753 = vrot.slane %v601, 7
    %v754 = vsel %vm682, %v752, %v753
    %v755 = vrot.slane %v602, 7
    %v756 = vrot.slane %v603, 7
    %v757 = vsel %vm682, %v755, %v756
    %v758 = vrot.slane %v604, 7
    %v759 = vrot.slane %v605, 7
    %v760 = vsel %vm682, %v758, %v759
    %v761 = vrot.slane %v606, 7
    %v762 = vrot.slane %v607, 7
    %v763 = vsel %vm682, %v761, %v762
    %v764 = vrot.slane %v608, 7
    %v765 = vrot.slane %v609, 7
    %v766 = vsel %vm682, %v764, %v765
    %v767 = vrot.slane %v610, 7
    %v768 = vrot.slane %v611, 7
    %v769 = vsel %vm682, %v767, %v768
    %v770 = vrot.slane %v612, 7
    %v771 = vrot.slane %v613, 7
    %v772 = vsel %vm682, %v770, %v771
    %v773 = vrot.slane %v614, 7
    %v774 = vrot.slane %v615, 7
    %v775 = vsel %vm682, %v773, %v774
    %v776 = vrot.slane %v616, 7
    %v777 = vrot.slane %v617, 7
    %v778 = vsel %vm682, %v776, %v777
    %v875 = vsel %vm682, 0.0, %v683
    %v876 = vsel %vm682, 0.0, %v686
    %v877 = vsel %vm682, 0.0, %v689
    %v878 = vsel %vm682, 0.0, %v692
    %v879 = vsel %vm682, 0.0, %v695
    %v880 = vsel %vm682, 0.0, %v698
    %v881 = vsel %vm682, 0.0, %v701
    %v882 = vsel %vm682, 0.0, %v704
    %v883 = vsel %vm682, 0.0, %v707
    %v884 = vsel %vm682, 0.0, %v710
    %v885 = vsel %vm682, 0.0, %v713
    %v886 = vsel %vm682, 0.0, %v716
    %v887 = vsel %vm682, 0.0, %v719
    %v888 = vsel %vm682, 0.0, %v722
    %v889 = vsel %vm682, 0.0, %v725
    %v890 = vsel %vm682, 0.0, %v728
    %v891 = vsel %vm682, 0.0, %v731
    %v892 = vsel %vm682, 0.0, %v734
    %v893 = vsel %vm682, 0.0, %v737
    %v894 = vsel %vm682, 0.0, %v740
    %v895 = vsel %vm682, 0.0, %v743
    %v896 = vsel %vm682, 0.0, %v746
    %v897 = vsel %vm682, 0.0, %v749
    %v898 = vsel %vm682, 0.0, %v752
    %v899 = vsel %vm682, 0.0, %v755
    %v900 = vsel %vm682, 0.0, %v758
    %v901 = vsel %vm682, 0.0, %v761
    %v902 = vsel %vm682, 0.0, %v764
    %v903 = vsel %vm682, 0.0, %v767
    %v904 = vsel %vm682, 0.0, %v770
    %v905 = vsel %vm682, 0.0, %v773
    %v906 = vsel %vm682, 0.0, %v776
    %v907 = vsel %vm682, %v684, 0.0
    %v908 = vsel %vm682, %v687, 0.0
    %v909 = vsel %vm682, %v690, 0.0
    %v910 = vsel %vm682, %v693, 0.0
    %v911 = vsel %vm682, %v696, 0.0
    %v912 = vsel %vm682, %v699, 0.0
    %v913 = vsel %vm682, %v702, 0.0
    %v914 = vsel %vm682, %v705, 0.0
    %v915 = vsel %vm682, %v708, 0.0
    %v916 = vsel %vm682, %v711, 0.0
    %v917 = vsel %vm682, %v714, 0.0
    %v918 = vsel %vm682, %v717, 0.0
    %v919 = vsel %vm682, %v720, 0.0
    %v920 = vsel %vm682, %v723, 0.0
    %v921 = vsel %vm682, %v726, 0.0
    %v922 = vsel %vm682, %v729, 0.0
    %v923 = vsel %vm682, %v732, 0.0
    %v924 = vsel %vm682, %v735, 0.0
    %v925 = vsel %vm682, %v738, 0.0
    %v926 = vsel %vm682, %v741, 0.0
    %v927 = vsel %vm682, %v744, 0.0
    %v928 = vsel %vm682, %v747, 0.0
    %v929 = vsel %vm682, %v750, 0.0
    %v930 = vsel %vm682, %v753, 0.0
    %v931 = vsel %vm682, %v756, 0.0
    %v932 = vsel %vm682, %v759, 0.0
    %v933 = vsel %vm682, %v762, 0.0
    %v934 = vsel %vm682, %v765, 0.0
    %v935 = vsel %vm682, %v768, 0.0
    %v936 = vsel %vm682, %v771, 0.0
    %v937 = vsel %vm682, %v774, 0.0
    %v938 = vsel %vm682, %v777, 0.0
    %s939 = scalar_lea.vmem [#allocation2], 24
    %940 = vst [vmem:[%s939] sm:$0xff] %v875
    %941 = vst [vmem:[%s939 + $0x8] sm:$0xff] %v685
    %942 = vst [vmem:[%s939 + $0x10] sm:$0x3] %v907
    %943 = vst [vmem:[%s939 + $0x18] sm:$0xff] %v876
    %944 = vst [vmem:[%s939 + $0x20] sm:$0xff] %v688
    %945 = vst [vmem:[%s939 + $0x28] sm:$0x3] %v908
    %946 = vst [vmem:[%s939 + $0x30] sm:$0xff] %v877
    %947 = vst [vmem:[%s939 + $0x38] sm:$0xff] %v691
    %948 = vst [vmem:[%s939 + $0x40] sm:$0x3] %v909
    %949 = vst [vmem:[%s939 + $0x48] sm:$0xff] %v878
    %950 = vst [vmem:[%s939 + $0x50] sm:$0xff] %v694
    %951 = vst [vmem:[%s939 + $0x58] sm:$0x3] %v910
    %952 = vst [vmem:[%s939 + $0x60] sm:$0xff] %v879
    %953 = vst [vmem:[%s939 + $0x68] sm:$0xff] %v697
    %954 = vst [vmem:[%s939 + $0x70] sm:$0x3] %v911
    %955 = vst [vmem:[%s939 + $0x78] sm:$0xff] %v880
    %956 = vst [vmem:[%s939 + $0x80] sm:$0xff] %v700
    %957 = vst [vmem:[%s939 + $0x88] sm:$0x3] %v912
    %958 = vst [vmem:[%s939 + $0x90] sm:$0xff] %v881
    %959 = vst [vmem:[%s939 + $0x98] sm:$0xff] %v703
    %960 = vst [vmem:[%s939 + $0xa0] sm:$0x3] %v913
    %961 = vst [vmem:[%s939 + $0xa8] sm:$0xff] %v882
    %962 = vst [vmem:[%s939 + $0xb0] sm:$0xff] %v706
    %963 = vst [vmem:[%s939 + $0xb8] sm:$0x3] %v914
    %964 = vst [vmem:[%s939 + $0xc0] sm:$0xff] %v883
    %965 = vst [vmem:[%s939 + $0xc8] sm:$0xff] %v709
    %966 = vst [vmem:[%s939 + $0xd0] sm:$0x3] %v915
    %967 = vst [vmem:[%s939 + $0xd8] sm:$0xff] %v884
    %968 = vst [vmem:[%s939 + $0xe0] sm:$0xff] %v712
    %969 = vst [vmem:[%s939 + $0xe8] sm:$0x3] %v916
    %970 = vst [vmem:[%s939 + $0xf0] sm:$0xff] %v885
    %971 = vst [vmem:[%s939 + $0xf8] sm:$0xff] %v715
    %972 = vst [vmem:[%s939 + $0x100] sm:$0x3] %v917
    %973 = vst [vmem:[%s939 + $0x108] sm:$0xff] %v886
    %974 = vst [vmem:[%s939 + $0x110] sm:$0xff] %v718
    %975 = vst [vmem:[%s939 + $0x118] sm:$0x3] %v918
    %976 = vst [vmem:[%s939 + $0x120] sm:$0xff] %v887
    %977 = vst [vmem:[%s939 + $0x128] sm:$0xff] %v721
    %978 = vst [vmem:[%s939 + $0x130] sm:$0x3] %v919
    %979 = vst [vmem:[%s939 + $0x138] sm:$0xff] %v888
    %980 = vst [vmem:[%s939 + $0x140] sm:$0xff] %v724
    %981 = vst [vmem:[%s939 + $0x148] sm:$0x3] %v920
    %982 = vst [vmem:[%s939 + $0x150] sm:$0xff] %v889
    %983 = vst [vmem:[%s939 + $0x158] sm:$0xff] %v727
    %984 = vst [vmem:[%s939 + $0x160] sm:$0x3] %v921
    %985 = vst [vmem:[%s939 + $0x168] sm:$0xff] %v890
    %986 = vst [vmem:[%s939 + $0x170] sm:$0xff] %v730
    %987 = vst [vmem:[%s939 + $0x178] sm:$0x3] %v922
    %988 = vst [vmem:[%s939 + $0x1b0] sm:$0xff] %v891
    %989 = vst [vmem:[%s939 + $0x1b8] sm:$0xff] %v733
    %990 = vst [vmem:[%s939 + $0x1c0] sm:$0x3] %v923
    %991 = vst [vmem:[%s939 + $0x1c8] sm:$0xff] %v892
    %992 = vst [vmem:[%s939 + $0x1d0] sm:$0xff] %v736
    %993 = vst [vmem:[%s939 + $0x1d8] sm:$0x3] %v924
    %994 = vst [vmem:[%s939 + $0x1e0] sm:$0xff] %v893
    %995 = vst [vmem:[%s939 + $0x1e8] sm:$0xff] %v739
    %996 = vst [vmem:[%s939 + $0x1f0] sm:$0x3] %v925
    %997 = vst [vmem:[%s939 + $0x1f8] sm:$0xff] %v894
    %998 = vst [vmem:[%s939 + $0x200] sm:$0xff] %v742
    %999 = vst [vmem:[%s939 + $0x208] sm:$0x3] %v926
    %1000 = vst [vmem:[%s939 + $0x210] sm:$0xff] %v895
    %1001 = vst [vmem:[%s939 + $0x218] sm:$0xff] %v745
    %1002 = vst [vmem:[%s939 + $0x220] sm:$0x3] %v927
    %1003 = vst [vmem:[%s939 + $0x228] sm:$0xff] %v896
    %1004 = vst [vmem:[%s939 + $0x230] sm:$0xff] %v748
    %1005 = vst [vmem:[%s939 + $0x238] sm:$0x3] %v928
    %1006 = vst [vmem:[%s939 + $0x240] sm:$0xff] %v897
    %1007 = vst [vmem:[%s939 + $0x248] sm:$0xff] %v751
    %1008 = vst [vmem:[%s939 + $0x250] sm:$0x3] %v929
    %1009 = vst [vmem:[%s939 + $0x258] sm:$0xff] %v898
    %1010 = vst [vmem:[%s939 + $0x260] sm:$0xff] %v754
    %1011 = vst [vmem:[%s939 + $0x268] sm:$0x3] %v930
    %1012 = vst [vmem:[%s939 + $0x270] sm:$0xff] %v899
    %1013 = vst [vmem:[%s939 + $0x278] sm:$0xff] %v757
    %1014 = vst [vmem:[%s939 + $0x280] sm:$0x3] %v931
    %1015 = vst [vmem:[%s939 + $0x288] sm:$0xff] %v900
    %1016 = vst [vmem:[%s939 + $0x290] sm:$0xff] %v760
    %1017 = vst [vmem:[%s939 + $0x298] sm:$0x3] %v932
    %1018 = vst [vmem:[%s939 + $0x2a0] sm:$0xff] %v901
    %1019 = vst [vmem:[%s939 + $0x2a8] sm:$0xff] %v763
    %1020 = vst [vmem:[%s939 + $0x2b0] sm:$0x3] %v933
    %1021 = vst [vmem:[%s939 + $0x2b8] sm:$0xff] %v902
    %1022 = vst [vmem:[%s939 + $0x2c0] sm:$0xff] %v766
    %1023 = vst [vmem:[%s939 + $0x2c8] sm:$0x3] %v934
    %1024 = vst [vmem:[%s939 + $0x2d0] sm:$0xff] %v903
    %1025 = vst [vmem:[%s939 + $0x2d8] sm:$0xff] %v769
    %1026 = vst [vmem:[%s939 + $0x2e0] sm:$0x3] %v935
    %1027 = vst [vmem:[%s939 + $0x2e8] sm:$0xff] %v904
    %1028 = vst [vmem:[%s939 + $0x2f0] sm:$0xff] %v772
    %1029 = vst [vmem:[%s939 + $0x2f8] sm:$0x3] %v936
    %1030 = vst [vmem:[%s939 + $0x300] sm:$0xff] %v905
    %1031 = vst [vmem:[%s939 + $0x308] sm:$0xff] %v775
    %1032 = vst [vmem:[%s939 + $0x310] sm:$0x3] %v937
    %1033 = vst [vmem:[%s939 + $0x318] sm:$0xff] %v906
    %1034 = vst [vmem:[%s939 + $0x320] sm:$0xff] %v778
    %1035 = vst [vmem:[%s939 + $0x328] sm:$0x3] %v938
    %1036 = vst [vmem:[#allocation2] sm:$0xff] 0.0
    %1037 = vst [vmem:[#allocation2 + $0x8] sm:$0xff] 0.0
    %1038 = vst [vmem:[#allocation2 + $0x10] sm:$0x3] 0.0
    %1039 = vst [vmem:[#allocation2 + $0x1b0] sm:$0xff] 0.0
    %1040 = vst [vmem:[#allocation2 + $0x1b8] sm:$0xff] 0.0
    %1041 = vst [vmem:[#allocation2 + $0x1c0] sm:$0x3] 0.0
    %s1042 = scalar_lea.vmem [#allocation2], 408
    %1043 = vst [vmem:[%s1042] sm:$0xff] 0.0
    %1044 = vst [vmem:[%s1042 + $0x8] sm:$0xff] 0.0
    %1045 = vst [vmem:[%s1042 + $0x10] sm:$0x3] 0.0
    %1046 = vst [vmem:[%s1042 + $0x1b0] sm:$0xff] 0.0
    %1047 = vst [vmem:[%s1042 + $0x1b8] sm:$0xff] 0.0
    %1048 = vst [vmem:[%s1042 + $0x1c0] sm:$0x3] 0.0
    %v1049 = vld [vmem:[#allocation2] sm:$0xff]
    %v1050 = vld [vmem:[#allocation2 + $0x8] sm:$0xff]
    %v1051 = vld [vmem:[#allocation2 + $0x18] sm:$0xff]
    %v1052 = vld [vmem:[#allocation2 + $0x20] sm:$0xff]
    %v1053 = vld [vmem:[#allocation2 + $0x30] sm:$0xff]
    %v1054 = vld [vmem:[#allocation2 + $0x38] sm:$0xff]
    %v1055 = vld [vmem:[#allocation2 + $0x48] sm:$0xff]
    %v1056 = vld [vmem:[#allocation2 + $0x50] sm:$0xff]
    %v1057 = vld [vmem:[#allocation2 + $0x60] sm:$0xff]
    %v1058 = vld [vmem:[#allocation2 + $0x68] sm:$0xff]
    %v1059 = vld [vmem:[#allocation2 + $0x78] sm:$0xff]
    %v1060 = vld [vmem:[#allocation2 + $0x80] sm:$0xff]
    %v1061 = vld [vmem:[#allocation2 + $0x90] sm:$0xff]
    %v1062 = vld [vmem:[#allocation2 + $0x98] sm:$0xff]
    %v1063 = vld [vmem:[#allocation2 + $0xa8] sm:$0xff]
    %v1064 = vld [vmem:[#allocation2 + $0xb0] sm:$0xff]
    %v1065 = vld [vmem:[#allocation2 + $0xc0] sm:$0xff]
    %v1066 = vld [vmem:[#allocation2 + $0xc8] sm:$0xff]
    %v1067 = vld [vmem:[#allocation2 + $0xd8] sm:$0xff]
    %v1068 = vld [vmem:[#allocation2 + $0xe0] sm:$0xff]
    %v1069 = vld [vmem:[#allocation2 + $0xf0] sm:$0xff]
    %v1070 = vld [vmem:[#allocation2 + $0xf8] sm:$0xff]
    %v1071 = vld [vmem:[#allocation2 + $0x108] sm:$0xff]
    %v1072 = vld [vmem:[#allocation2 + $0x110] sm:$0xff]
    %v1073 = vld [vmem:[#allocation2 + $0x120] sm:$0xff]
    %v1074 = vld [vmem:[#allocation2 + $0x128] sm:$0xff]
    %v1075 = vld [vmem:[#allocation2 + $0x138] sm:$0xff]
    %v1076 = vld [vmem:[#allocation2 + $0x140] sm:$0xff]
    %v1077 = vld [vmem:[#allocation2 + $0x150] sm:$0xff]
    %v1078 = vld [vmem:[#allocation2 + $0x158] sm:$0xff]
    %v1079 = vld [vmem:[#allocation2 + $0x168] sm:$0xff]
    %v1080 = vld [vmem:[#allocation2 + $0x170] sm:$0xff]
    %v1081 = vld [vmem:[#allocation2 + $0x1b0] sm:$0xff]
    %v1082 = vld [vmem:[#allocation2 + $0x1b8] sm:$0xff]
    %v1083 = vld [vmem:[#allocation2 + $0x1c8] sm:$0xff]
    %v1084 = vld [vmem:[#allocation2 + $0x1d0] sm:$0xff]
    %v1085 = vld [vmem:[#allocation2 + $0x1e0] sm:$0xff]
    %v1086 = vld [vmem:[#allocation2 + $0x1e8] sm:$0xff]
    %v1087 = vld [vmem:[#allocation2 + $0x1f8] sm:$0xff]
    %v1088 = vld [vmem:[#allocation2 + $0x200] sm:$0xff]
    %v1089 = vld [vmem:[#allocation2 + $0x210] sm:$0xff]
    %v1090 = vld [vmem:[#allocation2 + $0x218] sm:$0xff]
    %v1091 = vld [vmem:[#allocation2 + $0x228] sm:$0xff]
    %v1092 = vld [vmem:[#allocation2 + $0x230] sm:$0xff]
    %v1093 = vld [vmem:[#allocation2 + $0x240] sm:$0xff]
    %v1094 = vld [vmem:[#allocation2 + $0x248] sm:$0xff]
    %v1095 = vld [vmem:[#allocation2 + $0x258] sm:$0xff]
    %v1096 = vld [vmem:[#allocation2 + $0x260] sm:$0xff]
    %v1097 = vld [vmem:[#allocation2 + $0x270] sm:$0xff]
    %v1098 = vld [vmem:[#allocation2 + $0x278] sm:$0xff]
    %v1099 = vld [vmem:[#allocation2 + $0x288] sm:$0xff]
    %v1100 = vld [vmem:[#allocation2 + $0x290] sm:$0xff]
    %v1101 = vld [vmem:[#allocation2 + $0x2a0] sm:$0xff]
    %v1102 = vld [vmem:[#allocation2 + $0x2a8] sm:$0xff]
    %v1103 = vld [vmem:[#allocation2 + $0x2b8] sm:$0xff]
    %v1104 = vld [vmem:[#allocation2 + $0x2c0] sm:$0xff]
    %v1105 = vld [vmem:[#allocation2 + $0x2d0] sm:$0xff]
    %v1106 = vld [vmem:[#allocation2 + $0x2d8] sm:$0xff]
    %v1107 = vld [vmem:[#allocation2 + $0x2e8] sm:$0xff]
    %v1108 = vld [vmem:[#allocation2 + $0x2f0] sm:$0xff]
    %v1109 = vld [vmem:[#allocation2 + $0x300] sm:$0xff]
    %v1110 = vld [vmem:[#allocation2 + $0x308] sm:$0xff]
    %v1111 = vld [vmem:[#allocation2 + $0x318] sm:$0xff]
    %v1112 = vld [vmem:[#allocation2 + $0x320] sm:$0xff]
    %v1113 = vld [vmem:[#allocation2 + $0x1] sm:$0xff]
    %v1114 = vld [vmem:[#allocation2 + $0x9] sm:$0xff]
    %v1115 = vld [vmem:[#allocation2 + $0x19] sm:$0xff]
    %v1116 = vld [vmem:[#allocation2 + $0x21] sm:$0xff]
    %v1117 = vld [vmem:[#allocation2 + $0x31] sm:$0xff]
    %v1118 = vld [vmem:[#allocation2 + $0x39] sm:$0xff]
    %v1119 = vld [vmem:[#allocation2 + $0x49] sm:$0xff]
    %v1120 = vld [vmem:[#allocation2 + $0x51] sm:$0xff]
    %v1121 = vld [vmem:[#allocation2 + $0x61] sm:$0xff]
    %v1122 = vld [vmem:[#allocation2 + $0x69] sm:$0xff]
    %v1123 = vld [vmem:[#allocation2 + $0x79] sm:$0xff]
    %v1124 = vld [vmem:[#allocation2 + $0x81] sm:$0xff]
    %v1125 = vld [vmem:[#allocation2 + $0x91] sm:$0xff]
    %v1126 = vld [vmem:[#allocation2 + $0x99] sm:$0xff]
    %v1127 = vld [vmem:[#allocation2 + $0xa9] sm:$0xff]
    %v1128 = vld [vmem:[#allocation2 + $0xb1] sm:$0xff]
    %v1129 = vld [vmem:[#allocation2 + $0xc1] sm:$0xff]
    %v1130 = vld [vmem:[#allocation2 + $0xc9] sm:$0xff]
    %v1131 = vld [vmem:[#allocation2 + $0xd9] sm:$0xff]
    %v1132 = vld [vmem:[#allocation2 + $0xe1] sm:$0xff]
    %v1133 = vld [vmem:[#allocation2 + $0xf1] sm:$0xff]
    %v1134 = vld [vmem:[#allocation2 + $0xf9] sm:$0xff]
    %v1135 = vld [vmem:[#allocation2 + $0x109] sm:$0xff]
    %v1136 = vld [vmem:[#allocation2 + $0x111] sm:$0xff]
    %v1137 = vld [vmem:[#allocation2 + $0x121] sm:$0xff]
    %v1138 = vld [vmem:[#allocation2 + $0x129] sm:$0xff]
    %v1139 = vld [vmem:[#allocation2 + $0x139] sm:$0xff]
    %v1140 = vld [vmem:[#allocation2 + $0x141] sm:$0xff]
    %v1141 = vld [vmem:[#allocation2 + $0x151] sm:$0xff]
    %v1142 = vld [vmem:[#allocation2 + $0x159] sm:$0xff]
    %v1143 = vld [vmem:[#allocation2 + $0x169] sm:$0xff]
    %v1144 = vld [vmem:[#allocation2 + $0x171] sm:$0xff]
    %v1145 = vld [vmem:[#allocation2 + $0x1b1] sm:$0xff]
    %v1146 = vld [vmem:[#allocation2 + $0x1b9] sm:$0xff]
    %v1147 = vld [vmem:[#allocation2 + $0x1c9] sm:$0xff]
    %v1148 = vld [vmem:[#allocation2 + $0x1d1] sm:$0xff]
    %v1149 = vld [vmem:[#allocation2 + $0x1e1] sm:$0xff]
    %v1150 = vld [vmem:[#allocation2 + $0x1e9] sm:$0xff]
    %v1151 = vld [vmem:[#allocation2 + $0x1f9] sm:$0xff]
    %v1152 = vld [vmem:[#allocation2 + $0x201] sm:$0xff]
    %v1153 = vld [vmem:[#allocation2 + $0x211] sm:$0xff]
    %v1154 = vld [vmem:[#allocation2 + $0x219] sm:$0xff]
    %v1155 = vld [vmem:[#allocation2 + $0x229] sm:$0xff]
    %v1156 = vld [vmem:[#allocation2 + $0x231] sm:$0xff]
    %v1157 = vld [vmem:[#allocation2 + $0x241] sm:$0xff]
    %v1158 = vld [vmem:[#allocation2 + $0x249] sm:$0xff]
    %v1159 = vld [vmem:[#allocation2 + $0x259] sm:$0xff]
    %v1160 = vld [vmem:[#allocation2 + $0x261] sm:$0xff]
    %v1161 = vld [vmem:[#allocation2 + $0x271] sm:$0xff]
    %v1162 = vld [vmem:[#allocation2 + $0x279] sm:$0xff]
    %v1163 = vld [vmem:[#allocation2 + $0x289] sm:$0xff]
    %v1164 = vld [vmem:[#allocation2 + $0x291] sm:$0xff]
    %v1165 = vld [vmem:[#allocation2 + $0x2a1] sm:$0xff]
    %v1166 = vld [vmem:[#allocation2 + $0x2a9] sm:$0xff]
    %v1167 = vld [vmem:[#allocation2 + $0x2b9] sm:$0xff]
    %v1168 = vld [vmem:[#allocation2 + $0x2c1] sm:$0xff]
    %v1169 = vld [vmem:[#allocation2 + $0x2d1] sm:$0xff]
    %v1170 = vld [vmem:[#allocation2 + $0x2d9] sm:$0xff]
    %v1171 = vld [vmem:[#allocation2 + $0x2e9] sm:$0xff]
    %v1172 = vld [vmem:[#allocation2 + $0x2f1] sm:$0xff]
    %v1173 = vld [vmem:[#allocation2 + $0x301] sm:$0xff]
    %v1174 = vld [vmem:[#allocation2 + $0x309] sm:$0xff]
    %v1175 = vld [vmem:[#allocation2 + $0x319] sm:$0xff]
    %v1176 = vld [vmem:[#allocation2 + $0x321] sm:$0xff]
    %v1177 = vld [vmem:[#allocation2 + $0x2] sm:$0xff]
    %v1178 = vld [vmem:[#allocation2 + $0xa] sm:$0xff]
    %v1179 = vld [vmem:[#allocation2 + $0x1a] sm:$0xff]
    %v1180 = vld [vmem:[#allocation2 + $0x22] sm:$0xff]
    %v1181 = vld [vmem:[#allocation2 + $0x32] sm:$0xff]
    %v1182 = vld [vmem:[#allocation2 + $0x3a] sm:$0xff]
    %v1183 = vld [vmem:[#allocation2 + $0x4a] sm:$0xff]
    %v1184 = vld [vmem:[#allocation2 + $0x52] sm:$0xff]
    %v1185 = vld [vmem:[#allocation2 + $0x62] sm:$0xff]
    %v1186 = vld [vmem:[#allocation2 + $0x6a] sm:$0xff]
    %v1187 = vld [vmem:[#allocation2 + $0x7a] sm:$0xff]
    %v1188 = vld [vmem:[#allocation2 + $0x82] sm:$0xff]
    %v1189 = vld [vmem:[#allocation2 + $0x92] sm:$0xff]
    %v1190 = vld [vmem:[#allocation2 + $0x9a] sm:$0xff]
    %v1191 = vld [vmem:[#allocation2 + $0xaa] sm:$0xff]
    %v1192 = vld [vmem:[#allocation2 + $0xb2] sm:$0xff]
    %v1193 = vld [vmem:[#allocation2 + $0xc2] sm:$0xff]
    %v1194 = vld [vmem:[#allocation2 + $0xca] sm:$0xff]
    %v1195 = vld [vmem:[#allocation2 + $0xda] sm:$0xff]
    %v1196 = vld [vmem:[#allocation2 + $0xe2] sm:$0xff]
    %v1197 = vld [vmem:[#allocation2 + $0xf2] sm:$0xff]
    %v1198 = vld [vmem:[#allocation2 + $0xfa] sm:$0xff]
    %v1199 = vld [vmem:[#allocation2 + $0x10a] sm:$0xff]
    %v1200 = vld [vmem:[#allocation2 + $0x112] sm:$0xff]
    %v1201 = vld [vmem:[#allocation2 + $0x122] sm:$0xff]
    %v1202 = vld [vmem:[#allocation2 + $0x12a] sm:$0xff]
    %v1203 = vld [vmem:[#allocation2 + $0x13a] sm:$0xff]
    %v1204 = vld [vmem:[#allocation2 + $0x142] sm:$0xff]
    %v1205 = vld [vmem:[#allocation2 + $0x152] sm:$0xff]
    %v1206 = vld [vmem:[#allocation2 + $0x15a] sm:$0xff]
    %v1207 = vld [vmem:[#allocation2 + $0x16a] sm:$0xff]
    %v1208 = vld [vmem:[#allocation2 + $0x172] sm:$0xff]
    %v1209 = vld [vmem:[#allocation2 + $0x1b2] sm:$0xff]
    %v1210 = vld [vmem:[#allocation2 + $0x1ba] sm:$0xff]
    %v1211 = vld [vmem:[#allocation2 + $0x1ca] sm:$0xff]
    %v1212 = vld [vmem:[#allocation2 + $0x1d2] sm:$0xff]
    %v1213 = vld [vmem:[#allocation2 + $0x1e2] sm:$0xff]
    %v1214 = vld [vmem:[#allocation2 + $0x1ea] sm:$0xff]
    %v1215 = vld [vmem:[#allocation2 + $0x1fa] sm:$0xff]
    %v1216 = vld [vmem:[#allocation2 + $0x202] sm:$0xff]
    %v1217 = vld [vmem:[#allocation2 + $0x212] sm:$0xff]
    %v1218 = vld [vmem:[#allocation2 + $0x21a] sm:$0xff]
    %v1219 = vld [vmem:[#allocation2 + $0x22a] sm:$0xff]
    %v1220 = vld [vmem:[#allocation2 + $0x232] sm:$0xff]
    %v1221 = vld [vmem:[#allocation2 + $0x242] sm:$0xff]
    %v1222 = vld [vmem:[#allocation2 + $0x24a] sm:$0xff]
    %v1223 = vld [vmem:[#allocation2 + $0x25a] sm:$0xff]
    %v1224 = vld [vmem:[#allocation2 + $0x262] sm:$0xff]
    %v1225 = vld [vmem:[#allocation2 + $0x272] sm:$0xff]
    %v1226 = vld [vmem:[#allocation2 + $0x27a] sm:$0xff]
    %v1227 = vld [vmem:[#allocation2 + $0x28a] sm:$0xff]
    %v1228 = vld [vmem:[#allocation2 + $0x292] sm:$0xff]
    %v1229 = vld [vmem:[#allocation2 + $0x2a2] sm:$0xff]
    %v1230 = vld [vmem:[#allocation2 + $0x2aa] sm:$0xff]
    %v1231 = vld [vmem:[#allocation2 + $0x2ba] sm:$0xff]
    %v1232 = vld [vmem:[#allocation2 + $0x2c2] sm:$0xff]
    %v1233 = vld [vmem:[#allocation2 + $0x2d2] sm:$0xff]
    %v1234 = vld [vmem:[#allocation2 + $0x2da] sm:$0xff]
    %v1235 = vld [vmem:[#allocation2 + $0x2ea] sm:$0xff]
    %v1236 = vld [vmem:[#allocation2 + $0x2f2] sm:$0xff]
    %v1237 = vld [vmem:[#allocation2 + $0x302] sm:$0xff]
    %v1238 = vld [vmem:[#allocation2 + $0x30a] sm:$0xff]
    %v1239 = vld [vmem:[#allocation2 + $0x31a] sm:$0xff]
    %v1240 = vld [vmem:[#allocation2 + $0x322] sm:$0xff]
    %v1241 = vld [vmem:[%s939] sm:$0xff]
    %v1242 = vld [vmem:[%s939 + $0x8] sm:$0xff]
    %v1243 = vld [vmem:[%s939 + $0x18] sm:$0xff]
    %v1244 = vld [vmem:[%s939 + $0x20] sm:$0xff]
    %v1245 = vld [vmem:[%s939 + $0x30] sm:$0xff]
    %v1246 = vld [vmem:[%s939 + $0x38] sm:$0xff]
    %v1247 = vld [vmem:[%s939 + $0x48] sm:$0xff]
    %v1248 = vld [vmem:[%s939 + $0x50] sm:$0xff]
    %v1249 = vld [vmem:[%s939 + $0x60] sm:$0xff]
    %v1250 = vld [vmem:[%s939 + $0x68] sm:$0xff]
    %v1251 = vld [vmem:[%s939 + $0x78] sm:$0xff]
    %v1252 = vld [vmem:[%s939 + $0x80] sm:$0xff]
    %v1253 = vld [vmem:[%s939 + $0x90] sm:$0xff]
    %v1254 = vld [vmem:[%s939 + $0x98] sm:$0xff]
    %v1255 = vld [vmem:[%s939 + $0xa8] sm:$0xff]
    %v1256 = vld [vmem:[%s939 + $0xb0] sm:$0xff]
    %v1257 = vld [vmem:[%s939 + $0xc0] sm:$0xff]
    %v1258 = vld [vmem:[%s939 + $0xc8] sm:$0xff]
    %v1259 = vld [vmem:[%s939 + $0xd8] sm:$0xff]
    %v1260 = vld [vmem:[%s939 + $0xe0] sm:$0xff]
    %v1261 = vld [vmem:[%s939 + $0xf0] sm:$0xff]
    %v1262 = vld [vmem:[%s939 + $0xf8] sm:$0xff]
    %v1263 = vld [vmem:[%s939 + $0x108] sm:$0xff]
    %v1264 = vld [vmem:[%s939 + $0x110] sm:$0xff]
    %v1265 = vld [vmem:[%s939 + $0x120] sm:$0xff]
    %v1266 = vld [vmem:[%s939 + $0x128] sm:$0xff]
    %v1267 = vld [vmem:[%s939 + $0x138] sm:$0xff]
    %v1268 = vld [vmem:[%s939 + $0x140] sm:$0xff]
    %v1269 = vld [vmem:[%s939 + $0x150] sm:$0xff]
    %v1270 = vld [vmem:[%s939 + $0x158] sm:$0xff]
    %v1271 = vld [vmem:[%s939 + $0x168] sm:$0xff]
    %v1272 = vld [vmem:[%s939 + $0x170] sm:$0xff]
    %v1273 = vld [vmem:[%s939 + $0x1b0] sm:$0xff]
    %v1274 = vld [vmem:[%s939 + $0x1b8] sm:$0xff]
    %v1275 = vld [vmem:[%s939 + $0x1c8] sm:$0xff]
    %v1276 = vld [vmem:[%s939 + $0x1d0] sm:$0xff]
    %v1277 = vld [vmem:[%s939 + $0x1e0] sm:$0xff]
    %v1278 = vld [vmem:[%s939 + $0x1e8] sm:$0xff]
    %v1279 = vld [vmem:[%s939 + $0x1f8] sm:$0xff]
    %v1280 = vld [vmem:[%s939 + $0x200] sm:$0xff]
    %v1281 = vld [vmem:[%s939 + $0x210] sm:$0xff]
    %v1282 = vld [vmem:[%s939 + $0x218] sm:$0xff]
    %v1283 = vld [vmem:[%s939 + $0x228] sm:$0xff]
    %v1284 = vld [vmem:[%s939 + $0x230] sm:$0xff]
    %v1285 = vld [vmem:[%s939 + $0x240] sm:$0xff]
    %v1286 = vld [vmem:[%s939 + $0x248] sm:$0xff]
    %v1287 = vld [vmem:[%s939 + $0x258] sm:$0xff]
    %v1288 = vld [vmem:[%s939 + $0x260] sm:$0xff]
    %v1289 = vld [vmem:[%s939 + $0x270] sm:$0xff]
    %v1290 = vld [vmem:[%s939 + $0x278] sm:$0xff]
    %v1291 = vld [vmem:[%s939 + $0x288] sm:$0xff]
    %v1292 = vld [vmem:[%s939 + $0x290] sm:$0xff]
    %v1293 = vld [vmem:[%s939 + $0x2a0] sm:$0xff]
    %v1294 = vld [vmem:[%s939 + $0x2a8] sm:$0xff]
    %v1295 = vld [vmem:[%s939 + $0x2b8] sm:$0xff]
    %v1296 = vld [vmem:[%s939 + $0x2c0] sm:$0xff]
    %v1297 = vld [vmem:[%s939 + $0x2d0] sm:$0xff]
    %v1298 = vld [vmem:[%s939 + $0x2d8] sm:$0xff]
    %v1299 = vld [vmem:[%s939 + $0x2e8] sm:$0xff]
    %v1300 = vld [vmem:[%s939 + $0x2f0] sm:$0xff]
    %v1301 = vld [vmem:[%s939 + $0x300] sm:$0xff]
    %v1302 = vld [vmem:[%s939 + $0x308] sm:$0xff]
    %v1303 = vld [vmem:[%s939 + $0x318] sm:$0xff]
    %v1304 = vld [vmem:[%s939 + $0x320] sm:$0xff]
    %v1305 = vld [vmem:[%s939 + $0x1] sm:$0xff]
    %v1306 = vld [vmem:[%s939 + $0x9] sm:$0xff]
    %v1307 = vld [vmem:[%s939 + $0x19] sm:$0xff]
    %v1308 = vld [vmem:[%s939 + $0x21] sm:$0xff]
    %v1309 = vld [vmem:[%s939 + $0x31] sm:$0xff]
    %v1310 = vld [vmem:[%s939 + $0x39] sm:$0xff]
    %v1311 = vld [vmem:[%s939 + $0x49] sm:$0xff]
    %v1312 = vld [vmem:[%s939 + $0x51] sm:$0xff]
    %v1313 = vld [vmem:[%s939 + $0x61] sm:$0xff]
    %v1314 = vld [vmem:[%s939 + $0x69] sm:$0xff]
    %v1315 = vld [vmem:[%s939 + $0x79] sm:$0xff]
    %v1316 = vld [vmem:[%s939 + $0x81] sm:$0xff]
    %v1317 = vld [vmem:[%s939 + $0x91] sm:$0xff]
    %v1318 = vld [vmem:[%s939 + $0x99] sm:$0xff]
    %v1319 = vld [vmem:[%s939 + $0xa9] sm:$0xff]
    %v1320 = vld [vmem:[%s939 + $0xb1] sm:$0xff]
    %v1321 = vld [vmem:[%s939 + $0xc1] sm:$0xff]
    %v1322 = vld [vmem:[%s939 + $0xc9] sm:$0xff]
    %v1323 = vld [vmem:[%s939 + $0xd9] sm:$0xff]
    %v1324 = vld [vmem:[%s939 + $0xe1] sm:$0xff]
    %v1325 = vld [vmem:[%s939 + $0xf1] sm:$0xff]
    %v1326 = vld [vmem:[%s939 + $0xf9] sm:$0xff]
    %v1327 = vld [vmem:[%s939 + $0x109] sm:$0xff]
    %v1328 = vld [vmem:[%s939 + $0x111] sm:$0xff]
    %v1329 = vld [vmem:[%s939 + $0x121] sm:$0xff]
    %v1330 = vld [vmem:[%s939 + $0x129] sm:$0xff]
    %v1331 = vld [vmem:[%s939 + $0x139] sm:$0xff]
    %v1332 = vld [vmem:[%s939 + $0x141] sm:$0xff]
    %v1333 = vld [vmem:[%s939 + $0x151] sm:$0xff]
    %v1334 = vld [vmem:[%s939 + $0x159] sm:$0xff]
    %v1335 = vld [vmem:[%s939 + $0x169] sm:$0xff]
    %v1336 = vld [vmem:[%s939 + $0x171] sm:$0xff]
    %v1337 = vld [vmem:[%s939 + $0x1b1] sm:$0xff]
    %v1338 = vld [vmem:[%s939 + $0x1b9] sm:$0xff]
    %v1339 = vld [vmem:[%s939 + $0x1c9] sm:$0xff]
    %v1340 = vld [vmem:[%s939 + $0x1d1] sm:$0xff]
    %v1341 = vld [vmem:[%s939 + $0x1e1] sm:$0xff]
    %v1342 = vld [vmem:[%s939 + $0x1e9] sm:$0xff]
    %v1343 = vld [vmem:[%s939 + $0x1f9] sm:$0xff]
    %v1344 = vld [vmem:[%s939 + $0x201] sm:$0xff]
    %v1345 = vld [vmem:[%s939 + $0x211] sm:$0xff]
    %v1346 = vld [vmem:[%s939 + $0x219] sm:$0xff]
    %v1347 = vld [vmem:[%s939 + $0x229] sm:$0xff]
    %v1348 = vld [vmem:[%s939 + $0x231] sm:$0xff]
    %v1349 = vld [vmem:[%s939 + $0x241] sm:$0xff]
    %v1350 = vld [vmem:[%s939 + $0x249] sm:$0xff]
    %v1351 = vld [vmem:[%s939 + $0x259] sm:$0xff]
    %v1352 = vld [vmem:[%s939 + $0x261] sm:$0xff]
    %v1353 = vld [vmem:[%s939 + $0x271] sm:$0xff]
    %v1354 = vld [vmem:[%s939 + $0x279] sm:$0xff]
    %v1355 = vld [vmem:[%s939 + $0x289] sm:$0xff]
    %v1356 = vld [vmem:[%s939 + $0x291] sm:$0xff]
    %v1357 = vld [vmem:[%s939 + $0x2a1] sm:$0xff]
    %v1358 = vld [vmem:[%s939 + $0x2a9] sm:$0xff]
    %v1359 = vld [vmem:[%s939 + $0x2b9] sm:$0xff]
    %v1360 = vld [vmem:[%s939 + $0x2c1] sm:$0xff]
    %v1361 = vld [vmem:[%s939 + $0x2d1] sm:$0xff]
    %v1362 = vld [vmem:[%s939 + $0x2d9] sm:$0xff]
    %v1363 = vld [vmem:[%s939 + $0x2e9] sm:$0xff]
    %v1364 = vld [vmem:[%s939 + $0x2f1] sm:$0xff]
    %v1365 = vld [vmem:[%s939 + $0x301] sm:$0xff]
    %v1366 = vld [vmem:[%s939 + $0x309] sm:$0xff]
    %v1367 = vld [vmem:[%s939 + $0x319] sm:$0xff]
    %v1368 = vld [vmem:[%s939 + $0x321] sm:$0xff]
    %v1369 = vld [vmem:[%s939 + $0x2] sm:$0xff]
    %v1370 = vld [vmem:[%s939 + $0xa] sm:$0xff]
    %v1371 = vld [vmem:[%s939 + $0x1a] sm:$0xff]
    %v1372 = vld [vmem:[%s939 + $0x22] sm:$0xff]
    %v1373 = vld [vmem:[%s939 + $0x32] sm:$0xff]
    %v1374 = vld [vmem:[%s939 + $0x3a] sm:$0xff]
    %v1375 = vld [vmem:[%s939 + $0x4a] sm:$0xff]
    %v1376 = vld [vmem:[%s939 + $0x52] sm:$0xff]
    %v1377 = vld [vmem:[%s939 + $0x62] sm:$0xff]
    %v1378 = vld [vmem:[%s939 + $0x6a] sm:$0xff]
    %v1379 = vld [vmem:[%s939 + $0x7a] sm:$0xff]
    %v1380 = vld [vmem:[%s939 + $0x82] sm:$0xff]
    %v1381 = vld [vmem:[%s939 + $0x92] sm:$0xff]
    %v1382 = vld [vmem:[%s939 + $0x9a] sm:$0xff]
    %v1383 = vld [vmem:[%s939 + $0xaa] sm:$0xff]
    %v1384 = vld [vmem:[%s939 + $0xb2] sm:$0xff]
    %v1385 = vld [vmem:[%s939 + $0xc2] sm:$0xff]
    %v1386 = vld [vmem:[%s939 + $0xca] sm:$0xff]
    %v1387 = vld [vmem:[%s939 + $0xda] sm:$0xff]
    %v1388 = vld [vmem:[%s939 + $0xe2] sm:$0xff]
    %v1389 = vld [vmem:[%s939 + $0xf2] sm:$0xff]
    %v1390 = vld [vmem:[%s939 + $0xfa] sm:$0xff]
    %v1391 = vld [vmem:[%s939 + $0x10a] sm:$0xff]
    %v1392 = vld [vmem:[%s939 + $0x112] sm:$0xff]
    %v1393 = vld [vmem:[%s939 + $0x122] sm:$0xff]
    %v1394 = vld [vmem:[%s939 + $0x12a] sm:$0xff]
    %v1395 = vld [vmem:[%s939 + $0x13a] sm:$0xff]
    %v1396 = vld [vmem:[%s939 + $0x142] sm:$0xff]
    %v1397 = vld [vmem:[%s939 + $0x152] sm:$0xff]
    %v1398 = vld [vmem:[%s939 + $0x15a] sm:$0xff]
    %v1399 = vld [vmem:[%s939 + $0x16a] sm:$0xff]
    %v1400 = vld [vmem:[%s939 + $0x172] sm:$0xff]
    %v1401 = vld [vmem:[%s939 + $0x1b2] sm:$0xff]
    %v1402 = vld [vmem:[%s939 + $0x1ba] sm:$0xff]
    %v1403 = vld [vmem:[%s939 + $0x1ca] sm:$0xff]
    %v1404 = vld [vmem:[%s939 + $0x1d2] sm:$0xff]
    %v1405 = vld [vmem:[%s939 + $0x1e2] sm:$0xff]
    %v1406 = vld [vmem:[%s939 + $0x1ea] sm:$0xff]
    %v1407 = vld [vmem:[%s939 + $0x1fa] sm:$0xff]
    %v1408 = vld [vmem:[%s939 + $0x202] sm:$0xff]
    %v1409 = vld [vmem:[%s939 + $0x212] sm:$0xff]
    %v1410 = vld [vmem:[%s939 + $0x21a] sm:$0xff]
    %v1411 = vld [vmem:[%s939 + $0x22a] sm:$0xff]
    %v1412 = vld [vmem:[%s939 + $0x232] sm:$0xff]
    %v1413 = vld [vmem:[%s939 + $0x242] sm:$0xff]
    %v1414 = vld [vmem:[%s939 + $0x24a] sm:$0xff]
    %v1415 = vld [vmem:[%s939 + $0x25a] sm:$0xff]
    %v1416 = vld [vmem:[%s939 + $0x262] sm:$0xff]
    %v1417 = vld [vmem:[%s939 + $0x272] sm:$0xff]
    %v1418 = vld [vmem:[%s939 + $0x27a] sm:$0xff]
    %v1419 = vld [vmem:[%s939 + $0x28a] sm:$0xff]
    %v1420 = vld [vmem:[%s939 + $0x292] sm:$0xff]
    %v1421 = vld [vmem:[%s939 + $0x2a2] sm:$0xff]
    %v1422 = vld [vmem:[%s939 + $0x2aa] sm:$0xff]
    %v1423 = vld [vmem:[%s939 + $0x2ba] sm:$0xff]
    %v1424 = vld [vmem:[%s939 + $0x2c2] sm:$0xff]
    %v1425 = vld [vmem:[%s939 + $0x2d2] sm:$0xff]
    %v1426 = vld [vmem:[%s939 + $0x2da] sm:$0xff]
    %v1427 = vld [vmem:[%s939 + $0x2ea] sm:$0xff]
    %v1428 = vld [vmem:[%s939 + $0x2f2] sm:$0xff]
    %v1429 = vld [vmem:[%s939 + $0x302] sm:$0xff]
    %v1430 = vld [vmem:[%s939 + $0x30a] sm:$0xff]
    %v1431 = vld [vmem:[%s939 + $0x31a] sm:$0xff]
    %v1432 = vld [vmem:[%s939 + $0x322] sm:$0xff]
    %s1433 = scalar_lea.vmem [#allocation2], 48
    %v1434 = vld [vmem:[%s1433] sm:$0xff]
    %v1435 = vld [vmem:[%s1433 + $0x8] sm:$0xff]
    %v1436 = vld [vmem:[%s1433 + $0x18] sm:$0xff]
    %v1437 = vld [vmem:[%s1433 + $0x20] sm:$0xff]
    %v1438 = vld [vmem:[%s1433 + $0x30] sm:$0xff]
    %v1439 = vld [vmem:[%s1433 + $0x38] sm:$0xff]
    %v1440 = vld [vmem:[%s1433 + $0x48] sm:$0xff]
    %v1441 = vld [vmem:[%s1433 + $0x50] sm:$0xff]
    %v1442 = vld [vmem:[%s1433 + $0x60] sm:$0xff]
    %v1443 = vld [vmem:[%s1433 + $0x68] sm:$0xff]
    %v1444 = vld [vmem:[%s1433 + $0x78] sm:$0xff]
    %v1445 = vld [vmem:[%s1433 + $0x80] sm:$0xff]
    %v1446 = vld [vmem:[%s1433 + $0x90] sm:$0xff]
    %v1447 = vld [vmem:[%s1433 + $0x98] sm:$0xff]
    %v1448 = vld [vmem:[%s1433 + $0xa8] sm:$0xff]
    %v1449 = vld [vmem:[%s1433 + $0xb0] sm:$0xff]
    %v1450 = vld [vmem:[%s1433 + $0xc0] sm:$0xff]
    %v1451 = vld [vmem:[%s1433 + $0xc8] sm:$0xff]
    %v1452 = vld [vmem:[%s1433 + $0xd8] sm:$0xff]
    %v1453 = vld [vmem:[%s1433 + $0xe0] sm:$0xff]
    %v1454 = vld [vmem:[%s1433 + $0xf0] sm:$0xff]
    %v1455 = vld [vmem:[%s1433 + $0xf8] sm:$0xff]
    %v1456 = vld [vmem:[%s1433 + $0x108] sm:$0xff]
    %v1457 = vld [vmem:[%s1433 + $0x110] sm:$0xff]
    %v1458 = vld [vmem:[%s1433 + $0x120] sm:$0xff]
    %v1459 = vld [vmem:[%s1433 + $0x128] sm:$0xff]
    %v1460 = vld [vmem:[%s1433 + $0x138] sm:$0xff]
    %v1461 = vld [vmem:[%s1433 + $0x140] sm:$0xff]
    %v1462 = vld [vmem:[%s1433 + $0x150] sm:$0xff]
    %v1463 = vld [vmem:[%s1433 + $0x158] sm:$0xff]
    %v1464 = vld [vmem:[%s1433 + $0x168] sm:$0xff]
    %v1465 = vld [vmem:[%s1433 + $0x170] sm:$0xff]
    %v1466 = vld [vmem:[%s1433 + $0x1b0] sm:$0xff]
    %v1467 = vld [vmem:[%s1433 + $0x1b8] sm:$0xff]
    %v1468 = vld [vmem:[%s1433 + $0x1c8] sm:$0xff]
    %v1469 = vld [vmem:[%s1433 + $0x1d0] sm:$0xff]
    %v1470 = vld [vmem:[%s1433 + $0x1e0] sm:$0xff]
    %v1471 = vld [vmem:[%s1433 + $0x1e8] sm:$0xff]
    %v1472 = vld [vmem:[%s1433 + $0x1f8] sm:$0xff]
    %v1473 = vld [vmem:[%s1433 + $0x200] sm:$0xff]
    %v1474 = vld [vmem:[%s1433 + $0x210] sm:$0xff]
    %v1475 = vld [vmem:[%s1433 + $0x218] sm:$0xff]
    %v1476 = vld [vmem:[%s1433 + $0x228] sm:$0xff]
    %v1477 = vld [vmem:[%s1433 + $0x230] sm:$0xff]
    %v1478 = vld [vmem:[%s1433 + $0x240] sm:$0xff]
    %v1479 = vld [vmem:[%s1433 + $0x248] sm:$0xff]
    %v1480 = vld [vmem:[%s1433 + $0x258] sm:$0xff]
    %v1481 = vld [vmem:[%s1433 + $0x260] sm:$0xff]
    %v1482 = vld [vmem:[%s1433 + $0x270] sm:$0xff]
    %v1483 = vld [vmem:[%s1433 + $0x278] sm:$0xff]
    %v1484 = vld [vmem:[%s1433 + $0x288] sm:$0xff]
    %v1485 = vld [vmem:[%s1433 + $0x290] sm:$0xff]
    %v1486 = vld [vmem:[%s1433 + $0x2a0] sm:$0xff]
    %v1487 = vld [vmem:[%s1433 + $0x2a8] sm:$0xff]
    %v1488 = vld [vmem:[%s1433 + $0x2b8] sm:$0xff]
    %v1489 = vld [vmem:[%s1433 + $0x2c0] sm:$0xff]
    %v1490 = vld [vmem:[%s1433 + $0x2d0] sm:$0xff]
    %v1491 = vld [vmem:[%s1433 + $0x2d8] sm:$0xff]
    %v1492 = vld [vmem:[%s1433 + $0x2e8] sm:$0xff]
    %v1493 = vld [vmem:[%s1433 + $0x2f0] sm:$0xff]
    %v1494 = vld [vmem:[%s1433 + $0x300] sm:$0xff]
    %v1495 = vld [vmem:[%s1433 + $0x308] sm:$0xff]
    %v1496 = vld [vmem:[%s1433 + $0x318] sm:$0xff]
    %v1497 = vld [vmem:[%s1433 + $0x320] sm:$0xff]
    %v1498 = vld [vmem:[%s1433 + $0x1] sm:$0xff]
    %v1499 = vld [vmem:[%s1433 + $0x9] sm:$0xff]
    %v1500 = vld [vmem:[%s1433 + $0x19] sm:$0xff]
    %v1501 = vld [vmem:[%s1433 + $0x21] sm:$0xff]
    %v1502 = vld [vmem:[%s1433 + $0x31] sm:$0xff]
    %v1503 = vld [vmem:[%s1433 + $0x39] sm:$0xff]
    %v1504 = vld [vmem:[%s1433 + $0x49] sm:$0xff]
    %v1505 = vld [vmem:[%s1433 + $0x51] sm:$0xff]
    %v1506 = vld [vmem:[%s1433 + $0x61] sm:$0xff]
    %v1507 = vld [vmem:[%s1433 + $0x69] sm:$0xff]
    %v1508 = vld [vmem:[%s1433 + $0x79] sm:$0xff]
    %v1509 = vld [vmem:[%s1433 + $0x81] sm:$0xff]
    %v1510 = vld [vmem:[%s1433 + $0x91] sm:$0xff]
    %v1511 = vld [vmem:[%s1433 + $0x99] sm:$0xff]
    %v1512 = vld [vmem:[%s1433 + $0xa9] sm:$0xff]
    %v1513 = vld [vmem:[%s1433 + $0xb1] sm:$0xff]
    %v1514 = vld [vmem:[%s1433 + $0xc1] sm:$0xff]
    %v1515 = vld [vmem:[%s1433 + $0xc9] sm:$0xff]
    %v1516 = vld [vmem:[%s1433 + $0xd9] sm:$0xff]
    %v1517 = vld [vmem:[%s1433 + $0xe1] sm:$0xff]
    %v1518 = vld [vmem:[%s1433 + $0xf1] sm:$0xff]
    %v1519 = vld [vmem:[%s1433 + $0xf9] sm:$0xff]
    %v1520 = vld [vmem:[%s1433 + $0x109] sm:$0xff]
    %v1521 = vld [vmem:[%s1433 + $0x111] sm:$0xff]
    %v1522 = vld [vmem:[%s1433 + $0x121] sm:$0xff]
    %v1523 = vld [vmem:[%s1433 + $0x129] sm:$0xff]
    %v1524 = vld [vmem:[%s1433 + $0x139] sm:$0xff]
    %v1525 = vld [vmem:[%s1433 + $0x141] sm:$0xff]
    %v1526 = vld [vmem:[%s1433 + $0x151] sm:$0xff]
    %v1527 = vld [vmem:[%s1433 + $0x159] sm:$0xff]
    %v1528 = vld [vmem:[%s1433 + $0x169] sm:$0xff]
    %v1529 = vld [vmem:[%s1433 + $0x171] sm:$0xff]
    %v1530 = vld [vmem:[%s1433 + $0x1b1] sm:$0xff]
    %v1531 = vld [vmem:[%s1433 + $0x1b9] sm:$0xff]
    %v1532 = vld [vmem:[%s1433 + $0x1c9] sm:$0xff]
    %v1533 = vld [vmem:[%s1433 + $0x1d1] sm:$0xff]
    %v1534 = vld [vmem:[%s1433 + $0x1e1] sm:$0xff]
    %v1535 = vld [vmem:[%s1433 + $0x1e9] sm:$0xff]
    %v1536 = vld [vmem:[%s1433 + $0x1f9] sm:$0xff]
    %v1537 = vld [vmem:[%s1433 + $0x201] sm:$0xff]
    %v1538 = vld [vmem:[%s1433 + $0x211] sm:$0xff]
    %v1539 = vld [vmem:[%s1433 + $0x219] sm:$0xff]
    %v1540 = vld [vmem:[%s1433 + $0x229] sm:$0xff]
    %v1541 = vld [vmem:[%s1433 + $0x231] sm:$0xff]
    %v1542 = vld [vmem:[%s1433 + $0x241] sm:$0xff]
    %v1543 = vld [vmem:[%s1433 + $0x249] sm:$0xff]
    %v1544 = vld [vmem:[%s1433 + $0x259] sm:$0xff]
    %v1545 = vld [vmem:[%s1433 + $0x261] sm:$0xff]
    %v1546 = vld [vmem:[%s1433 + $0x271] sm:$0xff]
    %v1547 = vld [vmem:[%s1433 + $0x279] sm:$0xff]
    %v1548 = vld [vmem:[%s1433 + $0x289] sm:$0xff]
    %v1549 = vld [vmem:[%s1433 + $0x291] sm:$0xff]
    %v1550 = vld [vmem:[%s1433 + $0x2a1] sm:$0xff]
    %v1551 = vld [vmem:[%s1433 + $0x2a9] sm:$0xff]
    %v1552 = vld [vmem:[%s1433 + $0x2b9] sm:$0xff]
    %v1553 = vld [vmem:[%s1433 + $0x2c1] sm:$0xff]
    %v1554 = vld [vmem:[%s1433 + $0x2d1] sm:$0xff]
    %v1555 = vld [vmem:[%s1433 + $0x2d9] sm:$0xff]
    %v1556 = vld [vmem:[%s1433 + $0x2e9] sm:$0xff]
    %v1557 = vld [vmem:[%s1433 + $0x2f1] sm:$0xff]
    %v1558 = vld [vmem:[%s1433 + $0x301] sm:$0xff]
    %v1559 = vld [vmem:[%s1433 + $0x309] sm:$0xff]
    %v1560 = vld [vmem:[%s1433 + $0x319] sm:$0xff]
    %v1561 = vld [vmem:[%s1433 + $0x321] sm:$0xff]
    %v1562 = vld [vmem:[%s1433 + $0x2] sm:$0xff]
    %v1563 = vld [vmem:[%s1433 + $0xa] sm:$0xff]
    %v1564 = vld [vmem:[%s1433 + $0x1a] sm:$0xff]
    %v1565 = vld [vmem:[%s1433 + $0x22] sm:$0xff]
    %v1566 = vld [vmem:[%s1433 + $0x32] sm:$0xff]
    %v1567 = vld [vmem:[%s1433 + $0x3a] sm:$0xff]
    %v1568 = vld [vmem:[%s1433 + $0x4a] sm:$0xff]
    %v1569 = vld [vmem:[%s1433 + $0x52] sm:$0xff]
    %v1570 = vld [vmem:[%s1433 + $0x62] sm:$0xff]
    %v1571 = vld [vmem:[%s1433 + $0x6a] sm:$0xff]
    %v1572 = vld [vmem:[%s1433 + $0x7a] sm:$0xff]
    %v1573 = vld [vmem:[%s1433 + $0x82] sm:$0xff]
    %v1574 = vld [vmem:[%s1433 + $0x92] sm:$0xff]
    %v1575 = vld [vmem:[%s1433 + $0x9a] sm:$0xff]
    %v1576 = vld [vmem:[%s1433 + $0xaa] sm:$0xff]
    %v1577 = vld [vmem:[%s1433 + $0xb2] sm:$0xff]
    %v1578 = vld [vmem:[%s1433 + $0xc2] sm:$0xff]
    %v1579 = vld [vmem:[%s1433 + $0xca] sm:$0xff]
    %v1580 = vld [vmem:[%s1433 + $0xda] sm:$0xff]
    %v1581 = vld [vmem:[%s1433 + $0xe2] sm:$0xff]
    %v1582 = vld [vmem:[%s1433 + $0xf2] sm:$0xff]
    %v1583 = vld [vmem:[%s1433 + $0xfa] sm:$0xff]
    %v1584 = vld [vmem:[%s1433 + $0x10a] sm:$0xff]
    %v1585 = vld [vmem:[%s1433 + $0x112] sm:$0xff]
    %v1586 = vld [vmem:[%s1433 + $0x122] sm:$0xff]
    %v1587 = vld [vmem:[%s1433 + $0x12a] sm:$0xff]
    %v1588 = vld [vmem:[%s1433 + $0x13a] sm:$0xff]
    %v1589 = vld [vmem:[%s1433 + $0x142] sm:$0xff]
    %v1590 = vld [vmem:[%s1433 + $0x152] sm:$0xff]
    %v1591 = vld [vmem:[%s1433 + $0x15a] sm:$0xff]
    %v1592 = vld [vmem:[%s1433 + $0x16a] sm:$0xff]
    %v1593 = vld [vmem:[%s1433 + $0x172] sm:$0xff]
    %v1594 = vld [vmem:[%s1433 + $0x1b2] sm:$0xff]
    %v1595 = vld [vmem:[%s1433 + $0x1ba] sm:$0xff]
    %v1596 = vld [vmem:[%s1433 + $0x1ca] sm:$0xff]
    %v1597 = vld [vmem:[%s1433 + $0x1d2] sm:$0xff]
    %v1598 = vld [vmem:[%s1433 + $0x1e2] sm:$0xff]
    %v1599 = vld [vmem:[%s1433 + $0x1ea] sm:$0xff]
    %v1600 = vld [vmem:[%s1433 + $0x1fa] sm:$0xff]
    %v1601 = vld [vmem:[%s1433 + $0x202] sm:$0xff]
    %v1602 = vld [vmem:[%s1433 + $0x212] sm:$0xff]
    %v1603 = vld [vmem:[%s1433 + $0x21a] sm:$0xff]
    %v1604 = vld [vmem:[%s1433 + $0x22a] sm:$0xff]
    %v1605 = vld [vmem:[%s1433 + $0x232] sm:$0xff]
    %v1606 = vld [vmem:[%s1433 + $0x242] sm:$0xff]
    %v1607 = vld [vmem:[%s1433 + $0x24a] sm:$0xff]
    %v1608 = vld [vmem:[%s1433 + $0x25a] sm:$0xff]
    %v1609 = vld [vmem:[%s1433 + $0x262] sm:$0xff]
    %v1610 = vld [vmem:[%s1433 + $0x272] sm:$0xff]
    %v1611 = vld [vmem:[%s1433 + $0x27a] sm:$0xff]
    %v1612 = vld [vmem:[%s1433 + $0x28a] sm:$0xff]
    %v1613 = vld [vmem:[%s1433 + $0x292] sm:$0xff]
    %v1614 = vld [vmem:[%s1433 + $0x2a2] sm:$0xff]
    %v1615 = vld [vmem:[%s1433 + $0x2aa] sm:$0xff]
    %v1616 = vld [vmem:[%s1433 + $0x2ba] sm:$0xff]
    %v1617 = vld [vmem:[%s1433 + $0x2c2] sm:$0xff]
    %v1618 = vld [vmem:[%s1433 + $0x2d2] sm:$0xff]
    %v1619 = vld [vmem:[%s1433 + $0x2da] sm:$0xff]
    %v1620 = vld [vmem:[%s1433 + $0x2ea] sm:$0xff]
    %v1621 = vld [vmem:[%s1433 + $0x2f2] sm:$0xff]
    %v1622 = vld [vmem:[%s1433 + $0x302] sm:$0xff]
    %v1623 = vld [vmem:[%s1433 + $0x30a] sm:$0xff]
    %v1624 = vld [vmem:[%s1433 + $0x31a] sm:$0xff]
    %v1625 = vld [vmem:[%s1433 + $0x322] sm:$0xff]
    %v1626 = vld [vmem:[#allocation8] sm:$0xff]
    %v1627 = vld [vmem:[#allocation8 + $0x8] sm:$0xff]
    %v1628 = vld [vmem:[#allocation8 + $0x10] sm:$0xff]
    %v1629 = vld [vmem:[#allocation8 + $0x18] sm:$0xff]
    %v1630 = vld [vmem:[#allocation8 + $0x20] sm:$0xff]
    %v1631 = vld [vmem:[#allocation8 + $0x28] sm:$0xff]
    %v1632 = vld [vmem:[#allocation8 + $0x30] sm:$0xff]
    %v1633 = vld [vmem:[#allocation8 + $0x38] sm:$0xff]
    %v1634 = vld [vmem:[#allocation8 + $0x40] sm:$0xff]
    %v1635 = vld [vmem:[#allocation8 + $0x48] sm:$0xff]
    %v1636 = vld [vmem:[#allocation8 + $0x50] sm:$0xff]
    %v1637 = vld [vmem:[#allocation8 + $0x58] sm:$0xff]
    %v1638 = vld [vmem:[#allocation8 + $0x60] sm:$0xff]
    %v1639 = vld [vmem:[#allocation8 + $0x68] sm:$0xff]
    %v1640 = vld [vmem:[#allocation8 + $0x70] sm:$0xff]
    %v1641 = vld [vmem:[#allocation8 + $0x78] sm:$0xff]
    %v1642 = vld [vmem:[#allocation8 + $0x80] sm:$0xff]
    %v1643 = vld [vmem:[#allocation8 + $0x88] sm:$0xff]
    %v1644 = vld [vmem:[#allocation8 + $0x90] sm:$0xff]
    %v1645 = vld [vmem:[#allocation8 + $0x98] sm:$0xff]
    %v1646 = vld [vmem:[#allocation8 + $0xa0] sm:$0xff]
    %v1647 = vld [vmem:[#allocation8 + $0xa8] sm:$0xff]
    %v1648 = vld [vmem:[#allocation8 + $0xb0] sm:$0xff]
    %v1649 = vld [vmem:[#allocation8 + $0xb8] sm:$0xff]
    %v1650 = vld [vmem:[#allocation8 + $0xc0] sm:$0xff]
    %v1651 = vld [vmem:[#allocation8 + $0xc8] sm:$0xff]
    %v1652 = vld [vmem:[#allocation8 + $0xd0] sm:$0xff]
    %v1653 = vld [vmem:[#allocation8 + $0xd8] sm:$0xff]
    %v1654 = vld [vmem:[#allocation8 + $0xe0] sm:$0xff]
    %v1655 = vld [vmem:[#allocation8 + $0xe8] sm:$0xff]
    %v1656 = vld [vmem:[#allocation8 + $0xf0] sm:$0xff]
    %v1657 = vld [vmem:[#allocation8 + $0xf8] sm:$0xff]
    %v1658 = vld [vmem:[#allocation8 + $0x100] sm:$0xff]
    %v1659 = vld [vmem:[#allocation8 + $0x108] sm:$0xff]
    %v1660 = vld [vmem:[#allocation8 + $0x110] sm:$0xff]
    %v1661 = vld [vmem:[#allocation8 + $0x118] sm:$0xff]
    %v1662 = vld [vmem:[#allocation8 + $0x120] sm:$0xff]
    %v1663 = vld [vmem:[#allocation8 + $0x128] sm:$0xff]
    %v1664 = vld [vmem:[#allocation8 + $0x130] sm:$0xff]
    %v1665 = vld [vmem:[#allocation8 + $0x138] sm:$0xff]
    %v1666 = vld [vmem:[#allocation8 + $0x140] sm:$0xff]
    %v1667 = vld [vmem:[#allocation8 + $0x148] sm:$0xff]
    %v1668 = vld [vmem:[#allocation8 + $0x150] sm:$0xff]
    %v1669 = vld [vmem:[#allocation8 + $0x158] sm:$0xff]
    %v1670 = vld [vmem:[#allocation8 + $0x160] sm:$0xff]
    %v1671 = vld [vmem:[#allocation8 + $0x168] sm:$0xff]
    %v1672 = vld [vmem:[#allocation8 + $0x170] sm:$0xff]
    %v1673 = vld [vmem:[#allocation8 + $0x178] sm:$0xff]
    %v1674 = vld [vmem:[#allocation8 + $0x180] sm:$0xff]
    %v1675 = vld [vmem:[#allocation8 + $0x188] sm:$0xff]
    %v1676 = vld [vmem:[#allocation8 + $0x190] sm:$0xff]
    %v1677 = vld [vmem:[#allocation8 + $0x198] sm:$0xff]
    %v1678 = vld [vmem:[#allocation8 + $0x1a0] sm:$0xff]
    %v1679 = vld [vmem:[#allocation8 + $0x1a8] sm:$0xff]
    %v1680 = vld [vmem:[#allocation8 + $0x1b0] sm:$0xff]
    %v1681 = vld [vmem:[#allocation8 + $0x1b8] sm:$0xff]
    %v1682 = vld [vmem:[#allocation8 + $0x1c0] sm:$0xff]
    %v1683 = vld [vmem:[#allocation8 + $0x1c8] sm:$0xff]
    %v1684 = vld [vmem:[#allocation8 + $0x1d0] sm:$0xff]
    %v1685 = vld [vmem:[#allocation8 + $0x1d8] sm:$0xff]
    %v1686 = vld [vmem:[#allocation8 + $0x1e0] sm:$0xff]
    %v1687 = vld [vmem:[#allocation8 + $0x1e8] sm:$0xff]
    %v1688 = vld [vmem:[#allocation8 + $0x1f0] sm:$0xff]
    %v1689 = vld [vmem:[#allocation8 + $0x1f8] sm:$0xff]
    %v1690 = vld [vmem:[#allocation8 + $0x200] sm:$0xff]
    %v1691 = vld [vmem:[#allocation8 + $0x208] sm:$0xff]
    %v1692 = vld [vmem:[#allocation8 + $0x210] sm:$0xff]
    %v1693 = vld [vmem:[#allocation8 + $0x218] sm:$0xff]
    %v1694 = vld [vmem:[#allocation8 + $0x220] sm:$0xff]
    %v1695 = vld [vmem:[#allocation8 + $0x228] sm:$0xff]
    %v1696 = vld [vmem:[#allocation8 + $0x230] sm:$0xff]
    %v1697 = vld [vmem:[#allocation8 + $0x238] sm:$0xff]
    %v1698 = vld [vmem:[#allocation8 + $0x240] sm:$0xff]
    %v1699 = vld [vmem:[#allocation8 + $0x248] sm:$0xff]
    %v1700 = vld [vmem:[#allocation8 + $0x250] sm:$0xff]
    %v1701 = vld [vmem:[#allocation8 + $0x258] sm:$0xff]
    %v1702 = vld [vmem:[#allocation8 + $0x260] sm:$0xff]
    %v1703 = vld [vmem:[#allocation8 + $0x268] sm:$0xff]
    %v1704 = vld [vmem:[#allocation8 + $0x270] sm:$0xff]
    %v1705 = vld [vmem:[#allocation8 + $0x278] sm:$0xff]
    %v1706 = vld [vmem:[#allocation8 + $0x280] sm:$0xff]
    %v1707 = vld [vmem:[#allocation8 + $0x288] sm:$0xff]
    %v1708 = vld [vmem:[#allocation8 + $0x290] sm:$0xff]
    %v1709 = vld [vmem:[#allocation8 + $0x298] sm:$0xff]
    %v1710 = vld [vmem:[#allocation8 + $0x2a0] sm:$0xff]
    %v1711 = vld [vmem:[#allocation8 + $0x2a8] sm:$0xff]
    %v1712 = vld [vmem:[#allocation8 + $0x2b0] sm:$0xff]
    %v1713 = vld [vmem:[#allocation8 + $0x2b8] sm:$0xff]
    %v1714 = vld [vmem:[#allocation8 + $0x2c0] sm:$0xff]
    %v1715 = vld [vmem:[#allocation8 + $0x2c8] sm:$0xff]
    %v1716 = vld [vmem:[#allocation8 + $0x2d0] sm:$0xff]
    %v1717 = vld [vmem:[#allocation8 + $0x2d8] sm:$0xff]
    %v1718 = vld [vmem:[#allocation8 + $0x2e0] sm:$0xff]
    %v1719 = vld [vmem:[#allocation8 + $0x2e8] sm:$0xff]
    %v1720 = vld [vmem:[#allocation8 + $0x2f0] sm:$0xff]
    %v1721 = vld [vmem:[#allocation8 + $0x2f8] sm:$0xff]
    %v1722 = vld [vmem:[#allocation8 + $0x300] sm:$0xff]
    %v1723 = vld [vmem:[#allocation8 + $0x308] sm:$0xff]
    %v1724 = vld [vmem:[#allocation8 + $0x310] sm:$0xff]
    %v1725 = vld [vmem:[#allocation8 + $0x318] sm:$0xff]
    %v1726 = vld [vmem:[#allocation8 + $0x320] sm:$0xff]
    %v1727 = vld [vmem:[#allocation8 + $0x328] sm:$0xff]
    %v1728 = vld [vmem:[#allocation8 + $0x330] sm:$0xff]
    %v1729 = vld [vmem:[#allocation8 + $0x338] sm:$0xff]
    %v1730 = vld [vmem:[#allocation8 + $0x340] sm:$0xff]
    %v1731 = vld [vmem:[#allocation8 + $0x348] sm:$0xff]
    %v1732 = vld [vmem:[#allocation8 + $0x350] sm:$0xff]
    %v1733 = vld [vmem:[#allocation8 + $0x358] sm:$0xff]
    %v1734 = vld [vmem:[#allocation8 + $0x360] sm:$0xff]
    %v1735 = vld [vmem:[#allocation8 + $0x368] sm:$0xff]
    %v1736 = vld [vmem:[#allocation8 + $0x370] sm:$0xff]
    %v1737 = vld [vmem:[#allocation8 + $0x378] sm:$0xff]
    %v1738 = vld [vmem:[#allocation8 + $0x380] sm:$0xff]
    %v1739 = vld [vmem:[#allocation8 + $0x388] sm:$0xff]
    %v1740 = vld [vmem:[#allocation8 + $0x390] sm:$0xff]
    %v1741 = vld [vmem:[#allocation8 + $0x398] sm:$0xff]
    %v1742 = vld [vmem:[#allocation8 + $0x3a0] sm:$0xff]
    %v1743 = vld [vmem:[#allocation8 + $0x3a8] sm:$0xff]
    %v1744 = vld [vmem:[#allocation8 + $0x3b0] sm:$0xff]
    %v1745 = vld [vmem:[#allocation8 + $0x3b8] sm:$0xff]
    %v1746 = vld [vmem:[#allocation8 + $0x3c0] sm:$0xff]
    %v1747 = vld [vmem:[#allocation8 + $0x3c8] sm:$0xff]
    %v1748 = vld [vmem:[#allocation8 + $0x3d0] sm:$0xff]
    %v1749 = vld [vmem:[#allocation8 + $0x3d8] sm:$0xff]
    %v1750 = vld [vmem:[#allocation8 + $0x3e0] sm:$0xff]
    %v1751 = vld [vmem:[#allocation8 + $0x3e8] sm:$0xff]
    %v1752 = vld [vmem:[#allocation8 + $0x3f0] sm:$0xff]
    %v1753 = vld [vmem:[#allocation8 + $0x3f8] sm:$0xff]
    %v1754 = vld [vmem:[#allocation8 + $0x400] sm:$0xff]
    %v1755 = vld [vmem:[#allocation8 + $0x408] sm:$0xff]
    %v1756 = vld [vmem:[#allocation8 + $0x410] sm:$0xff]
    %v1757 = vld [vmem:[#allocation8 + $0x418] sm:$0xff]
    %v1758 = vld [vmem:[#allocation8 + $0x420] sm:$0xff]
    %v1759 = vld [vmem:[#allocation8 + $0x428] sm:$0xff]
    %v1760 = vld [vmem:[#allocation8 + $0x430] sm:$0xff]
    %v1761 = vld [vmem:[#allocation8 + $0x438] sm:$0xff]
    %v1762 = vld [vmem:[#allocation8 + $0x440] sm:$0xff]
    %v1763 = vld [vmem:[#allocation8 + $0x448] sm:$0xff]
    %v1764 = vld [vmem:[#allocation8 + $0x450] sm:$0xff]
    %v1765 = vld [vmem:[#allocation8 + $0x458] sm:$0xff]
    %v1766 = vld [vmem:[#allocation8 + $0x460] sm:$0xff]
    %v1767 = vld [vmem:[#allocation8 + $0x468] sm:$0xff]
    %v1768 = vld [vmem:[#allocation8 + $0x470] sm:$0xff]
    %v1769 = vld [vmem:[#allocation8 + $0x478] sm:$0xff]
    %v1770 = vld [vmem:[%s4] sm:$0x1]
    %v1772 = vlaneseq
    %v1773 = vshrl.u32 %v1772, 7
    %v1774 = vsub.s32 0, %v1773
    %v1775 = vrot.slane %v1770, %v1774
    %1777 = vmatprep.subr.mxu0 0.0
    %1778 = vmatpush1.msra.mxu0 %v1626
    %1779 = vmatprep.subr.mxu0 0.0
    %1780 = vmatpush1.msra.mxu0 %v1627
    %1781 = vmatprep.subr.mxu0 0.0
    %1782 = vmatpush1.msra.mxu0 %v1628
    %1783 = vmatprep.subr.mxu0 0.0
    %1784 = vmatpush1.msra.mxu0 %v1629
    %1785 = vmatprep.subr.mxu0 0.0
    %1786 = vmatpush1.msra.mxu0 %v1630
    %1787 = vmatprep.subr.mxu0 0.0
    %1788 = vmatpush1.msra.mxu0 %v1631
    %1789 = vmatprep.subr.mxu0 0.0
    %1790 = vmatpush1.msra.mxu0 %v1632
    %1791 = vmatprep.subr.mxu0 0.0
    %1792 = vmatpush1.msra.mxu0 %v1633
    %1793 = vmatprep.subr.mxu0 0.0
    %1794 = vmatpush1.msra.mxu0 %v1634
    %1795 = vmatprep.subr.mxu0 0.0
    %1796 = vmatpush1.msra.mxu0 %v1635
    %1797 = vmatprep.subr.mxu0 0.0
    %1798 = vmatpush1.msra.mxu0 %v1636
    %1799 = vmatprep.subr.mxu0 0.0
    %1800 = vmatpush1.msra.mxu0 %v1637
    %1801 = vmatprep.subr.mxu0 0.0
    %1802 = vmatpush1.msra.mxu0 %v1638
    %1803 = vmatprep.subr.mxu0 0.0
    %1804 = vmatpush1.msra.mxu0 %v1639
    %1805 = vmatprep.subr.mxu0 0.0
    %1806 = vmatpush1.msra.mxu0 %v1640
    %1807 = vmatprep.subr.mxu0 0.0
    %1808 = vmatpush1.msra.mxu0 %v1641
    %1809 = vmatprep.subr.mxu0 0.0
    %1810 = vmatpush1.msra.mxu0 %v1642
    %1811 = vmatprep.subr.mxu0 0.0
    %1812 = vmatpush1.msra.mxu0 %v1643
    %1813 = vmatprep.subr.mxu0 0.0
    %1814 = vmatpush1.msra.mxu0 %v1644
    %1815 = vmatprep.subr.mxu0 0.0
    %1816 = vmatpush1.msra.mxu0 %v1645
    %1817 = vmatprep.subr.mxu0 0.0
    %1818 = vmatpush1.msra.mxu0 %v1646
    %1819 = vmatprep.subr.mxu0 0.0
    %1820 = vmatpush1.msra.mxu0 %v1647
    %1821 = vmatprep.subr.mxu0 0.0
    %1822 = vmatpush1.msra.mxu0 %v1648
    %1823 = vmatprep.subr.mxu0 0.0
    %1824 = vmatpush1.msra.mxu0 %v1649
    %1825 = vmatprep.subr.mxu0 0.0
    %1826 = vmatpush1.msra.mxu0 %v1650
    %1827 = vmatprep.subr.mxu0 0.0
    %1828 = vmatpush1.msra.mxu0 %v1651
    %1829 = vmatprep.subr.mxu0 0.0
    %1830 = vmatpush1.msra.mxu0 %v1652
    %1831 = vmatprep.subr.mxu0 0.0
    %1832 = vmatpush1.msra.mxu0 %v1653
    %1833 = vmatprep.subr.mxu0 0.0
    %1834 = vmatpush1.msra.mxu0 %v1654
    %1835 = vmatprep.subr.mxu0 0.0
    %1836 = vmatpush1.msra.mxu0 %v1655
    %1837 = vmatprep.subr.mxu0 0.0
    %1838 = vmatpush1.msra.mxu0 %v1656
    %1839 = vmatprep.subr.mxu0 0.0
    %1840 = vmatpush1.msra.mxu0 %v1657
    %1841 = vmatprep.mubr.f32.mxu0 %v1113
    %1842 = vmatmul.mubr.f32.gmra.mrb[0].mxu0 %v1049
    %v1843 = vpop.f32.mrb[0].mxu0
    %v1844 = vadd.f32 %v1775, %v1843
    %v1845 = vpop.f32.mrb[0].mxu0
    %1846 = vmatprep.mubr.f32.mxu0 %v1114
    %1847 = vmatmul.mubr.f32.gmra.mrb[0].mxu0 %v1050
    %v1848 = vpop.f32.mrb[0].mxu0
    %v1849 = vadd.f32 %v1775, %v1848
    %v1850 = vpop.f32.mrb[0].mxu0
    %1851 = vmatprep.mubr.f32.mxu0 %v1115
    %1852 = vmatmul.mubr.f32.gmra.mrb[0].mxu0 %v1051
    %v1853 = vpop.f32.mrb[0].mxu0
    %v1854 = vadd.f32 %v1775, %v1853
    %v1855 = vpop.f32.mrb[0].mxu0
    %1856 = vmatprep.mubr.f32.mxu0 %v1116
    %1857 = vmatmul.mubr.f32.gmra.mrb[0].mxu0 %v1052
    %v1858 = vpop.f32.mrb[0].mxu0
    %v1859 = vadd.f32 %v1775, %v1858
    %v1860 = vpop.f32.mrb[0].mxu0
    %1861 = vmatprep.mubr.f32.mxu0 %v1117
    %1862 = vmatmul.mubr.f32.gmra.mrb[0].mxu0 %v1053
    %v1863 = vpop.f32.mrb[0].mxu0
    %v1864 = vadd.f32 %v1775, %v1863
    %v1865 = vpop.f32.mrb[0].mxu0
    %1866 = vmatprep.mubr.f32.mxu0 %v1118
    %1867 = vmatmul.mubr.f32.gmra.mrb[0].mxu0 %v1054
    %v1868 = vpop.f32.mrb[0].mxu0
    %v1869 = vadd.f32 %v1775, %v1868
    %v1870 = vpop.f32.mrb[0].mxu0
    %1871 = vmatprep.mubr.f32.mxu0 %v1119
    %1872 = vmatmul.mubr.f32.gmra.mrb[0].mxu0 %v1055
    %v1873 = vpop.f32.mrb[0].mxu0
    %v1874 = vadd.f32 %v1775, %v1873
    %v1875 = vpop.f32.mrb[0].mxu0
    %1876 = vmatprep.mubr.f32.mxu0 %v1120
    %1877 = vmatmul.mubr.f32.gmra.mrb[0].mxu0 %v1056
    %v1878 = vpop.f32.mrb[0].mxu0
    %v1879 = vadd.f32 %v1775, %v1878
    %v1880 = vpop.f32.mrb[0].mxu0
    %1881 = vmatprep.mubr.f32.mxu0 %v1121
    %1882 = vmatmul.mubr.f32.gmra.mrb[0].mxu0 %v1057
    %v1883 = vpop.f32.mrb[0].mxu0
    %v1884 = vadd.f32 %v1775, %v1883
    %v1885 = vpop.f32.mrb[0].mxu0
    %1886 = vmatprep.mubr.f32.mxu0 %v1122
    %1887 = vmatmul.mubr.f32.gmra.mrb[0].mxu0 %v1058
    %v1888 = vpop.f32.mrb[0].mxu0
    %v1889 = vadd.f32 %v1775, %v1888
    %v1890 = vpop.f32.mrb[0].mxu0
    %1891 = vmatprep.mubr.f32.mxu0 %v1123
    %1892 = vmatmul.mubr.f32.gmra.mrb[0].mxu0 %v1059
    %v1893 = vpop.f32.mrb[0].mxu0
    %v1894 = vadd.f32 %v1775, %v1893
    %v1895 = vpop.f32.mrb[0].mxu0
    %1896 = vmatprep.mubr.f32.mxu0 %v1124
    %1897 = vmatmul.mubr.f32.gmra.mrb[0].mxu0 %v1060
    %v1898 = vpop.f32.mrb[0].mxu0
    %v1899 = vadd.f32 %v1775, %v1898
    %v1900 = vpop.f32.mrb[0].mxu0
    %1901 = vmatprep.mubr.f32.mxu0 %v1125
    %1902 = vmatmul.mubr.f32.gmra.mrb[0].mxu0 %v1061
    %v1903 = vpop.f32.mrb[0].mxu0
    %v1904 = vadd.f32 %v1775, %v1903
    %v1905 = vpop.f32.mrb[0].mxu0
    %1906 = vmatprep.mubr.f32.mxu0 %v1126
    %1907 = vmatmul.mubr.f32.gmra.mrb[0].mxu0 %v1062
    %v1908 = vpop.f32.mrb[0].mxu0
    %v1909 = vadd.f32 %v1775, %v1908
    %v1910 = vpop.f32.mrb[0].mxu0
    %1911 = vmatprep.mubr.f32.mxu0 %v1127
    %1912 = vmatmul.mubr.f32.gmra.mrb[0].mxu0 %v1063
    %v1913 = vpop.f32.mrb[0].mxu0
    %v1914 = vadd.f32 %v1775, %v1913
    %v1915 = vpop.f32.mrb[0].mxu0
    %1916 = vmatprep.mubr.f32.mxu0 %v1128
    %1917 = vmatmul.mubr.f32.gmra.mrb[0].mxu0 %v1064
    %v1918 = vpop.f32.mrb[0].mxu0
    %v1919 = vadd.f32 %v1775, %v1918
    %v1920 = vpop.f32.mrb[0].mxu0
    %1921 = vmatprep.mubr.f32.mxu0 %v1129
    %1922 = vmatmul.mubr.f32.gmra.mrb[0].mxu0 %v1065
    %v1923 = vpop.f32.mrb[0].mxu0
    %v1924 = vadd.f32 %v1775, %v1923
    %v1925 = vpop.f32.mrb[0].mxu0
    %1926 = vmatprep.mubr.f32.mxu0 %v1130
    %1927 = vmatmul.mubr.f32.gmra.mrb[0].mxu0 %v1066
    %v1928 = vpop.f32.mrb[0].mxu0
    %v1929 = vadd.f32 %v1775, %v1928
    %v1930 = vpop.f32.mrb[0].mxu0
    %1931 = vmatprep.mubr.f32.mxu0 %v1131
    %1932 = vmatmul.mubr.f32.gmra.mrb[0].mxu0 %v1067
    %v1933 = vpop.f32.mrb[0].mxu0
    %v1934 = vadd.f32 %v1775, %v1933
    %v1935 = vpop.f32.mrb[0].mxu0
    %1936 = vmatprep.mubr.f32.mxu0 %v1132
    %1937 = vmatmul.mubr.f32.gmra.mrb[0].mxu0 %v1068
    %v1938 = vpop.f32.mrb[0].mxu0
    %v1939 = vadd.f32 %v1775, %v1938
    %v1940 = vpop.f32.mrb[0].mxu0
    %1941 = vmatprep.mubr.f32.mxu0 %v1133
    %1942 = vmatmul.mubr.f32.gmra.mrb[0].mxu0 %v1069
    %v1943 = vpop.f32.mrb[0].mxu0
    %v1944 = vadd.f32 %v1775, %v1943
    %v1945 = vpop.f32.mrb[0].mxu0
    %1946 = vmatprep.mubr.f32.mxu0 %v1134
    %1947 = vmatmul.mubr.f32.gmra.mrb[0].mxu0 %v1070
    %v1948 = vpop.f32.mrb[0].mxu0
    %v1949 = vadd.f32 %v1775, %v1948
    %v1950 = vpop.f32.mrb[0].mxu0
    %1951 = vmatprep.mubr.f32.mxu0 %v1135
    %1952 = vmatmul.mubr.f32.gmra.mrb[0].mxu0 %v1071
    %v1953 = vpop.f32.mrb[0].mxu0
    %v1954 = vadd.f32 %v1775, %v1953
    %v1955 = vpop.f32.mrb[0].mxu0
    %1956 = vmatprep.mubr.f32.mxu0 %v1136
    %1957 = vmatmul.mubr.f32.gmra.mrb[0].mxu0 %v1072
    %v1958 = vpop.f32.mrb[0].mxu0
    %v1959 = vadd.f32 %v1775, %v1958
    %v1960 = vpop.f32.mrb[0].mxu0
    %1961 = vmatprep.mubr.f32.mxu0 %v1137
    %1962 = vmatmul.mubr.f32.gmra.mrb[0].mxu0 %v1073
    %v1963 = vpop.f32.mrb[0].mxu0
    %v1964 = vadd.f32 %v1775, %v1963
    %v1965 = vpop.f32.mrb[0].mxu0
    %1966 = vmatprep.mubr.f32.mxu0 %v1138
    %1967 = vmatmul.mubr.f32.gmra.mrb[0].mxu0 %v1074
    %v1968 = vpop.f32.mrb[0].mxu0
    %v1969 = vadd.f32 %v1775, %v1968
    %v1970 = vpop.f32.mrb[0].mxu0
    %1971 = vmatprep.mubr.f32.mxu0 %v1139
    %1972 = vmatmul.mubr.f32.gmra.mrb[0].mxu0 %v1075
    %v1973 = vpop.f32.mrb[0].mxu0
    %v1974 = vadd.f32 %v1775, %v1973
    %v1975 = vpop.f32.mrb[0].mxu0
    %1976 = vmatprep.mubr.f32.mxu0 %v1140
    %1977 = vmatmul.mubr.f32.gmra.mrb[0].mxu0 %v1076
    %v1978 = vpop.f32.mrb[0].mxu0
    %v1979 = vadd.f32 %v1775, %v1978
    %v1980 = vpop.f32.mrb[0].mxu0
    %1981 = vmatprep.mubr.f32.mxu0 %v1141
    %1982 = vmatmul.mubr.f32.gmra.mrb[0].mxu0 %v1077
    %v1983 = vpop.f32.mrb[0].mxu0
    %v1984 = vadd.f32 %v1775, %v1983
    %v1985 = vpop.f32.mrb[0].mxu0
    %1986 = vmatprep.mubr.f32.mxu0 %v1142
    %1987 = vmatmul.mubr.f32.gmra.mrb[0].mxu0 %v1078
    %v1988 = vpop.f32.mrb[0].mxu0
    %v1989 = vadd.f32 %v1775, %v1988
    %v1990 = vpop.f32.mrb[0].mxu0
    %1991 = vmatprep.mubr.f32.mxu0 %v1143
    %1992 = vmatmul.mubr.f32.gmra.mrb[0].mxu0 %v1079
    %v1993 = vpop.f32.mrb[0].mxu0
    %v1994 = vadd.f32 %v1775, %v1993
    %v1995 = vpop.f32.mrb[0].mxu0
    %1996 = vmatprep.mubr.f32.mxu0 %v1144
    %1997 = vmatmul.mubr.f32.gmra.mrb[0].mxu0 %v1080
    %v1998 = vpop.f32.mrb[0].mxu0
    %v1999 = vadd.f32 %v1775, %v1998
    %v2000 = vpop.f32.mrb[0].mxu0
    %2001 = vmatprep.mubr.f32.mxu0 %v1145
    %2002 = vmatmul.mubr.f32.gmra.mrb[0].mxu0 %v1081
    %v2003 = vpop.f32.mrb[0].mxu0
    %v2004 = vadd.f32 %v1775, %v2003
    %v2005 = vpop.f32.mrb[0].mxu0
    %2006 = vmatprep.mubr.f32.mxu0 %v1146
    %2007 = vmatmul.mubr.f32.gmra.mrb[0].mxu0 %v1082
    %v2008 = vpop.f32.mrb[0].mxu0
    %v2009 = vadd.f32 %v1775, %v2008
    %v2010 = vpop.f32.mrb[0].mxu0
    %2011 = vmatprep.mubr.f32.mxu0 %v1147
    %2012 = vmatmul.mubr.f32.gmra.mrb[0].mxu0 %v1083
    %v2013 = vpop.f32.mrb[0].mxu0
    %v2014 = vadd.f32 %v1775, %v2013
    %v2015 = vpop.f32.mrb[0].mxu0
    %2016 = vmatprep.mubr.f32.mxu0 %v1148
    %2017 = vmatmul.mubr.f32.gmra.mrb[0].mxu0 %v1084
    %v2018 = vpop.f32.mrb[0].mxu0
    %v2019 = vadd.f32 %v1775, %v2018
    %v2020 = vpop.f32.mrb[0].mxu0
    %2021 = vmatprep.mubr.f32.mxu0 %v1149
    %2022 = vmatmul.mubr.f32.gmra.mrb[0].mxu0 %v1085
    %v2023 = vpop.f32.mrb[0].mxu0
    %v2024 = vadd.f32 %v1775, %v2023
    %v2025 = vpop.f32.mrb[0].mxu0
    %2026 = vmatprep.mubr.f32.mxu0 %v1150
    %2027 = vmatmul.mubr.f32.gmra.mrb[0].mxu0 %v1086
    %v2028 = vpop.f32.mrb[0].mxu0
    %v2029 = vadd.f32 %v1775, %v2028
    %v2030 = vpop.f32.mrb[0].mxu0
    %2031 = vmatprep.mubr.f32.mxu0 %v1151
    %2032 = vmatmul.mubr.f32.gmra.mrb[0].mxu0 %v1087
    %v2033 = vpop.f32.mrb[0].mxu0
    %v2034 = vadd.f32 %v1775, %v2033
    %v2035 = vpop.f32.mrb[0].mxu0
    %2036 = vmatprep.mubr.f32.mxu0 %v1152
    %2037 = vmatmul.mubr.f32.gmra.mrb[0].mxu0 %v1088
    %v2038 = vpop.f32.mrb[0].mxu0
    %v2039 = vadd.f32 %v1775, %v2038
    %v2040 = vpop.f32.mrb[0].mxu0
    %2041 = vmatprep.mubr.f32.mxu0 %v1153
    %2042 = vmatmul.mubr.f32.gmra.mrb[0].mxu0 %v1089
    %v2043 = vpop.f32.mrb[0].mxu0
    %v2044 = vadd.f32 %v1775, %v2043
    %v2045 = vpop.f32.mrb[0].mxu0
    %2046 = vmatprep.mubr.f32.mxu0 %v1154
    %2047 = vmatmul.mubr.f32.gmra.mrb[0].mxu0 %v1090
    %v2048 = vpop.f32.mrb[0].mxu0
    %v2049 = vadd.f32 %v1775, %v2048
    %v2050 = vpop.f32.mrb[0].mxu0
    %2051 = vmatprep.mubr.f32.mxu0 %v1155
    %2052 = vmatmul.mubr.f32.gmra.mrb[0].mxu0 %v1091
    %v2053 = vpop.f32.mrb[0].mxu0
    %v2054 = vadd.f32 %v1775, %v2053
    %v2055 = vpop.f32.mrb[0].mxu0
    %2056 = vmatprep.mubr.f32.mxu0 %v1156
    %2057 = vmatmul.mubr.f32.gmra.mrb[0].mxu0 %v1092
    %v2058 = vpop.f32.mrb[0].mxu0
    %v2059 = vadd.f32 %v1775, %v2058
    %v2060 = vpop.f32.mrb[0].mxu0
    %2061 = vmatprep.mubr.f32.mxu0 %v1157
    %2062 = vmatmul.mubr.f32.gmra.mrb[0].mxu0 %v1093
    %v2063 = vpop.f32.mrb[0].mxu0
    %v2064 = vadd.f32 %v1775, %v2063
    %v2065 = vpop.f32.mrb[0].mxu0
    %2066 = vmatprep.mubr.f32.mxu0 %v1158
    %2067 = vmatmul.mubr.f32.gmra.mrb[0].mxu0 %v1094
    %v2068 = vpop.f32.mrb[0].mxu0
    %v2069 = vadd.f32 %v1775, %v2068
    %v2070 = vpop.f32.mrb[0].mxu0
    %2071 = vmatprep.mubr.f32.mxu0 %v1159
    %2072 = vmatmul.mubr.f32.gmra.mrb[0].mxu0 %v1095
    %v2073 = vpop.f32.mrb[0].mxu0
    %v2074 = vadd.f32 %v1775, %v2073
    %v2075 = vpop.f32.mrb[0].mxu0
    %2076 = vmatprep.mubr.f32.mxu0 %v1160
    %2077 = vmatmul.mubr.f32.gmra.mrb[0].mxu0 %v1096
    %v2078 = vpop.f32.mrb[0].mxu0
    %v2079 = vadd.f32 %v1775, %v2078
    %v2080 = vpop.f32.mrb[0].mxu0
    %2081 = vmatprep.mubr.f32.mxu0 %v1161
    %2082 = vmatmul.mubr.f32.gmra.mrb[0].mxu0 %v1097
    %v2083 = vpop.f32.mrb[0].mxu0
    %v2084 = vadd.f32 %v1775, %v2083
    %v2085 = vpop.f32.mrb[0].mxu0
    %2086 = vmatprep.mubr.f32.mxu0 %v1162
    %2087 = vmatmul.mubr.f32.gmra.mrb[0].mxu0 %v1098
    %v2088 = vpop.f32.mrb[0].mxu0
    %v2089 = vadd.f32 %v1775, %v2088
    %v2090 = vpop.f32.mrb[0].mxu0
    %2091 = vmatprep.mubr.f32.mxu0 %v1163
    %2092 = vmatmul.mubr.f32.gmra.mrb[0].mxu0 %v1099
    %v2093 = vpop.f32.mrb[0].mxu0
    %v2094 = vadd.f32 %v1775, %v2093
    %v2095 = vpop.f32.mrb[0].mxu0
    %2096 = vmatprep.mubr.f32.mxu0 %v1164
    %2097 = vmatmul.mubr.f32.gmra.mrb[0].mxu0 %v1100
    %v2098 = vpop.f32.mrb[0].mxu0
    %v2099 = vadd.f32 %v1775, %v2098
    %v2100 = vpop.f32.mrb[0].mxu0
    %2101 = vmatprep.mubr.f32.mxu0 %v1165
    %2102 = vmatmul.mubr.f32.gmra.mrb[0].mxu0 %v1101
    %v2103 = vpop.f32.mrb[0].mxu0
    %v2104 = vadd.f32 %v1775, %v2103
    %v2105 = vpop.f32.mrb[0].mxu0
    %2106 = vmatprep.mubr.f32.mxu0 %v1166
    %2107 = vmatmul.mubr.f32.gmra.mrb[0].mxu0 %v1102
    %v2108 = vpop.f32.mrb[0].mxu0
    %v2109 = vadd.f32 %v1775, %v2108
    %v2110 = vpop.f32.mrb[0].mxu0
    %2111 = vmatprep.mubr.f32.mxu0 %v1167
    %2112 = vmatmul.mubr.f32.gmra.mrb[0].mxu0 %v1103
    %v2113 = vpop.f32.mrb[0].mxu0
    %v2114 = vadd.f32 %v1775, %v2113
    %v2115 = vpop.f32.mrb[0].mxu0
    %2116 = vmatprep.mubr.f32.mxu0 %v1168
    %2117 = vmatmul.mubr.f32.gmra.mrb[0].mxu0 %v1104
    %v2118 = vpop.f32.mrb[0].mxu0
    %v2119 = vadd.f32 %v1775, %v2118
    %v2120 = vpop.f32.mrb[0].mxu0
    %2121 = vmatprep.mubr.f32.mxu0 %v1169
    %2122 = vmatmul.mubr.f32.gmra.mrb[0].mxu0 %v1105
    %v2123 = vpop.f32.mrb[0].mxu0
    %v2124 = vadd.f32 %v1775, %v2123
    %v2125 = vpop.f32.mrb[0].mxu0
    %2126 = vmatprep.mubr.f32.mxu0 %v1170
    %2127 = vmatmul.mubr.f32.gmra.mrb[0].mxu0 %v1106
    %v2128 = vpop.f32.mrb[0].mxu0
    %v2129 = vadd.f32 %v1775, %v2128
    %v2130 = vpop.f32.mrb[0].mxu0
    %2131 = vmatprep.mubr.f32.mxu0 %v1171
    %2132 = vmatmul.mubr.f32.gmra.mrb[0].mxu0 %v1107
    %v2133 = vpop.f32.mrb[0].mxu0
    %v2134 = vadd.f32 %v1775, %v2133
    %v2135 = vpop.f32.mrb[0].mxu0
    %2136 = vmatprep.mubr.f32.mxu0 %v1172
    %2137 = vmatmul.mubr.f32.gmra.mrb[0].mxu0 %v1108
    %v2138 = vpop.f32.mrb[0].mxu0
    %v2139 = vadd.f32 %v1775, %v2138
    %v2140 = vpop.f32.mrb[0].mxu0
    %2141 = vmatprep.mubr.f32.mxu0 %v1173
    %2142 = vmatmul.mubr.f32.gmra.mrb[0].mxu0 %v1109
    %v2143 = vpop.f32.mrb[0].mxu0
    %v2144 = vadd.f32 %v1775, %v2143
    %v2145 = vpop.f32.mrb[0].mxu0
    %2146 = vmatprep.mubr.f32.mxu0 %v1174
    %2147 = vmatmul.mubr.f32.gmra.mrb[0].mxu0 %v1110
    %v2148 = vpop.f32.mrb[0].mxu0
    %v2149 = vadd.f32 %v1775, %v2148
    %v2150 = vpop.f32.mrb[0].mxu0
    %2151 = vmatprep.mubr.f32.mxu0 %v1175
    %2152 = vmatmul.mubr.f32.gmra.mrb[0].mxu0 %v1111
    %v2153 = vpop.f32.mrb[0].mxu0
    %v2154 = vadd.f32 %v1775, %v2153
    %v2155 = vpop.f32.mrb[0].mxu0
    %2156 = vmatprep.mubr.f32.mxu0 %v1176
    %2157 = vmatmul.mubr.f32.gmra.mrb[0].mxu0 %v1112
    %v2158 = vpop.f32.mrb[0].mxu0
    %v2159 = vadd.f32 %v1775, %v2158
    %v2160 = vpop.f32.mrb[0].mxu0
    %2161 = vdwg.mxu0
    %2162 = vmatprep.subr.mxu0 0.0
    %2163 = vmatpush1.msra.mxu0 %v1658
    %2164 = vmatprep.subr.mxu0 0.0
    %2165 = vmatpush1.msra.mxu0 %v1659
    %2166 = vmatprep.subr.mxu0 0.0
    %2167 = vmatpush1.msra.mxu0 %v1660
    %2168 = vmatprep.subr.mxu0 0.0
    %2169 = vmatpush1.msra.mxu0 %v1661
    %2170 = vmatprep.subr.mxu0 0.0
    %2171 = vmatpush1.msra.mxu0 %v1662
    %2172 = vmatprep.subr.mxu0 0.0
    %2173 = vmatpush1.msra.mxu0 %v1663
    %2174 = vmatprep.subr.mxu0 0.0
    %2175 = vmatpush1.msra.mxu0 %v1664
    %2176 = vmatprep.subr.mxu0 0.0
    %2177 = vmatpush1.msra.mxu0 %v1665
    %2178 = vmatprep.subr.mxu0 0.0
    %2179 = vmatpush1.msra.mxu0 %v1666
    %2180 = vmatprep.subr.mxu0 0.0
    %2181 = vmatpush1.msra.mxu0 %v1667
    %2182 = vmatprep.subr.mxu0 0.0
    %2183 = vmatpush1.msra.mxu0 %v1668
    %2184 = vmatprep.subr.mxu0 0.0
    %2185 = vmatpush1.msra.mxu0 %v1669
    %2186 = vmatprep.subr.mxu0 0.0
    %2187 = vmatpush1.msra.mxu0 %v1670
    %2188 = vmatprep.subr.mxu0 0.0
    %2189 = vmatpush1.msra.mxu0 %v1671
    %2190 = vmatprep.subr.mxu0 0.0
    %2191 = vmatpush1.msra.mxu0 %v1672
    %2192 = vmatprep.subr.mxu0 0.0
    %2193 = vmatpush1.msra.mxu0 %v1673
    %2194 = vmatprep.subr.mxu0 0.0
    %2195 = vmatpush1.msra.mxu0 %v1674
    %2196 = vmatprep.subr.mxu0 0.0
    %2197 = vmatpush1.msra.mxu0 %v1675
    %2198 = vmatprep.subr.mxu0 0.0
    %2199 = vmatpush1.msra.mxu0 %v1676
    %2200 = vmatprep.subr.mxu0 0.0
    %2201 = vmatpush1.msra.mxu0 %v1677
    %2202 = vmatprep.subr.mxu0 0.0
    %2203 = vmatpush1.msra.mxu0 %v1678
    %2204 = vmatprep.subr.mxu0 0.0
    %2205 = vmatpush1.msra.mxu0 %v1679
    %2206 = vmatprep.subr.mxu0 0.0
    %2207 = vmatpush1.msra.mxu0 %v1680
    %2208 = vmatprep.subr.mxu0 0.0
    %2209 = vmatpush1.msra.mxu0 %v1681
    %2210 = vmatprep.subr.mxu0 0.0
    %2211 = vmatpush1.msra.mxu0 %v1682
    %2212 = vmatprep.subr.mxu0 0.0
    %2213 = vmatpush1.msra.mxu0 %v1683
    %2214 = vmatprep.subr.mxu0 0.0
    %2215 = vmatpush1.msra.mxu0 %v1684
    %2216 = vmatprep.subr.mxu0 0.0
    %2217 = vmatpush1.msra.mxu0 %v1685
    %2218 = vmatprep.subr.mxu0 0.0
    %2219 = vmatpush1.msra.mxu0 %v1686
    %2220 = vmatprep.subr.mxu0 0.0
    %2221 = vmatpush1.msra.mxu0 %v1687
    %2222 = vmatprep.subr.mxu0 0.0
    %2223 = vmatpush1.msra.mxu0 %v1688
    %2224 = vmatprep.subr.mxu0 0.0
    %2225 = vmatpush1.msra.mxu0 %v1689
    %2226 = vmatprep.mubr.f32.mxu0 %v1241
    %2227 = vmatmul.mubr.f32.gmra.mrb[0].mxu0 %v1177
    %v2228 = vpop.f32.mrb[0].mxu0
    %v2229 = vadd.f32 %v1844, %v2228
    %v2230 = vpop.f32.mrb[0].mxu0
    %2231 = vmatprep.mubr.f32.mxu0 %v1242
    %2232 = vmatmul.mubr.f32.gmra.mrb[0].mxu0 %v1178
    %v2233 = vpop.f32.mrb[0].mxu0
    %v2234 = vadd.f32 %v1849, %v2233
    %v2235 = vpop.f32.mrb[0].mxu0
    %2236 = vmatprep.mubr.f32.mxu0 %v1243
    %2237 = vmatmul.mubr.f32.gmra.mrb[0].mxu0 %v1179
    %v2238 = vpop.f32.mrb[0].mxu0
    %v2239 = vadd.f32 %v1854, %v2238
    %v2240 = vpop.f32.mrb[0].mxu0
    %2241 = vmatprep.mubr.f32.mxu0 %v1244
    %2242 = vmatmul.mubr.f32.gmra.mrb[0].mxu0 %v1180
    %v2243 = vpop.f32.mrb[0].mxu0
    %v2244 = vadd.f32 %v1859, %v2243
    %v2245 = vpop.f32.mrb[0].mxu0
    %2246 = vmatprep.mubr.f32.mxu0 %v1245
    %2247 = vmatmul.mubr.f32.gmra.mrb[0].mxu0 %v1181
    %v2248 = vpop.f32.mrb[0].mxu0
    %v2249 = vadd.f32 %v1864, %v2248
    %v2250 = vpop.f32.mrb[0].mxu0
    %2251 = vmatprep.mubr.f32.mxu0 %v1246
    %2252 = vmatmul.mubr.f32.gmra.mrb[0].mxu0 %v1182
    %v2253 = vpop.f32.mrb[0].mxu0
    %v2254 = vadd.f32 %v1869, %v2253
    %v2255 = vpop.f32.mrb[0].mxu0
    %2256 = vmatprep.mubr.f32.mxu0 %v1247
    %2257 = vmatmul.mubr.f32.gmra.mrb[0].mxu0 %v1183
    %v2258 = vpop.f32.mrb[0].mxu0
    %v2259 = vadd.f32 %v1874, %v2258
    %v2260 = vpop.f32.mrb[0].mxu0
    %2261 = vmatprep.mubr.f32.mxu0 %v1248
    %2262 = vmatmul.mubr.f32.gmra.mrb[0].mxu0 %v1184
    %v2263 = vpop.f32.mrb[0].mxu0
    %v2264 = vadd.f32 %v1879, %v2263
    %v2265 = vpop.f32.mrb[0].mxu0
    %2266 = vmatprep.mubr.f32.mxu0 %v1249
    %2267 = vmatmul.mubr.f32.gmra.mrb[0].mxu0 %v1185
    %v2268 = vpop.f32.mrb[0].mxu0
    %v2269 = vadd.f32 %v1884, %v2268
    %v2270 = vpop.f32.mrb[0].mxu0
    %2271 = vmatprep.mubr.f32.mxu0 %v1250
    %2272 = vmatmul.mubr.f32.gmra.mrb[0].mxu0 %v1186
    %v2273 = vpop.f32.mrb[0].mxu0
    %v2274 = vadd.f32 %v1889, %v2273
    %v2275 = vpop.f32.mrb[0].mxu0
    %2276 = vmatprep.mubr.f32.mxu0 %v1251
    %2277 = vmatmul.mubr.f32.gmra.mrb[0].mxu0 %v1187
    %v2278 = vpop.f32.mrb[0].mxu0
    %v2279 = vadd.f32 %v1894, %v2278
    %v2280 = vpop.f32.mrb[0].mxu0
    %2281 = vmatprep.mubr.f32.mxu0 %v1252
    %2282 = vmatmul.mubr.f32.gmra.mrb[0].mxu0 %v1188
    %v2283 = vpop.f32.mrb[0].mxu0
    %v2284 = vadd.f32 %v1899, %v2283
    %v2285 = vpop.f32.mrb[0].mxu0
    %2286 = vmatprep.mubr.f32.mxu0 %v1253
    %2287 = vmatmul.mubr.f32.gmra.mrb[0].mxu0 %v1189
    %v2288 = vpop.f32.mrb[0].mxu0
    %v2289 = vadd.f32 %v1904, %v2288
    %v2290 = vpop.f32.mrb[0].mxu0
    %2291 = vmatprep.mubr.f32.mxu0 %v1254
    %2292 = vmatmul.mubr.f32.gmra.mrb[0].mxu0 %v1190
    %v2293 = vpop.f32.mrb[0].mxu0
    %v2294 = vadd.f32 %v1909, %v2293
    %v2295 = vpop.f32.mrb[0].mxu0
    %2296 = vmatprep.mubr.f32.mxu0 %v1255
    %2297 = vmatmul.mubr.f32.gmra.mrb[0].mxu0 %v1191
    %v2298 = vpop.f32.mrb[0].mxu0
    %v2299 = vadd.f32 %v1914, %v2298
    %v2300 = vpop.f32.mrb[0].mxu0
    %2301 = vmatprep.mubr.f32.mxu0 %v1256
    %2302 = vmatmul.mubr.f32.gmra.mrb[0].mxu0 %v1192
    %v2303 = vpop.f32.mrb[0].mxu0
    %v2304 = vadd.f32 %v1919, %v2303
    %v2305 = vpop.f32.mrb[0].mxu0
    %2306 = vmatprep.mubr.f32.mxu0 %v1257
    %2307 = vmatmul.mubr.f32.gmra.mrb[0].mxu0 %v1193
    %v2308 = vpop.f32.mrb[0].mxu0
    %v2309 = vadd.f32 %v1924, %v2308
    %v2310 = vpop.f32.mrb[0].mxu0
    %2311 = vmatprep.mubr.f32.mxu0 %v1258
    %2312 = vmatmul.mubr.f32.gmra.mrb[0].mxu0 %v1194
    %v2313 = vpop.f32.mrb[0].mxu0
    %v2314 = vadd.f32 %v1929, %v2313
    %v2315 = vpop.f32.mrb[0].mxu0
    %2316 = vmatprep.mubr.f32.mxu0 %v1259
    %2317 = vmatmul.mubr.f32.gmra.mrb[0].mxu0 %v1195
    %v2318 = vpop.f32.mrb[0].mxu0
    %v2319 = vadd.f32 %v1934, %v2318
    %v2320 = vpop.f32.mrb[0].mxu0
    %2321 = vmatprep.mubr.f32.mxu0 %v1260
    %2322 = vmatmul.mubr.f32.gmra.mrb[0].mxu0 %v1196
    %v2323 = vpop.f32.mrb[0].mxu0
    %v2324 = vadd.f32 %v1939, %v2323
    %v2325 = vpop.f32.mrb[0].mxu0
    %2326 = vmatprep.mubr.f32.mxu0 %v1261
    %2327 = vmatmul.mubr.f32.gmra.mrb[0].mxu0 %v1197
    %v2328 = vpop.f32.mrb[0].mxu0
    %v2329 = vadd.f32 %v1944, %v2328
    %v2330 = vpop.f32.mrb[0].mxu0
    %2331 = vmatprep.mubr.f32.mxu0 %v1262
    %2332 = vmatmul.mubr.f32.gmra.mrb[0].mxu0 %v1198
    %v2333 = vpop.f32.mrb[0].mxu0
    %v2334 = vadd.f32 %v1949, %v2333
    %v2335 = vpop.f32.mrb[0].mxu0
    %2336 = vmatprep.mubr.f32.mxu0 %v1263
    %2337 = vmatmul.mubr.f32.gmra.mrb[0].mxu0 %v1199
    %v2338 = vpop.f32.mrb[0].mxu0
    %v2339 = vadd.f32 %v1954, %v2338
    %v2340 = vpop.f32.mrb[0].mxu0
    %2341 = vmatprep.mubr.f32.mxu0 %v1264
    %2342 = vmatmul.mubr.f32.gmra.mrb[0].mxu0 %v1200
    %v2343 = vpop.f32.mrb[0].mxu0
    %v2344 = vadd.f32 %v1959, %v2343
    %v2345 = vpop.f32.mrb[0].mxu0
    %2346 = vmatprep.mubr.f32.mxu0 %v1265
    %2347 = vmatmul.mubr.f32.gmra.mrb[0].mxu0 %v1201
    %v2348 = vpop.f32.mrb[0].mxu0
    %v2349 = vadd.f32 %v1964, %v2348
    %v2350 = vpop.f32.mrb[0].mxu0
    %2351 = vmatprep.mubr.f32.mxu0 %v1266
    %2352 = vmatmul.mubr.f32.gmra.mrb[0].mxu0 %v1202
    %v2353 = vpop.f32.mrb[0].mxu0
    %v2354 = vadd.f32 %v1969, %v2353
    %v2355 = vpop.f32.mrb[0].mxu0
    %2356 = vmatprep.mubr.f32.mxu0 %v1267
    %2357 = vmatmul.mubr.f32.gmra.mrb[0].mxu0 %v1203
    %v2358 = vpop.f32.mrb[0].mxu0
    %v2359 = vadd.f32 %v1974, %v2358
    %v2360 = vpop.f32.mrb[0].mxu0
    %2361 = vmatprep.mubr.f32.mxu0 %v1268
    %2362 = vmatmul.mubr.f32.gmra.mrb[0].mxu0 %v1204
    %v2363 = vpop.f32.mrb[0].mxu0
    %v2364 = vadd.f32 %v1979, %v2363
    %v2365 = vpop.f32.mrb[0].mxu0
    %2366 = vmatprep.mubr.f32.mxu0 %v1269
    %2367 = vmatmul.mubr.f32.gmra.mrb[0].mxu0 %v1205
    %v2368 = vpop.f32.mrb[0].mxu0
    %v2369 = vadd.f32 %v1984, %v2368
    %v2370 = vpop.f32.mrb[0].mxu0
    %2371 = vmatprep.mubr.f32.mxu0 %v1270
    %2372 = vmatmul.mubr.f32.gmra.mrb[0].mxu0 %v1206
    %v2373 = vpop.f32.mrb[0].mxu0
    %v2374 = vadd.f32 %v1989, %v2373
    %v2375 = vpop.f32.mrb[0].mxu0
    %2376 = vmatprep.mubr.f32.mxu0 %v1271
    %2377 = vmatmul.mubr.f32.gmra.mrb[0].mxu0 %v1207
    %v2378 = vpop.f32.mrb[0].mxu0
    %v2379 = vadd.f32 %v1994, %v2378
    %v2380 = vpop.f32.mrb[0].mxu0
    %2381 = vmatprep.mubr.f32.mxu0 %v1272
    %2382 = vmatmul.mubr.f32.gmra.mrb[0].mxu0 %v1208
    %v2383 = vpop.f32.mrb[0].mxu0
    %v2384 = vadd.f32 %v1999, %v2383
    %v2385 = vpop.f32.mrb[0].mxu0
    %2386 = vmatprep.mubr.f32.mxu0 %v1273
    %2387 = vmatmul.mubr.f32.gmra.mrb[0].mxu0 %v1209
    %v2388 = vpop.f32.mrb[0].mxu0
    %v2389 = vadd.f32 %v2004, %v2388
    %v2390 = vpop.f32.mrb[0].mxu0
    %2391 = vmatprep.mubr.f32.mxu0 %v1274
    %2392 = vmatmul.mubr.f32.gmra.mrb[0].mxu0 %v1210
    %v2393 = vpop.f32.mrb[0].mxu0
    %v2394 = vadd.f32 %v2009, %v2393
    %v2395 = vpop.f32.mrb[0].mxu0
    %2396 = vmatprep.mubr.f32.mxu0 %v1275
    %2397 = vmatmul.mubr.f32.gmra.mrb[0].mxu0 %v1211
    %v2398 = vpop.f32.mrb[0].mxu0
    %v2399 = vadd.f32 %v2014, %v2398
    %v2400 = vpop.f32.mrb[0].mxu0
    %2401 = vmatprep.mubr.f32.mxu0 %v1276
    %2402 = vmatmul.mubr.f32.gmra.mrb[0].mxu0 %v1212
    %v2403 = vpop.f32.mrb[0].mxu0
    %v2404 = vadd.f32 %v2019, %v2403
    %v2405 = vpop.f32.mrb[0].mxu0
    %2406 = vmatprep.mubr.f32.mxu0 %v1277
    %2407 = vmatmul.mubr.f32.gmra.mrb[0].mxu0 %v1213
    %v2408 = vpop.f32.mrb[0].mxu0
    %v2409 = vadd.f32 %v2024, %v2408
    %v2410 = vpop.f32.mrb[0].mxu0
    %2411 = vmatprep.mubr.f32.mxu0 %v1278
    %2412 = vmatmul.mubr.f32.gmra.mrb[0].mxu0 %v1214
    %v2413 = vpop.f32.mrb[0].mxu0
    %v2414 = vadd.f32 %v2029, %v2413
    %v2415 = vpop.f32.mrb[0].mxu0
    %2416 = vmatprep.mubr.f32.mxu0 %v1279
    %2417 = vmatmul.mubr.f32.gmra.mrb[0].mxu0 %v1215
    %v2418 = vpop.f32.mrb[0].mxu0
    %v2419 = vadd.f32 %v2034, %v2418
    %v2420 = vpop.f32.mrb[0].mxu0
    %2421 = vmatprep.mubr.f32.mxu0 %v1280
    %2422 = vmatmul.mubr.f32.gmra.mrb[0].mxu0 %v1216
    %v2423 = vpop.f32.mrb[0].mxu0
    %v2424 = vadd.f32 %v2039, %v2423
    %v2425 = vpop.f32.mrb[0].mxu0
    %2426 = vmatprep.mubr.f32.mxu0 %v1281
    %2427 = vmatmul.mubr.f32.gmra.mrb[0].mxu0 %v1217
    %v2428 = vpop.f32.mrb[0].mxu0
    %v2429 = vadd.f32 %v2044, %v2428
    %v2430 = vpop.f32.mrb[0].mxu0
    %2431 = vmatprep.mubr.f32.mxu0 %v1282
    %2432 = vmatmul.mubr.f32.gmra.mrb[0].mxu0 %v1218
    %v2433 = vpop.f32.mrb[0].mxu0
    %v2434 = vadd.f32 %v2049, %v2433
    %v2435 = vpop.f32.mrb[0].mxu0
    %2436 = vmatprep.mubr.f32.mxu0 %v1283
    %2437 = vmatmul.mubr.f32.gmra.mrb[0].mxu0 %v1219
    %v2438 = vpop.f32.mrb[0].mxu0
    %v2439 = vadd.f32 %v2054, %v2438
    %v2440 = vpop.f32.mrb[0].mxu0
    %2441 = vmatprep.mubr.f32.mxu0 %v1284
    %2442 = vmatmul.mubr.f32.gmra.mrb[0].mxu0 %v1220
    %v2443 = vpop.f32.mrb[0].mxu0
    %v2444 = vadd.f32 %v2059, %v2443
    %v2445 = vpop.f32.mrb[0].mxu0
    %2446 = vmatprep.mubr.f32.mxu0 %v1285
    %2447 = vmatmul.mubr.f32.gmra.mrb[0].mxu0 %v1221
    %v2448 = vpop.f32.mrb[0].mxu0
    %v2449 = vadd.f32 %v2064, %v2448
    %v2450 = vpop.f32.mrb[0].mxu0
    %2451 = vmatprep.mubr.f32.mxu0 %v1286
    %2452 = vmatmul.mubr.f32.gmra.mrb[0].mxu0 %v1222
    %v2453 = vpop.f32.mrb[0].mxu0
    %v2454 = vadd.f32 %v2069, %v2453
    %v2455 = vpop.f32.mrb[0].mxu0
    %2456 = vmatprep.mubr.f32.mxu0 %v1287
    %2457 = vmatmul.mubr.f32.gmra.mrb[0].mxu0 %v1223
    %v2458 = vpop.f32.mrb[0].mxu0
    %v2459 = vadd.f32 %v2074, %v2458
    %v2460 = vpop.f32.mrb[0].mxu0
    %2461 = vmatprep.mubr.f32.mxu0 %v1288
    %2462 = vmatmul.mubr.f32.gmra.mrb[0].mxu0 %v1224
    %v2463 = vpop.f32.mrb[0].mxu0
    %v2464 = vadd.f32 %v2079, %v2463
    %v2465 = vpop.f32.mrb[0].mxu0
    %2466 = vmatprep.mubr.f32.mxu0 %v1289
    %2467 = vmatmul.mubr.f32.gmra.mrb[0].mxu0 %v1225
    %v2468 = vpop.f32.mrb[0].mxu0
    %v2469 = vadd.f32 %v2084, %v2468
    %v2470 = vpop.f32.mrb[0].mxu0
    %2471 = vmatprep.mubr.f32.mxu0 %v1290
    %2472 = vmatmul.mubr.f32.gmra.mrb[0].mxu0 %v1226
    %v2473 = vpop.f32.mrb[0].mxu0
    %v2474 = vadd.f32 %v2089, %v2473
    %v2475 = vpop.f32.mrb[0].mxu0
    %2476 = vmatprep.mubr.f32.mxu0 %v1291
    %2477 = vmatmul.mubr.f32.gmra.mrb[0].mxu0 %v1227
    %v2478 = vpop.f32.mrb[0].mxu0
    %v2479 = vadd.f32 %v2094, %v2478
    %v2480 = vpop.f32.mrb[0].mxu0
    %2481 = vmatprep.mubr.f32.mxu0 %v1292
    %2482 = vmatmul.mubr.f32.gmra.mrb[0].mxu0 %v1228
    %v2483 = vpop.f32.mrb[0].mxu0
    %v2484 = vadd.f32 %v2099, %v2483
    %v2485 = vpop.f32.mrb[0].mxu0
    %2486 = vmatprep.mubr.f32.mxu0 %v1293
    %2487 = vmatmul.mubr.f32.gmra.mrb[0].mxu0 %v1229
    %v2488 = vpop.f32.mrb[0].mxu0
    %v2489 = vadd.f32 %v2104, %v2488
    %v2490 = vpop.f32.mrb[0].mxu0
    %2491 = vmatprep.mubr.f32.mxu0 %v1294
    %2492 = vmatmul.mubr.f32.gmra.mrb[0].mxu0 %v1230
    %v2493 = vpop.f32.mrb[0].mxu0
    %v2494 = vadd.f32 %v2109, %v2493
    %v2495 = vpop.f32.mrb[0].mxu0
    %2496 = vmatprep.mubr.f32.mxu0 %v1295
    %2497 = vmatmul.mubr.f32.gmra.mrb[0].mxu0 %v1231
    %v2498 = vpop.f32.mrb[0].mxu0
    %v2499 = vadd.f32 %v2114, %v2498
    %v2500 = vpop.f32.mrb[0].mxu0
    %2501 = vmatprep.mubr.f32.mxu0 %v1296
    %2502 = vmatmul.mubr.f32.gmra.mrb[0].mxu0 %v1232
    %v2503 = vpop.f32.mrb[0].mxu0
    %v2504 = vadd.f32 %v2119, %v2503
    %v2505 = vpop.f32.mrb[0].mxu0
    %2506 = vmatprep.mubr.f32.mxu0 %v1297
    %2507 = vmatmul.mubr.f32.gmra.mrb[0].mxu0 %v1233
    %v2508 = vpop.f32.mrb[0].mxu0
    %v2509 = vadd.f32 %v2124, %v2508
    %v2510 = vpop.f32.mrb[0].mxu0
    %2511 = vmatprep.mubr.f32.mxu0 %v1298
    %2512 = vmatmul.mubr.f32.gmra.mrb[0].mxu0 %v1234
    %v2513 = vpop.f32.mrb[0].mxu0
    %v2514 = vadd.f32 %v2129, %v2513
    %v2515 = vpop.f32.mrb[0].mxu0
    %2516 = vmatprep.mubr.f32.mxu0 %v1299
    %2517 = vmatmul.mubr.f32.gmra.mrb[0].mxu0 %v1235
    %v2518 = vpop.f32.mrb[0].mxu0
    %v2519 = vadd.f32 %v2134, %v2518
    %v2520 = vpop.f32.mrb[0].mxu0
    %2521 = vmatprep.mubr.f32.mxu0 %v1300
    %2522 = vmatmul.mubr.f32.gmra.mrb[0].mxu0 %v1236
    %v2523 = vpop.f32.mrb[0].mxu0
    %v2524 = vadd.f32 %v2139, %v2523
    %v2525 = vpop.f32.mrb[0].mxu0
    %2526 = vmatprep.mubr.f32.mxu0 %v1301
    %2527 = vmatmul.mubr.f32.gmra.mrb[0].mxu0 %v1237
    %v2528 = vpop.f32.mrb[0].mxu0
    %v2529 = vadd.f32 %v2144, %v2528
    %v2530 = vpop.f32.mrb[0].mxu0
    %2531 = vmatprep.mubr.f32.mxu0 %v1302
    %2532 = vmatmul.mubr.f32.gmra.mrb[0].mxu0 %v1238
    %v2533 = vpop.f32.mrb[0].mxu0
    %v2534 = vadd.f32 %v2149, %v2533
    %v2535 = vpop.f32.mrb[0].mxu0
    %2536 = vmatprep.mubr.f32.mxu0 %v1303
    %2537 = vmatmul.mubr.f32.gmra.mrb[0].mxu0 %v1239
    %v2538 = vpop.f32.mrb[0].mxu0
    %v2539 = vadd.f32 %v2154, %v2538
    %v2540 = vpop.f32.mrb[0].mxu0
    %2541 = vmatprep.mubr.f32.mxu0 %v1304
    %2542 = vmatmul.mubr.f32.gmra.mrb[0].mxu0 %v1240
    %v2543 = vpop.f32.mrb[0].mxu0
    %v2544 = vadd.f32 %v2159, %v2543
    %v2545 = vpop.f32.mrb[0].mxu0
    %2546 = vdwg.mxu0
    %2547 = vmatprep.subr.mxu0 0.0
    %2548 = vmatpush1.msra.mxu0 %v1690
    %2549 = vmatprep.subr.mxu0 0.0
    %2550 = vmatpush1.msra.mxu0 %v1691
    %2551 = vmatprep.subr.mxu0 0.0
    %2552 = vmatpush1.msra.mxu0 %v1692
    %2553 = vmatprep.subr.mxu0 0.0
    %2554 = vmatpush1.msra.mxu0 %v1693
    %2555 = vmatprep.subr.mxu0 0.0
    %2556 = vmatpush1.msra.mxu0 %v1694
    %2557 = vmatprep.subr.mxu0 0.0
    %2558 = vmatpush1.msra.mxu0 %v1695
    %2559 = vmatprep.subr.mxu0 0.0
    %2560 = vmatpush1.msra.mxu0 %v1696
    %2561 = vmatprep.subr.mxu0 0.0
    %2562 = vmatpush1.msra.mxu0 %v1697
    %2563 = vmatprep.subr.mxu0 0.0
    %2564 = vmatpush1.msra.mxu0 %v1698
    %2565 = vmatprep.subr.mxu0 0.0
    %2566 = vmatpush1.msra.mxu0 %v1699
    %2567 = vmatprep.subr.mxu0 0.0
    %2568 = vmatpush1.msra.mxu0 %v1700
    %2569 = vmatprep.subr.mxu0 0.0
    %2570 = vmatpush1.msra.mxu0 %v1701
    %2571 = vmatprep.subr.mxu0 0.0
    %2572 = vmatpush1.msra.mxu0 %v1702
    %2573 = vmatprep.subr.mxu0 0.0
    %2574 = vmatpush1.msra.mxu0 %v1703
    %2575 = vmatprep.subr.mxu0 0.0
    %2576 = vmatpush1.msra.mxu0 %v1704
    %2577 = vmatprep.subr.mxu0 0.0
    %2578 = vmatpush1.msra.mxu0 %v1705
    %2579 = vmatprep.subr.mxu0 0.0
    %2580 = vmatpush1.msra.mxu0 %v1706
    %2581 = vmatprep.subr.mxu0 0.0
    %2582 = vmatpush1.msra.mxu0 %v1707
    %2583 = vmatprep.subr.mxu0 0.0
    %2584 = vmatpush1.msra.mxu0 %v1708
    %2585 = vmatprep.subr.mxu0 0.0
    %2586 = vmatpush1.msra.mxu0 %v1709
    %2587 = vmatprep.subr.mxu0 0.0
    %2588 = vmatpush1.msra.mxu0 %v1710
    %2589 = vmatprep.subr.mxu0 0.0
    %2590 = vmatpush1.msra.mxu0 %v1711
    %2591 = vmatprep.subr.mxu0 0.0
    %2592 = vmatpush1.msra.mxu0 %v1712
    %2593 = vmatprep.subr.mxu0 0.0
    %2594 = vmatpush1.msra.mxu0 %v1713
    %2595 = vmatprep.subr.mxu0 0.0
    %2596 = vmatpush1.msra.mxu0 %v1714
    %2597 = vmatprep.subr.mxu0 0.0
    %2598 = vmatpush1.msra.mxu0 %v1715
    %2599 = vmatprep.subr.mxu0 0.0
    %2600 = vmatpush1.msra.mxu0 %v1716
    %2601 = vmatprep.subr.mxu0 0.0
    %2602 = vmatpush1.msra.mxu0 %v1717
    %2603 = vmatprep.subr.mxu0 0.0
    %2604 = vmatpush1.msra.mxu0 %v1718
    %2605 = vmatprep.subr.mxu0 0.0
    %2606 = vmatpush1.msra.mxu0 %v1719
    %2607 = vmatprep.subr.mxu0 0.0
    %2608 = vmatpush1.msra.mxu0 %v1720
    %2609 = vmatprep.subr.mxu0 0.0
    %2610 = vmatpush1.msra.mxu0 %v1721
    %2611 = vmatprep.mubr.f32.mxu0 %v1369
    %2612 = vmatmul.mubr.f32.gmra.mrb[0].mxu0 %v1305
    %v2613 = vpop.f32.mrb[0].mxu0
    %v2614 = vadd.f32 %v2229, %v2613
    %v2615 = vpop.f32.mrb[0].mxu0
    %2616 = vmatprep.mubr.f32.mxu0 %v1370
    %2617 = vmatmul.mubr.f32.gmra.mrb[0].mxu0 %v1306
    %v2618 = vpop.f32.mrb[0].mxu0
    %v2619 = vadd.f32 %v2234, %v2618
    %v2620 = vpop.f32.mrb[0].mxu0
    %2621 = vmatprep.mubr.f32.mxu0 %v1371
    %2622 = vmatmul.mubr.f32.gmra.mrb[0].mxu0 %v1307
    %v2623 = vpop.f32.mrb[0].mxu0
    %v2624 = vadd.f32 %v2239, %v2623
    %v2625 = vpop.f32.mrb[0].mxu0
    %2626 = vmatprep.mubr.f32.mxu0 %v1372
    %2627 = vmatmul.mubr.f32.gmra.mrb[0].mxu0 %v1308
    %v2628 = vpop.f32.mrb[0].mxu0
    %v2629 = vadd.f32 %v2244, %v2628
    %v2630 = vpop.f32.mrb[0].mxu0
    %2631 = vmatprep.mubr.f32.mxu0 %v1373
    %2632 = vmatmul.mubr.f32.gmra.mrb[0].mxu0 %v1309
    %v2633 = vpop.f32.mrb[0].mxu0
    %v2634 = vadd.f32 %v2249, %v2633
    %v2635 = vpop.f32.mrb[0].mxu0
    %2636 = vmatprep.mubr.f32.mxu0 %v1374
    %2637 = vmatmul.mubr.f32.gmra.mrb[0].mxu0 %v1310
    %v2638 = vpop.f32.mrb[0].mxu0
    %v2639 = vadd.f32 %v2254, %v2638
    %v2640 = vpop.f32.mrb[0].mxu0
    %2641 = vmatprep.mubr.f32.mxu0 %v1375
    %2642 = vmatmul.mubr.f32.gmra.mrb[0].mxu0 %v1311
    %v2643 = vpop.f32.mrb[0].mxu0
    %v2644 = vadd.f32 %v2259, %v2643
    %v2645 = vpop.f32.mrb[0].mxu0
    %2646 = vmatprep.mubr.f32.mxu0 %v1376
    %2647 = vmatmul.mubr.f32.gmra.mrb[0].mxu0 %v1312
    %v2648 = vpop.f32.mrb[0].mxu0
    %v2649 = vadd.f32 %v2264, %v2648
    %v2650 = vpop.f32.mrb[0].mxu0
    %2651 = vmatprep.mubr.f32.mxu0 %v1377
    %2652 = vmatmul.mubr.f32.gmra.mrb[0].mxu0 %v1313
    %v2653 = vpop.f32.mrb[0].mxu0
    %v2654 = vadd.f32 %v2269, %v2653
    %v2655 = vpop.f32.mrb[0].mxu0
    %2656 = vmatprep.mubr.f32.mxu0 %v1378
    %2657 = vmatmul.mubr.f32.gmra.mrb[0].mxu0 %v1314
    %v2658 = vpop.f32.mrb[0].mxu0
    %v2659 = vadd.f32 %v2274, %v2658
    %v2660 = vpop.f32.mrb[0].mxu0
    %2661 = vmatprep.mubr.f32.mxu0 %v1379
    %2662 = vmatmul.mubr.f32.gmra.mrb[0].mxu0 %v1315
    %v2663 = vpop.f32.mrb[0].mxu0
    %v2664 = vadd.f32 %v2279, %v2663
    %v2665 = vpop.f32.mrb[0].mxu0
    %2666 = vmatprep.mubr.f32.mxu0 %v1380
    %2667 = vmatmul.mubr.f32.gmra.mrb[0].mxu0 %v1316
    %v2668 = vpop.f32.mrb[0].mxu0
    %v2669 = vadd.f32 %v2284, %v2668
    %v2670 = vpop.f32.mrb[0].mxu0
    %2671 = vmatprep.mubr.f32.mxu0 %v1381
    %2672 = vmatmul.mubr.f32.gmra.mrb[0].mxu0 %v1317
    %v2673 = vpop.f32.mrb[0].mxu0
    %v2674 = vadd.f32 %v2289, %v2673
    %v2675 = vpop.f32.mrb[0].mxu0
    %2676 = vmatprep.mubr.f32.mxu0 %v1382
    %2677 = vmatmul.mubr.f32.gmra.mrb[0].mxu0 %v1318
    %v2678 = vpop.f32.mrb[0].mxu0
    %v2679 = vadd.f32 %v2294, %v2678
    %v2680 = vpop.f32.mrb[0].mxu0
    %2681 = vmatprep.mubr.f32.mxu0 %v1383
    %2682 = vmatmul.mubr.f32.gmra.mrb[0].mxu0 %v1319
    %v2683 = vpop.f32.mrb[0].mxu0
    %v2684 = vadd.f32 %v2299, %v2683
    %v2685 = vpop.f32.mrb[0].mxu0
    %2686 = vmatprep.mubr.f32.mxu0 %v1384
    %2687 = vmatmul.mubr.f32.gmra.mrb[0].mxu0 %v1320
    %v2688 = vpop.f32.mrb[0].mxu0
    %v2689 = vadd.f32 %v2304, %v2688
    %v2690 = vpop.f32.mrb[0].mxu0
    %2691 = vmatprep.mubr.f32.mxu0 %v1385
    %2692 = vmatmul.mubr.f32.gmra.mrb[0].mxu0 %v1321
    %v2693 = vpop.f32.mrb[0].mxu0
    %v2694 = vadd.f32 %v2309, %v2693
    %v2695 = vpop.f32.mrb[0].mxu0
    %2696 = vmatprep.mubr.f32.mxu0 %v1386
    %2697 = vmatmul.mubr.f32.gmra.mrb[0].mxu0 %v1322
    %v2698 = vpop.f32.mrb[0].mxu0
    %v2699 = vadd.f32 %v2314, %v2698
    %v2700 = vpop.f32.mrb[0].mxu0
    %2701 = vmatprep.mubr.f32.mxu0 %v1387
    %2702 = vmatmul.mubr.f32.gmra.mrb[0].mxu0 %v1323
    %v2703 = vpop.f32.mrb[0].mxu0
    %v2704 = vadd.f32 %v2319, %v2703
    %v2705 = vpop.f32.mrb[0].mxu0
    %2706 = vmatprep.mubr.f32.mxu0 %v1388
    %2707 = vmatmul.mubr.f32.gmra.mrb[0].mxu0 %v1324
    %v2708 = vpop.f32.mrb[0].mxu0
    %v2709 = vadd.f32 %v2324, %v2708
    %v2710 = vpop.f32.mrb[0].mxu0
    %2711 = vmatprep.mubr.f32.mxu0 %v1389
    %2712 = vmatmul.mubr.f32.gmra.mrb[0].mxu0 %v1325
    %v2713 = vpop.f32.mrb[0].mxu0
    %v2714 = vadd.f32 %v2329, %v2713
    %v2715 = vpop.f32.mrb[0].mxu0
    %2716 = vmatprep.mubr.f32.mxu0 %v1390
    %2717 = vmatmul.mubr.f32.gmra.mrb[0].mxu0 %v1326
    %v2718 = vpop.f32.mrb[0].mxu0
    %v2719 = vadd.f32 %v2334, %v2718
    %v2720 = vpop.f32.mrb[0].mxu0
    %2721 = vmatprep.mubr.f32.mxu0 %v1391
    %2722 = vmatmul.mubr.f32.gmra.mrb[0].mxu0 %v1327
    %v2723 = vpop.f32.mrb[0].mxu0
    %v2724 = vadd.f32 %v2339, %v2723
    %v2725 = vpop.f32.mrb[0].mxu0
    %2726 = vmatprep.mubr.f32.mxu0 %v1392
    %2727 = vmatmul.mubr.f32.gmra.mrb[0].mxu0 %v1328
    %v2728 = vpop.f32.mrb[0].mxu0
    %v2729 = vadd.f32 %v2344, %v2728
    %v2730 = vpop.f32.mrb[0].mxu0
    %2731 = vmatprep.mubr.f32.mxu0 %v1393
    %2732 = vmatmul.mubr.f32.gmra.mrb[0].mxu0 %v1329
    %v2733 = vpop.f32.mrb[0].mxu0
    %v2734 = vadd.f32 %v2349, %v2733
    %v2735 = vpop.f32.mrb[0].mxu0
    %2736 = vmatprep.mubr.f32.mxu0 %v1394
    %2737 = vmatmul.mubr.f32.gmra.mrb[0].mxu0 %v1330
    %v2738 = vpop.f32.mrb[0].mxu0
    %v2739 = vadd.f32 %v2354, %v2738
    %v2740 = vpop.f32.mrb[0].mxu0
    %2741 = vmatprep.mubr.f32.mxu0 %v1395
    %2742 = vmatmul.mubr.f32.gmra.mrb[0].mxu0 %v1331
    %v2743 = vpop.f32.mrb[0].mxu0
    %v2744 = vadd.f32 %v2359, %v2743
    %v2745 = vpop.f32.mrb[0].mxu0
    %2746 = vmatprep.mubr.f32.mxu0 %v1396
    %2747 = vmatmul.mubr.f32.gmra.mrb[0].mxu0 %v1332
    %v2748 = vpop.f32.mrb[0].mxu0
    %v2749 = vadd.f32 %v2364, %v2748
    %v2750 = vpop.f32.mrb[0].mxu0
    %2751 = vmatprep.mubr.f32.mxu0 %v1397
    %2752 = vmatmul.mubr.f32.gmra.mrb[0].mxu0 %v1333
    %v2753 = vpop.f32.mrb[0].mxu0
    %v2754 = vadd.f32 %v2369, %v2753
    %v2755 = vpop.f32.mrb[0].mxu0
    %2756 = vmatprep.mubr.f32.mxu0 %v1398
    %2757 = vmatmul.mubr.f32.gmra.mrb[0].mxu0 %v1334
    %v2758 = vpop.f32.mrb[0].mxu0
    %v2759 = vadd.f32 %v2374, %v2758
    %v2760 = vpop.f32.mrb[0].mxu0
    %2761 = vmatprep.mubr.f32.mxu0 %v1399
    %2762 = vmatmul.mubr.f32.gmra.mrb[0].mxu0 %v1335
    %v2763 = vpop.f32.mrb[0].mxu0
    %v2764 = vadd.f32 %v2379, %v2763
    %v2765 = vpop.f32.mrb[0].mxu0
    %2766 = vmatprep.mubr.f32.mxu0 %v1400
    %2767 = vmatmul.mubr.f32.gmra.mrb[0].mxu0 %v1336
    %v2768 = vpop.f32.mrb[0].mxu0
    %v2769 = vadd.f32 %v2384, %v2768
    %v2770 = vpop.f32.mrb[0].mxu0
    %2771 = vmatprep.mubr.f32.mxu0 %v1401
    %2772 = vmatmul.mubr.f32.gmra.mrb[0].mxu0 %v1337
    %v2773 = vpop.f32.mrb[0].mxu0
    %v2774 = vadd.f32 %v2389, %v2773
    %v2775 = vpop.f32.mrb[0].mxu0
    %2776 = vmatprep.mubr.f32.mxu0 %v1402
    %2777 = vmatmul.mubr.f32.gmra.mrb[0].mxu0 %v1338
    %v2778 = vpop.f32.mrb[0].mxu0
    %v2779 = vadd.f32 %v2394, %v2778
    %v2780 = vpop.f32.mrb[0].mxu0
    %2781 = vmatprep.mubr.f32.mxu0 %v1403
    %2782 = vmatmul.mubr.f32.gmra.mrb[0].mxu0 %v1339
    %v2783 = vpop.f32.mrb[0].mxu0
    %v2784 = vadd.f32 %v2399, %v2783
    %v2785 = vpop.f32.mrb[0].mxu0
    %2786 = vmatprep.mubr.f32.mxu0 %v1404
    %2787 = vmatmul.mubr.f32.gmra.mrb[0].mxu0 %v1340
    %v2788 = vpop.f32.mrb[0].mxu0
    %v2789 = vadd.f32 %v2404, %v2788
    %v2790 = vpop.f32.mrb[0].mxu0
    %2791 = vmatprep.mubr.f32.mxu0 %v1405
    %2792 = vmatmul.mubr.f32.gmra.mrb[0].mxu0 %v1341
    %v2793 = vpop.f32.mrb[0].mxu0
    %v2794 = vadd.f32 %v2409, %v2793
    %v2795 = vpop.f32.mrb[0].mxu0
    %2796 = vmatprep.mubr.f32.mxu0 %v1406
    %2797 = vmatmul.mubr.f32.gmra.mrb[0].mxu0 %v1342
    %v2798 = vpop.f32.mrb[0].mxu0
    %v2799 = vadd.f32 %v2414, %v2798
    %v2800 = vpop.f32.mrb[0].mxu0
    %2801 = vmatprep.mubr.f32.mxu0 %v1407
    %2802 = vmatmul.mubr.f32.gmra.mrb[0].mxu0 %v1343
    %v2803 = vpop.f32.mrb[0].mxu0
    %v2804 = vadd.f32 %v2419, %v2803
    %v2805 = vpop.f32.mrb[0].mxu0
    %2806 = vmatprep.mubr.f32.mxu0 %v1408
    %2807 = vmatmul.mubr.f32.gmra.mrb[0].mxu0 %v1344
    %v2808 = vpop.f32.mrb[0].mxu0
    %v2809 = vadd.f32 %v2424, %v2808
    %v2810 = vpop.f32.mrb[0].mxu0
    %2811 = vmatprep.mubr.f32.mxu0 %v1409
    %2812 = vmatmul.mubr.f32.gmra.mrb[0].mxu0 %v1345
    %v2813 = vpop.f32.mrb[0].mxu0
    %v2814 = vadd.f32 %v2429, %v2813
    %v2815 = vpop.f32.mrb[0].mxu0
    %2816 = vmatprep.mubr.f32.mxu0 %v1410
    %2817 = vmatmul.mubr.f32.gmra.mrb[0].mxu0 %v1346
    %v2818 = vpop.f32.mrb[0].mxu0
    %v2819 = vadd.f32 %v2434, %v2818
    %v2820 = vpop.f32.mrb[0].mxu0
    %2821 = vmatprep.mubr.f32.mxu0 %v1411
    %2822 = vmatmul.mubr.f32.gmra.mrb[0].mxu0 %v1347
    %v2823 = vpop.f32.mrb[0].mxu0
    %v2824 = vadd.f32 %v2439, %v2823
    %v2825 = vpop.f32.mrb[0].mxu0
    %2826 = vmatprep.mubr.f32.mxu0 %v1412
    %2827 = vmatmul.mubr.f32.gmra.mrb[0].mxu0 %v1348
    %v2828 = vpop.f32.mrb[0].mxu0
    %v2829 = vadd.f32 %v2444, %v2828
    %v2830 = vpop.f32.mrb[0].mxu0
    %2831 = vmatprep.mubr.f32.mxu0 %v1413
    %2832 = vmatmul.mubr.f32.gmra.mrb[0].mxu0 %v1349
    %v2833 = vpop.f32.mrb[0].mxu0
    %v2834 = vadd.f32 %v2449, %v2833
    %v2835 = vpop.f32.mrb[0].mxu0
    %2836 = vmatprep.mubr.f32.mxu0 %v1414
    %2837 = vmatmul.mubr.f32.gmra.mrb[0].mxu0 %v1350
    %v2838 = vpop.f32.mrb[0].mxu0
    %v2839 = vadd.f32 %v2454, %v2838
    %v2840 = vpop.f32.mrb[0].mxu0
    %2841 = vmatprep.mubr.f32.mxu0 %v1415
    %2842 = vmatmul.mubr.f32.gmra.mrb[0].mxu0 %v1351
    %v2843 = vpop.f32.mrb[0].mxu0
    %v2844 = vadd.f32 %v2459, %v2843
    %v2845 = vpop.f32.mrb[0].mxu0
    %2846 = vmatprep.mubr.f32.mxu0 %v1416
    %2847 = vmatmul.mubr.f32.gmra.mrb[0].mxu0 %v1352
    %v2848 = vpop.f32.mrb[0].mxu0
    %v2849 = vadd.f32 %v2464, %v2848
    %v2850 = vpop.f32.mrb[0].mxu0
    %2851 = vmatprep.mubr.f32.mxu0 %v1417
    %2852 = vmatmul.mubr.f32.gmra.mrb[0].mxu0 %v1353
    %v2853 = vpop.f32.mrb[0].mxu0
    %v2854 = vadd.f32 %v2469, %v2853
    %v2855 = vpop.f32.mrb[0].mxu0
    %2856 = vmatprep.mubr.f32.mxu0 %v1418
    %2857 = vmatmul.mubr.f32.gmra.mrb[0].mxu0 %v1354
    %v2858 = vpop.f32.mrb[0].mxu0
    %v2859 = vadd.f32 %v2474, %v2858
    %v2860 = vpop.f32.mrb[0].mxu0
    %2861 = vmatprep.mubr.f32.mxu0 %v1419
    %2862 = vmatmul.mubr.f32.gmra.mrb[0].mxu0 %v1355
    %v2863 = vpop.f32.mrb[0].mxu0
    %v2864 = vadd.f32 %v2479, %v2863
    %v2865 = vpop.f32.mrb[0].mxu0
    %2866 = vmatprep.mubr.f32.mxu0 %v1420
    %2867 = vmatmul.mubr.f32.gmra.mrb[0].mxu0 %v1356
    %v2868 = vpop.f32.mrb[0].mxu0
    %v2869 = vadd.f32 %v2484, %v2868
    %v2870 = vpop.f32.mrb[0].mxu0
    %2871 = vmatprep.mubr.f32.mxu0 %v1421
    %2872 = vmatmul.mubr.f32.gmra.mrb[0].mxu0 %v1357
    %v2873 = vpop.f32.mrb[0].mxu0
    %v2874 = vadd.f32 %v2489, %v2873
    %v2875 = vpop.f32.mrb[0].mxu0
    %2876 = vmatprep.mubr.f32.mxu0 %v1422
    %2877 = vmatmul.mubr.f32.gmra.mrb[0].mxu0 %v1358
    %v2878 = vpop.f32.mrb[0].mxu0
    %v2879 = vadd.f32 %v2494, %v2878
    %v2880 = vpop.f32.mrb[0].mxu0
    %2881 = vmatprep.mubr.f32.mxu0 %v1423
    %2882 = vmatmul.mubr.f32.gmra.mrb[0].mxu0 %v1359
    %v2883 = vpop.f32.mrb[0].mxu0
    %v2884 = vadd.f32 %v2499, %v2883
    %v2885 = vpop.f32.mrb[0].mxu0
    %2886 = vmatprep.mubr.f32.mxu0 %v1424
    %2887 = vmatmul.mubr.f32.gmra.mrb[0].mxu0 %v1360
    %v2888 = vpop.f32.mrb[0].mxu0
    %v2889 = vadd.f32 %v2504, %v2888
    %v2890 = vpop.f32.mrb[0].mxu0
    %2891 = vmatprep.mubr.f32.mxu0 %v1425
    %2892 = vmatmul.mubr.f32.gmra.mrb[0].mxu0 %v1361
    %v2893 = vpop.f32.mrb[0].mxu0
    %v2894 = vadd.f32 %v2509, %v2893
    %v2895 = vpop.f32.mrb[0].mxu0
    %2896 = vmatprep.mubr.f32.mxu0 %v1426
    %2897 = vmatmul.mubr.f32.gmra.mrb[0].mxu0 %v1362
    %v2898 = vpop.f32.mrb[0].mxu0
    %v2899 = vadd.f32 %v2514, %v2898
    %v2900 = vpop.f32.mrb[0].mxu0
    %2901 = vmatprep.mubr.f32.mxu0 %v1427
    %2902 = vmatmul.mubr.f32.gmra.mrb[0].mxu0 %v1363
    %v2903 = vpop.f32.mrb[0].mxu0
    %v2904 = vadd.f32 %v2519, %v2903
    %v2905 = vpop.f32.mrb[0].mxu0
    %2906 = vmatprep.mubr.f32.mxu0 %v1428
    %2907 = vmatmul.mubr.f32.gmra.mrb[0].mxu0 %v1364
    %v2908 = vpop.f32.mrb[0].mxu0
    %v2909 = vadd.f32 %v2524, %v2908
    %v2910 = vpop.f32.mrb[0].mxu0
    %2911 = vmatprep.mubr.f32.mxu0 %v1429
    %2912 = vmatmul.mubr.f32.gmra.mrb[0].mxu0 %v1365
    %v2913 = vpop.f32.mrb[0].mxu0
    %v2914 = vadd.f32 %v2529, %v2913
    %v2915 = vpop.f32.mrb[0].mxu0
    %2916 = vmatprep.mubr.f32.mxu0 %v1430
    %2917 = vmatmul.mubr.f32.gmra.mrb[0].mxu0 %v1366
    %v2918 = vpop.f32.mrb[0].mxu0
    %v2919 = vadd.f32 %v2534, %v2918
    %v2920 = vpop.f32.mrb[0].mxu0
    %2921 = vmatprep.mubr.f32.mxu0 %v1431
    %2922 = vmatmul.mubr.f32.gmra.mrb[0].mxu0 %v1367
    %v2923 = vpop.f32.mrb[0].mxu0
    %v2924 = vadd.f32 %v2539, %v2923
    %v2925 = vpop.f32.mrb[0].mxu0
    %2926 = vmatprep.mubr.f32.mxu0 %v1432
    %2927 = vmatmul.mubr.f32.gmra.mrb[0].mxu0 %v1368
    %v2928 = vpop.f32.mrb[0].mxu0
    %v2929 = vadd.f32 %v2544, %v2928
    %v2930 = vpop.f32.mrb[0].mxu0
    %2931 = vdwg.mxu0
    %2932 = vmatprep.subr.mxu0 0.0
    %2933 = vmatpush1.msra.mxu0 %v1722
    %2934 = vmatprep.subr.mxu0 0.0
    %2935 = vmatpush1.msra.mxu0 %v1723
    %2936 = vmatprep.subr.mxu0 0.0
    %2937 = vmatpush1.msra.mxu0 %v1724
    %2938 = vmatprep.subr.mxu0 0.0
    %2939 = vmatpush1.msra.mxu0 %v1725
    %2940 = vmatprep.subr.mxu0 0.0
    %2941 = vmatpush1.msra.mxu0 %v1726
    %2942 = vmatprep.subr.mxu0 0.0
    %2943 = vmatpush1.msra.mxu0 %v1727
    %2944 = vmatprep.subr.mxu0 0.0
    %2945 = vmatpush1.msra.mxu0 %v1728
    %2946 = vmatprep.subr.mxu0 0.0
    %2947 = vmatpush1.msra.mxu0 %v1729
    %2948 = vmatprep.subr.mxu0 0.0
    %2949 = vmatpush1.msra.mxu0 %v1730
    %2950 = vmatprep.subr.mxu0 0.0
    %2951 = vmatpush1.msra.mxu0 %v1731
    %2952 = vmatprep.subr.mxu0 0.0
    %2953 = vmatpush1.msra.mxu0 %v1732
    %2954 = vmatprep.subr.mxu0 0.0
    %2955 = vmatpush1.msra.mxu0 %v1733
    %2956 = vmatprep.subr.mxu0 0.0
    %2957 = vmatpush1.msra.mxu0 %v1734
    %2958 = vmatprep.subr.mxu0 0.0
    %2959 = vmatpush1.msra.mxu0 %v1735
    %2960 = vmatprep.subr.mxu0 0.0
    %2961 = vmatpush1.msra.mxu0 %v1736
    %2962 = vmatprep.subr.mxu0 0.0
    %2963 = vmatpush1.msra.mxu0 %v1737
    %2964 = vmatprep.subr.mxu0 0.0
    %2965 = vmatpush1.msra.mxu0 %v1738
    %2966 = vmatprep.subr.mxu0 0.0
    %2967 = vmatpush1.msra.mxu0 %v1739
    %2968 = vmatprep.subr.mxu0 0.0
    %2969 = vmatpush1.msra.mxu0 %v1740
    %2970 = vmatprep.subr.mxu0 0.0
    %2971 = vmatpush1.msra.mxu0 %v1741
    %2972 = vmatprep.subr.mxu0 0.0
    %2973 = vmatpush1.msra.mxu0 %v1742
    %2974 = vmatprep.subr.mxu0 0.0
    %2975 = vmatpush1.msra.mxu0 %v1743
    %2976 = vmatprep.subr.mxu0 0.0
    %2977 = vmatpush1.msra.mxu0 %v1744
    %2978 = vmatprep.subr.mxu0 0.0
    %2979 = vmatpush1.msra.mxu0 %v1745
    %2980 = vmatprep.subr.mxu0 0.0
    %2981 = vmatpush1.msra.mxu0 %v1746
    %2982 = vmatprep.subr.mxu0 0.0
    %2983 = vmatpush1.msra.mxu0 %v1747
    %2984 = vmatprep.subr.mxu0 0.0
    %2985 = vmatpush1.msra.mxu0 %v1748
    %2986 = vmatprep.subr.mxu0 0.0
    %2987 = vmatpush1.msra.mxu0 %v1749
    %2988 = vmatprep.subr.mxu0 0.0
    %2989 = vmatpush1.msra.mxu0 %v1750
    %2990 = vmatprep.subr.mxu0 0.0
    %2991 = vmatpush1.msra.mxu0 %v1751
    %2992 = vmatprep.subr.mxu0 0.0
    %2993 = vmatpush1.msra.mxu0 %v1752
    %2994 = vmatprep.subr.mxu0 0.0
    %2995 = vmatpush1.msra.mxu0 %v1753
    %2996 = vmatprep.mubr.f32.mxu0 %v1498
    %2997 = vmatmul.mubr.f32.gmra.mrb[0].mxu0 %v1434
    %v2998 = vpop.f32.mrb[0].mxu0
    %v2999 = vadd.f32 %v2614, %v2998
    %v3000 = vpop.f32.mrb[0].mxu0
    %3001 = vmatprep.mubr.f32.mxu0 %v1499
    %3002 = vmatmul.mubr.f32.gmra.mrb[0].mxu0 %v1435
    %v3003 = vpop.f32.mrb[0].mxu0
    %v3004 = vadd.f32 %v2619, %v3003
    %v3005 = vpop.f32.mrb[0].mxu0
    %3006 = vmatprep.mubr.f32.mxu0 %v1500
    %3007 = vmatmul.mubr.f32.gmra.mrb[0].mxu0 %v1436
    %v3008 = vpop.f32.mrb[0].mxu0
    %v3009 = vadd.f32 %v2624, %v3008
    %v3010 = vpop.f32.mrb[0].mxu0
    %3011 = vmatprep.mubr.f32.mxu0 %v1501
    %3012 = vmatmul.mubr.f32.gmra.mrb[0].mxu0 %v1437
    %v3013 = vpop.f32.mrb[0].mxu0
    %v3014 = vadd.f32 %v2629, %v3013
    %v3015 = vpop.f32.mrb[0].mxu0
    %3016 = vmatprep.mubr.f32.mxu0 %v1502
    %3017 = vmatmul.mubr.f32.gmra.mrb[0].mxu0 %v1438
    %v3018 = vpop.f32.mrb[0].mxu0
    %v3019 = vadd.f32 %v2634, %v3018
    %v3020 = vpop.f32.mrb[0].mxu0
    %3021 = vmatprep.mubr.f32.mxu0 %v1503
    %3022 = vmatmul.mubr.f32.gmra.mrb[0].mxu0 %v1439
    %v3023 = vpop.f32.mrb[0].mxu0
    %v3024 = vadd.f32 %v2639, %v3023
    %v3025 = vpop.f32.mrb[0].mxu0
    %3026 = vmatprep.mubr.f32.mxu0 %v1504
    %3027 = vmatmul.mubr.f32.gmra.mrb[0].mxu0 %v1440
    %v3028 = vpop.f32.mrb[0].mxu0
    %v3029 = vadd.f32 %v2644, %v3028
    %v3030 = vpop.f32.mrb[0].mxu0
    %3031 = vmatprep.mubr.f32.mxu0 %v1505
    %3032 = vmatmul.mubr.f32.gmra.mrb[0].mxu0 %v1441
    %v3033 = vpop.f32.mrb[0].mxu0
    %v3034 = vadd.f32 %v2649, %v3033
    %v3035 = vpop.f32.mrb[0].mxu0
    %3036 = vmatprep.mubr.f32.mxu0 %v1506
    %3037 = vmatmul.mubr.f32.gmra.mrb[0].mxu0 %v1442
    %v3038 = vpop.f32.mrb[0].mxu0
    %v3039 = vadd.f32 %v2654, %v3038
    %v3040 = vpop.f32.mrb[0].mxu0
    %3041 = vmatprep.mubr.f32.mxu0 %v1507
    %3042 = vmatmul.mubr.f32.gmra.mrb[0].mxu0 %v1443
    %v3043 = vpop.f32.mrb[0].mxu0
    %v3044 = vadd.f32 %v2659, %v3043
    %v3045 = vpop.f32.mrb[0].mxu0
    %3046 = vmatprep.mubr.f32.mxu0 %v1508
    %3047 = vmatmul.mubr.f32.gmra.mrb[0].mxu0 %v1444
    %v3048 = vpop.f32.mrb[0].mxu0
    %v3049 = vadd.f32 %v2664, %v3048
    %v3050 = vpop.f32.mrb[0].mxu0
    %3051 = vmatprep.mubr.f32.mxu0 %v1509
    %3052 = vmatmul.mubr.f32.gmra.mrb[0].mxu0 %v1445
    %v3053 = vpop.f32.mrb[0].mxu0
    %v3054 = vadd.f32 %v2669, %v3053
    %v3055 = vpop.f32.mrb[0].mxu0
    %3056 = vmatprep.mubr.f32.mxu0 %v1510
    %3057 = vmatmul.mubr.f32.gmra.mrb[0].mxu0 %v1446
    %v3058 = vpop.f32.mrb[0].mxu0
    %v3059 = vadd.f32 %v2674, %v3058
    %v3060 = vpop.f32.mrb[0].mxu0
    %3061 = vmatprep.mubr.f32.mxu0 %v1511
    %3062 = vmatmul.mubr.f32.gmra.mrb[0].mxu0 %v1447
    %v3063 = vpop.f32.mrb[0].mxu0
    %v3064 = vadd.f32 %v2679, %v3063
    %v3065 = vpop.f32.mrb[0].mxu0
    %3066 = vmatprep.mubr.f32.mxu0 %v1512
    %3067 = vmatmul.mubr.f32.gmra.mrb[0].mxu0 %v1448
    %v3068 = vpop.f32.mrb[0].mxu0
    %v3069 = vadd.f32 %v2684, %v3068
    %v3070 = vpop.f32.mrb[0].mxu0
    %3071 = vmatprep.mubr.f32.mxu0 %v1513
    %3072 = vmatmul.mubr.f32.gmra.mrb[0].mxu0 %v1449
    %v3073 = vpop.f32.mrb[0].mxu0
    %v3074 = vadd.f32 %v2689, %v3073
    %v3075 = vpop.f32.mrb[0].mxu0
    %3076 = vmatprep.mubr.f32.mxu0 %v1514
    %3077 = vmatmul.mubr.f32.gmra.mrb[0].mxu0 %v1450
    %v3078 = vpop.f32.mrb[0].mxu0
    %v3079 = vadd.f32 %v2694, %v3078
    %v3080 = vpop.f32.mrb[0].mxu0
    %3081 = vmatprep.mubr.f32.mxu0 %v1515
    %3082 = vmatmul.mubr.f32.gmra.mrb[0].mxu0 %v1451
    %v3083 = vpop.f32.mrb[0].mxu0
    %v3084 = vadd.f32 %v2699, %v3083
    %v3085 = vpop.f32.mrb[0].mxu0
    %3086 = vmatprep.mubr.f32.mxu0 %v1516
    %3087 = vmatmul.mubr.f32.gmra.mrb[0].mxu0 %v1452
    %v3088 = vpop.f32.mrb[0].mxu0
    %v3089 = vadd.f32 %v2704, %v3088
    %v3090 = vpop.f32.mrb[0].mxu0
    %3091 = vmatprep.mubr.f32.mxu0 %v1517
    %3092 = vmatmul.mubr.f32.gmra.mrb[0].mxu0 %v1453
    %v3093 = vpop.f32.mrb[0].mxu0
    %v3094 = vadd.f32 %v2709, %v3093
    %v3095 = vpop.f32.mrb[0].mxu0
    %3096 = vmatprep.mubr.f32.mxu0 %v1518
    %3097 = vmatmul.mubr.f32.gmra.mrb[0].mxu0 %v1454
    %v3098 = vpop.f32.mrb[0].mxu0
    %v3099 = vadd.f32 %v2714, %v3098
    %v3100 = vpop.f32.mrb[0].mxu0
    %3101 = vmatprep.mubr.f32.mxu0 %v1519
    %3102 = vmatmul.mubr.f32.gmra.mrb[0].mxu0 %v1455
    %v3103 = vpop.f32.mrb[0].mxu0
    %v3104 = vadd.f32 %v2719, %v3103
    %v3105 = vpop.f32.mrb[0].mxu0
    %3106 = vmatprep.mubr.f32.mxu0 %v1520
    %3107 = vmatmul.mubr.f32.gmra.mrb[0].mxu0 %v1456
    %v3108 = vpop.f32.mrb[0].mxu0
    %v3109 = vadd.f32 %v2724, %v3108
    %v3110 = vpop.f32.mrb[0].mxu0
    %3111 = vmatprep.mubr.f32.mxu0 %v1521
    %3112 = vmatmul.mubr.f32.gmra.mrb[0].mxu0 %v1457
    %v3113 = vpop.f32.mrb[0].mxu0
    %v3114 = vadd.f32 %v2729, %v3113
    %v3115 = vpop.f32.mrb[0].mxu0
    %3116 = vmatprep.mubr.f32.mxu0 %v1522
    %3117 = vmatmul.mubr.f32.gmra.mrb[0].mxu0 %v1458
    %v3118 = vpop.f32.mrb[0].mxu0
    %v3119 = vadd.f32 %v2734, %v3118
    %v3120 = vpop.f32.mrb[0].mxu0
    %3121 = vmatprep.mubr.f32.mxu0 %v1523
    %3122 = vmatmul.mubr.f32.gmra.mrb[0].mxu0 %v1459
    %v3123 = vpop.f32.mrb[0].mxu0
    %v3124 = vadd.f32 %v2739, %v3123
    %v3125 = vpop.f32.mrb[0].mxu0
    %3126 = vmatprep.mubr.f32.mxu0 %v1524
    %3127 = vmatmul.mubr.f32.gmra.mrb[0].mxu0 %v1460
    %v3128 = vpop.f32.mrb[0].mxu0
    %v3129 = vadd.f32 %v2744, %v3128
    %v3130 = vpop.f32.mrb[0].mxu0
    %3131 = vmatprep.mubr.f32.mxu0 %v1525
    %3132 = vmatmul.mubr.f32.gmra.mrb[0].mxu0 %v1461
    %v3133 = vpop.f32.mrb[0].mxu0
    %v3134 = vadd.f32 %v2749, %v3133
    %v3135 = vpop.f32.mrb[0].mxu0
    %3136 = vmatprep.mubr.f32.mxu0 %v1526
    %3137 = vmatmul.mubr.f32.gmra.mrb[0].mxu0 %v1462
    %v3138 = vpop.f32.mrb[0].mxu0
    %v3139 = vadd.f32 %v2754, %v3138
    %v3140 = vpop.f32.mrb[0].mxu0
    %3141 = vmatprep.mubr.f32.mxu0 %v1527
    %3142 = vmatmul.mubr.f32.gmra.mrb[0].mxu0 %v1463
    %v3143 = vpop.f32.mrb[0].mxu0
    %v3144 = vadd.f32 %v2759, %v3143
    %v3145 = vpop.f32.mrb[0].mxu0
    %3146 = vmatprep.mubr.f32.mxu0 %v1528
    %3147 = vmatmul.mubr.f32.gmra.mrb[0].mxu0 %v1464
    %v3148 = vpop.f32.mrb[0].mxu0
    %v3149 = vadd.f32 %v2764, %v3148
    %v3150 = vpop.f32.mrb[0].mxu0
    %3151 = vmatprep.mubr.f32.mxu0 %v1529
    %3152 = vmatmul.mubr.f32.gmra.mrb[0].mxu0 %v1465
    %v3153 = vpop.f32.mrb[0].mxu0
    %v3154 = vadd.f32 %v2769, %v3153
    %v3155 = vpop.f32.mrb[0].mxu0
    %3156 = vmatprep.mubr.f32.mxu0 %v1530
    %3157 = vmatmul.mubr.f32.gmra.mrb[0].mxu0 %v1466
    %v3158 = vpop.f32.mrb[0].mxu0
    %v3159 = vadd.f32 %v2774, %v3158
    %v3160 = vpop.f32.mrb[0].mxu0
    %3161 = vmatprep.mubr.f32.mxu0 %v1531
    %3162 = vmatmul.mubr.f32.gmra.mrb[0].mxu0 %v1467
    %v3163 = vpop.f32.mrb[0].mxu0
    %v3164 = vadd.f32 %v2779, %v3163
    %v3165 = vpop.f32.mrb[0].mxu0
    %3166 = vmatprep.mubr.f32.mxu0 %v1532
    %3167 = vmatmul.mubr.f32.gmra.mrb[0].mxu0 %v1468
    %v3168 = vpop.f32.mrb[0].mxu0
    %v3169 = vadd.f32 %v2784, %v3168
    %v3170 = vpop.f32.mrb[0].mxu0
    %3171 = vmatprep.mubr.f32.mxu0 %v1533
    %3172 = vmatmul.mubr.f32.gmra.mrb[0].mxu0 %v1469
    %v3173 = vpop.f32.mrb[0].mxu0
    %v3174 = vadd.f32 %v2789, %v3173
    %v3175 = vpop.f32.mrb[0].mxu0
    %3176 = vmatprep.mubr.f32.mxu0 %v1534
    %3177 = vmatmul.mubr.f32.gmra.mrb[0].mxu0 %v1470
    %v3178 = vpop.f32.mrb[0].mxu0
    %v3179 = vadd.f32 %v2794, %v3178
    %v3180 = vpop.f32.mrb[0].mxu0
    %3181 = vmatprep.mubr.f32.mxu0 %v1535
    %3182 = vmatmul.mubr.f32.gmra.mrb[0].mxu0 %v1471
    %v3183 = vpop.f32.mrb[0].mxu0
    %v3184 = vadd.f32 %v2799, %v3183
    %v3185 = vpop.f32.mrb[0].mxu0
    %3186 = vmatprep.mubr.f32.mxu0 %v1536
    %3187 = vmatmul.mubr.f32.gmra.mrb[0].mxu0 %v1472
    %v3188 = vpop.f32.mrb[0].mxu0
    %v3189 = vadd.f32 %v2804, %v3188
    %v3190 = vpop.f32.mrb[0].mxu0
    %3191 = vmatprep.mubr.f32.mxu0 %v1537
    %3192 = vmatmul.mubr.f32.gmra.mrb[0].mxu0 %v1473
    %v3193 = vpop.f32.mrb[0].mxu0
    %v3194 = vadd.f32 %v2809, %v3193
    %v3195 = vpop.f32.mrb[0].mxu0
    %3196 = vmatprep.mubr.f32.mxu0 %v1538
    %3197 = vmatmul.mubr.f32.gmra.mrb[0].mxu0 %v1474
    %v3198 = vpop.f32.mrb[0].mxu0
    %v3199 = vadd.f32 %v2814, %v3198
    %v3200 = vpop.f32.mrb[0].mxu0
    %3201 = vmatprep.mubr.f32.mxu0 %v1539
    %3202 = vmatmul.mubr.f32.gmra.mrb[0].mxu0 %v1475
    %v3203 = vpop.f32.mrb[0].mxu0
    %v3204 = vadd.f32 %v2819, %v3203
    %v3205 = vpop.f32.mrb[0].mxu0
    %3206 = vmatprep.mubr.f32.mxu0 %v1540
    %3207 = vmatmul.mubr.f32.gmra.mrb[0].mxu0 %v1476
    %v3208 = vpop.f32.mrb[0].mxu0
    %v3209 = vadd.f32 %v2824, %v3208
    %v3210 = vpop.f32.mrb[0].mxu0
    %3211 = vmatprep.mubr.f32.mxu0 %v1541
    %3212 = vmatmul.mubr.f32.gmra.mrb[0].mxu0 %v1477
    %v3213 = vpop.f32.mrb[0].mxu0
    %v3214 = vadd.f32 %v2829, %v3213
    %v3215 = vpop.f32.mrb[0].mxu0
    %3216 = vmatprep.mubr.f32.mxu0 %v1542
    %3217 = vmatmul.mubr.f32.gmra.mrb[0].mxu0 %v1478
    %v3218 = vpop.f32.mrb[0].mxu0
    %v3219 = vadd.f32 %v2834, %v3218
    %v3220 = vpop.f32.mrb[0].mxu0
    %3221 = vmatprep.mubr.f32.mxu0 %v1543
    %3222 = vmatmul.mubr.f32.gmra.mrb[0].mxu0 %v1479
    %v3223 = vpop.f32.mrb[0].mxu0
    %v3224 = vadd.f32 %v2839, %v3223
    %v3225 = vpop.f32.mrb[0].mxu0
    %3226 = vmatprep.mubr.f32.mxu0 %v1544
    %3227 = vmatmul.mubr.f32.gmra.mrb[0].mxu0 %v1480
    %v3228 = vpop.f32.mrb[0].mxu0
    %v3229 = vadd.f32 %v2844, %v3228
    %v3230 = vpop.f32.mrb[0].mxu0
    %3231 = vmatprep.mubr.f32.mxu0 %v1545
    %3232 = vmatmul.mubr.f32.gmra.mrb[0].mxu0 %v1481
    %v3233 = vpop.f32.mrb[0].mxu0
    %v3234 = vadd.f32 %v2849, %v3233
    %v3235 = vpop.f32.mrb[0].mxu0
    %3236 = vmatprep.mubr.f32.mxu0 %v1546
    %3237 = vmatmul.mubr.f32.gmra.mrb[0].mxu0 %v1482
    %v3238 = vpop.f32.mrb[0].mxu0
    %v3239 = vadd.f32 %v2854, %v3238
    %v3240 = vpop.f32.mrb[0].mxu0
    %3241 = vmatprep.mubr.f32.mxu0 %v1547
    %3242 = vmatmul.mubr.f32.gmra.mrb[0].mxu0 %v1483
    %v3243 = vpop.f32.mrb[0].mxu0
    %v3244 = vadd.f32 %v2859, %v3243
    %v3245 = vpop.f32.mrb[0].mxu0
    %3246 = vmatprep.mubr.f32.mxu0 %v1548
    %3247 = vmatmul.mubr.f32.gmra.mrb[0].mxu0 %v1484
    %v3248 = vpop.f32.mrb[0].mxu0
    %v3249 = vadd.f32 %v2864, %v3248
    %v3250 = vpop.f32.mrb[0].mxu0
    %3251 = vmatprep.mubr.f32.mxu0 %v1549
    %3252 = vmatmul.mubr.f32.gmra.mrb[0].mxu0 %v1485
    %v3253 = vpop.f32.mrb[0].mxu0
    %v3254 = vadd.f32 %v2869, %v3253
    %v3255 = vpop.f32.mrb[0].mxu0
    %3256 = vmatprep.mubr.f32.mxu0 %v1550
    %3257 = vmatmul.mubr.f32.gmra.mrb[0].mxu0 %v1486
    %v3258 = vpop.f32.mrb[0].mxu0
    %v3259 = vadd.f32 %v2874, %v3258
    %v3260 = vpop.f32.mrb[0].mxu0
    %3261 = vmatprep.mubr.f32.mxu0 %v1551
    %3262 = vmatmul.mubr.f32.gmra.mrb[0].mxu0 %v1487
    %v3263 = vpop.f32.mrb[0].mxu0
    %v3264 = vadd.f32 %v2879, %v3263
    %v3265 = vpop.f32.mrb[0].mxu0
    %3266 = vmatprep.mubr.f32.mxu0 %v1552
    %3267 = vmatmul.mubr.f32.gmra.mrb[0].mxu0 %v1488
    %v3268 = vpop.f32.mrb[0].mxu0
    %v3269 = vadd.f32 %v2884, %v3268
    %v3270 = vpop.f32.mrb[0].mxu0
    %3271 = vmatprep.mubr.f32.mxu0 %v1553
    %3272 = vmatmul.mubr.f32.gmra.mrb[0].mxu0 %v1489
    %v3273 = vpop.f32.mrb[0].mxu0
    %v3274 = vadd.f32 %v2889, %v3273
    %v3275 = vpop.f32.mrb[0].mxu0
    %3276 = vmatprep.mubr.f32.mxu0 %v1554
    %3277 = vmatmul.mubr.f32.gmra.mrb[0].mxu0 %v1490
    %v3278 = vpop.f32.mrb[0].mxu0
    %v3279 = vadd.f32 %v2894, %v3278
    %v3280 = vpop.f32.mrb[0].mxu0
    %3281 = vmatprep.mubr.f32.mxu0 %v1555
    %3282 = vmatmul.mubr.f32.gmra.mrb[0].mxu0 %v1491
    %v3283 = vpop.f32.mrb[0].mxu0
    %v3284 = vadd.f32 %v2899, %v3283
    %v3285 = vpop.f32.mrb[0].mxu0
    %3286 = vmatprep.mubr.f32.mxu0 %v1556
    %3287 = vmatmul.mubr.f32.gmra.mrb[0].mxu0 %v1492
    %v3288 = vpop.f32.mrb[0].mxu0
    %v3289 = vadd.f32 %v2904, %v3288
    %v3290 = vpop.f32.mrb[0].mxu0
    %3291 = vmatprep.mubr.f32.mxu0 %v1557
    %3292 = vmatmul.mubr.f32.gmra.mrb[0].mxu0 %v1493
    %v3293 = vpop.f32.mrb[0].mxu0
    %v3294 = vadd.f32 %v2909, %v3293
    %v3295 = vpop.f32.mrb[0].mxu0
    %3296 = vmatprep.mubr.f32.mxu0 %v1558
    %3297 = vmatmul.mubr.f32.gmra.mrb[0].mxu0 %v1494
    %v3298 = vpop.f32.mrb[0].mxu0
    %v3299 = vadd.f32 %v2914, %v3298
    %v3300 = vpop.f32.mrb[0].mxu0
    %3301 = vmatprep.mubr.f32.mxu0 %v1559
    %3302 = vmatmul.mubr.f32.gmra.mrb[0].mxu0 %v1495
    %v3303 = vpop.f32.mrb[0].mxu0
    %v3304 = vadd.f32 %v2919, %v3303
    %v3305 = vpop.f32.mrb[0].mxu0
    %3306 = vmatprep.mubr.f32.mxu0 %v1560
    %3307 = vmatmul.mubr.f32.gmra.mrb[0].mxu0 %v1496
    %v3308 = vpop.f32.mrb[0].mxu0
    %v3309 = vadd.f32 %v2924, %v3308
    %v3310 = vpop.f32.mrb[0].mxu0
    %3311 = vmatprep.mubr.f32.mxu0 %v1561
    %3312 = vmatmul.mubr.f32.gmra.mrb[0].mxu0 %v1497
    %v3313 = vpop.f32.mrb[0].mxu0
    %v3314 = vadd.f32 %v2929, %v3313
    %v3315 = vpop.f32.mrb[0].mxu0
    %3316 = vdwg.mxu0
    %3317 = vmatprep.subr.mxu0 0.0
    %3318 = vmatpush1.msra.mxu0 %v1754
    %3319 = vmatprep.subr.mxu0 0.0
    %3320 = vmatpush1.msra.mxu0 %v1755
    %3321 = vmatprep.subr.mxu0 0.0
    %3322 = vmatpush1.msra.mxu0 %v1756
    %3323 = vmatprep.subr.mxu0 0.0
    %3324 = vmatpush1.msra.mxu0 %v1757
    %3325 = vmatprep.subr.mxu0 0.0
    %3326 = vmatpush1.msra.mxu0 %v1758
    %3327 = vmatprep.subr.mxu0 0.0
    %3328 = vmatpush1.msra.mxu0 %v1759
    %3329 = vmatprep.subr.mxu0 0.0
    %3330 = vmatpush1.msra.mxu0 %v1760
    %3331 = vmatprep.subr.mxu0 0.0
    %3332 = vmatpush1.msra.mxu0 %v1761
    %3333 = vmatprep.subr.mxu0 0.0
    %3334 = vmatpush1.msra.mxu0 %v1762
    %3335 = vmatprep.subr.mxu0 0.0
    %3336 = vmatpush1.msra.mxu0 %v1763
    %3337 = vmatprep.subr.mxu0 0.0
    %3338 = vmatpush1.msra.mxu0 %v1764
    %3339 = vmatprep.subr.mxu0 0.0
    %3340 = vmatpush1.msra.mxu0 %v1765
    %3341 = vmatprep.subr.mxu0 0.0
    %3342 = vmatpush1.msra.mxu0 %v1766
    %3343 = vmatprep.subr.mxu0 0.0
    %3344 = vmatpush1.msra.mxu0 %v1767
    %3345 = vmatprep.subr.mxu0 0.0
    %3346 = vmatpush1.msra.mxu0 %v1768
    %3347 = vmatprep.subr.mxu0 0.0
    %3348 = vmatpush1.msra.mxu0 %v1769
    %3349 = vmatprep.subr.mxu0 0.0
    %3350 = vmatpush1.msra.mxu0 0.0
    %3351 = vmatprep.subr.mxu0 0.0
    %3352 = vmatpush1.msra.mxu0 0.0
    %3353 = vmatprep.subr.mxu0 0.0
    %3354 = vmatpush1.msra.mxu0 0.0
    %3355 = vmatprep.subr.mxu0 0.0
    %3356 = vmatpush1.msra.mxu0 0.0
    %3357 = vmatprep.subr.mxu0 0.0
    %3358 = vmatpush1.msra.mxu0 0.0
    %3359 = vmatprep.subr.mxu0 0.0
    %3360 = vmatpush1.msra.mxu0 0.0
    %3361 = vmatprep.subr.mxu0 0.0
    %3362 = vmatpush1.msra.mxu0 0.0
    %3363 = vmatprep.subr.mxu0 0.0
    %3364 = vmatpush1.msra.mxu0 0.0
    %3365 = vmatprep.subr.mxu0 0.0
    %3366 = vmatpush1.msra.mxu0 0.0
    %3367 = vmatprep.subr.mxu0 0.0
    %3368 = vmatpush1.msra.mxu0 0.0
    %3369 = vmatprep.subr.mxu0 0.0
    %3370 = vmatpush1.msra.mxu0 0.0
    %3371 = vmatprep.subr.mxu0 0.0
    %3372 = vmatpush1.msra.mxu0 0.0
    %3373 = vmatprep.subr.mxu0 0.0
    %3374 = vmatpush1.msra.mxu0 0.0
    %3375 = vmatprep.subr.mxu0 0.0
    %3376 = vmatpush1.msra.mxu0 0.0
    %3377 = vmatprep.subr.mxu0 0.0
    %3378 = vmatpush1.msra.mxu0 0.0
    %3379 = vmatprep.subr.mxu0 0.0
    %3380 = vmatpush1.msra.mxu0 0.0
    %3381 = vmatprep.mubr.f32.mxu0 0.0
    %3382 = vmatmul.mubr.f32.gmra.mrb[0].mxu0 %v1562
    %v3383 = vpop.f32.mrb[0].mxu0
    %v3384 = vadd.f32 %v2999, %v3383
    %v3385 = vpop.f32.mrb[0].mxu0
    %3386 = vmatprep.mubr.f32.mxu0 0.0
    %3387 = vmatmul.mubr.f32.gmra.mrb[0].mxu0 %v1563
    %v3388 = vpop.f32.mrb[0].mxu0
    %v3389 = vadd.f32 %v3004, %v3388
    %v3390 = vpop.f32.mrb[0].mxu0
    %3391 = vmatprep.mubr.f32.mxu0 0.0
    %3392 = vmatmul.mubr.f32.gmra.mrb[0].mxu0 %v1564
    %v3393 = vpop.f32.mrb[0].mxu0
    %v3394 = vadd.f32 %v3009, %v3393
    %v3395 = vpop.f32.mrb[0].mxu0
    %3396 = vmatprep.mubr.f32.mxu0 0.0
    %3397 = vmatmul.mubr.f32.gmra.mrb[0].mxu0 %v1565
    %v3398 = vpop.f32.mrb[0].mxu0
    %v3399 = vadd.f32 %v3014, %v3398
    %v3400 = vpop.f32.mrb[0].mxu0
    %3401 = vmatprep.mubr.f32.mxu0 0.0
    %3402 = vmatmul.mubr.f32.gmra.mrb[0].mxu0 %v1566
    %v3403 = vpop.f32.mrb[0].mxu0
    %v3404 = vadd.f32 %v3019, %v3403
    %v3405 = vpop.f32.mrb[0].mxu0
    %3406 = vmatprep.mubr.f32.mxu0 0.0
    %3407 = vmatmul.mubr.f32.gmra.mrb[0].mxu0 %v1567
    %v3408 = vpop.f32.mrb[0].mxu0
    %v3409 = vadd.f32 %v3024, %v3408
    %v3410 = vpop.f32.mrb[0].mxu0
    %3411 = vmatprep.mubr.f32.mxu0 0.0
    %3412 = vmatmul.mubr.f32.gmra.mrb[0].mxu0 %v1568
    %v3413 = vpop.f32.mrb[0].mxu0
    %v3414 = vadd.f32 %v3029, %v3413
    %v3415 = vpop.f32.mrb[0].mxu0
    %3416 = vmatprep.mubr.f32.mxu0 0.0
    %3417 = vmatmul.mubr.f32.gmra.mrb[0].mxu0 %v1569
    %v3418 = vpop.f32.mrb[0].mxu0
    %v3419 = vadd.f32 %v3034, %v3418
    %v3420 = vpop.f32.mrb[0].mxu0
    %3421 = vmatprep.mubr.f32.mxu0 0.0
    %3422 = vmatmul.mubr.f32.gmra.mrb[0].mxu0 %v1570
    %v3423 = vpop.f32.mrb[0].mxu0
    %v3424 = vadd.f32 %v3039, %v3423
    %v3425 = vpop.f32.mrb[0].mxu0
    %3426 = vmatprep.mubr.f32.mxu0 0.0
    %3427 = vmatmul.mubr.f32.gmra.mrb[0].mxu0 %v1571
    %v3428 = vpop.f32.mrb[0].mxu0
    %v3429 = vadd.f32 %v3044, %v3428
    %v3430 = vpop.f32.mrb[0].mxu0
    %3431 = vmatprep.mubr.f32.mxu0 0.0
    %3432 = vmatmul.mubr.f32.gmra.mrb[0].mxu0 %v1572
    %v3433 = vpop.f32.mrb[0].mxu0
    %v3434 = vadd.f32 %v3049, %v3433
    %v3435 = vpop.f32.mrb[0].mxu0
    %3436 = vmatprep.mubr.f32.mxu0 0.0
    %3437 = vmatmul.mubr.f32.gmra.mrb[0].mxu0 %v1573
    %v3438 = vpop.f32.mrb[0].mxu0
    %v3439 = vadd.f32 %v3054, %v3438
    %v3440 = vpop.f32.mrb[0].mxu0
    %3441 = vmatprep.mubr.f32.mxu0 0.0
    %3442 = vmatmul.mubr.f32.gmra.mrb[0].mxu0 %v1574
    %v3443 = vpop.f32.mrb[0].mxu0
    %v3444 = vadd.f32 %v3059, %v3443
    %v3445 = vpop.f32.mrb[0].mxu0
    %3446 = vmatprep.mubr.f32.mxu0 0.0
    %3447 = vmatmul.mubr.f32.gmra.mrb[0].mxu0 %v1575
    %v3448 = vpop.f32.mrb[0].mxu0
    %v3449 = vadd.f32 %v3064, %v3448
    %v3450 = vpop.f32.mrb[0].mxu0
    %3451 = vmatprep.mubr.f32.mxu0 0.0
    %3452 = vmatmul.mubr.f32.gmra.mrb[0].mxu0 %v1576
    %v3453 = vpop.f32.mrb[0].mxu0
    %v3454 = vadd.f32 %v3069, %v3453
    %v3455 = vpop.f32.mrb[0].mxu0
    %3456 = vmatprep.mubr.f32.mxu0 0.0
    %3457 = vmatmul.mubr.f32.gmra.mrb[0].mxu0 %v1577
    %v3458 = vpop.f32.mrb[0].mxu0
    %v3459 = vadd.f32 %v3074, %v3458
    %v3460 = vpop.f32.mrb[0].mxu0
    %3461 = vmatprep.mubr.f32.mxu0 0.0
    %3462 = vmatmul.mubr.f32.gmra.mrb[0].mxu0 %v1578
    %v3463 = vpop.f32.mrb[0].mxu0
    %v3464 = vadd.f32 %v3079, %v3463
    %v3465 = vpop.f32.mrb[0].mxu0
    %3466 = vmatprep.mubr.f32.mxu0 0.0
    %3467 = vmatmul.mubr.f32.gmra.mrb[0].mxu0 %v1579
    %v3468 = vpop.f32.mrb[0].mxu0
    %v3469 = vadd.f32 %v3084, %v3468
    %v3470 = vpop.f32.mrb[0].mxu0
    %3471 = vmatprep.mubr.f32.mxu0 0.0
    %3472 = vmatmul.mubr.f32.gmra.mrb[0].mxu0 %v1580
    %v3473 = vpop.f32.mrb[0].mxu0
    %v3474 = vadd.f32 %v3089, %v3473
    %v3475 = vpop.f32.mrb[0].mxu0
    %3476 = vmatprep.mubr.f32.mxu0 0.0
    %3477 = vmatmul.mubr.f32.gmra.mrb[0].mxu0 %v1581
    %v3478 = vpop.f32.mrb[0].mxu0
    %v3479 = vadd.f32 %v3094, %v3478
    %v3480 = vpop.f32.mrb[0].mxu0
    %3481 = vmatprep.mubr.f32.mxu0 0.0
    %3482 = vmatmul.mubr.f32.gmra.mrb[0].mxu0 %v1582
    %v3483 = vpop.f32.mrb[0].mxu0
    %v3484 = vadd.f32 %v3099, %v3483
    %v3485 = vpop.f32.mrb[0].mxu0
    %3486 = vmatprep.mubr.f32.mxu0 0.0
    %3487 = vmatmul.mubr.f32.gmra.mrb[0].mxu0 %v1583
    %v3488 = vpop.f32.mrb[0].mxu0
    %v3489 = vadd.f32 %v3104, %v3488
    %v3490 = vpop.f32.mrb[0].mxu0
    %3491 = vmatprep.mubr.f32.mxu0 0.0
    %3492 = vmatmul.mubr.f32.gmra.mrb[0].mxu0 %v1584
    %v3493 = vpop.f32.mrb[0].mxu0
    %v3494 = vadd.f32 %v3109, %v3493
    %v3495 = vpop.f32.mrb[0].mxu0
    %3496 = vmatprep.mubr.f32.mxu0 0.0
    %3497 = vmatmul.mubr.f32.gmra.mrb[0].mxu0 %v1585
    %v3498 = vpop.f32.mrb[0].mxu0
    %v3499 = vadd.f32 %v3114, %v3498
    %v3500 = vpop.f32.mrb[0].mxu0
    %3501 = vmatprep.mubr.f32.mxu0 0.0
    %3502 = vmatmul.mubr.f32.gmra.mrb[0].mxu0 %v1586
    %v3503 = vpop.f32.mrb[0].mxu0
    %v3504 = vadd.f32 %v3119, %v3503
    %v3505 = vpop.f32.mrb[0].mxu0
    %3506 = vmatprep.mubr.f32.mxu0 0.0
    %3507 = vmatmul.mubr.f32.gmra.mrb[0].mxu0 %v1587
    %v3508 = vpop.f32.mrb[0].mxu0
    %v3509 = vadd.f32 %v3124, %v3508
    %v3510 = vpop.f32.mrb[0].mxu0
    %3511 = vmatprep.mubr.f32.mxu0 0.0
    %3512 = vmatmul.mubr.f32.gmra.mrb[0].mxu0 %v1588
    %v3513 = vpop.f32.mrb[0].mxu0
    %v3514 = vadd.f32 %v3129, %v3513
    %v3515 = vpop.f32.mrb[0].mxu0
    %3516 = vmatprep.mubr.f32.mxu0 0.0
    %3517 = vmatmul.mubr.f32.gmra.mrb[0].mxu0 %v1589
    %v3518 = vpop.f32.mrb[0].mxu0
    %v3519 = vadd.f32 %v3134, %v3518
    %v3520 = vpop.f32.mrb[0].mxu0
    %3521 = vmatprep.mubr.f32.mxu0 0.0
    %3522 = vmatmul.mubr.f32.gmra.mrb[0].mxu0 %v1590
    %v3523 = vpop.f32.mrb[0].mxu0
    %v3524 = vadd.f32 %v3139, %v3523
    %v3525 = vpop.f32.mrb[0].mxu0
    %3526 = vmatprep.mubr.f32.mxu0 0.0
    %3527 = vmatmul.mubr.f32.gmra.mrb[0].mxu0 %v1591
    %v3528 = vpop.f32.mrb[0].mxu0
    %v3529 = vadd.f32 %v3144, %v3528
    %v3530 = vpop.f32.mrb[0].mxu0
    %3531 = vmatprep.mubr.f32.mxu0 0.0
    %3532 = vmatmul.mubr.f32.gmra.mrb[0].mxu0 %v1592
    %v3533 = vpop.f32.mrb[0].mxu0
    %v3534 = vadd.f32 %v3149, %v3533
    %v3535 = vpop.f32.mrb[0].mxu0
    %3536 = vmatprep.mubr.f32.mxu0 0.0
    %3537 = vmatmul.mubr.f32.gmra.mrb[0].mxu0 %v1593
    %v3538 = vpop.f32.mrb[0].mxu0
    %v3539 = vadd.f32 %v3154, %v3538
    %v3540 = vpop.f32.mrb[0].mxu0
    %3541 = vmatprep.mubr.f32.mxu0 0.0
    %3542 = vmatmul.mubr.f32.gmra.mrb[0].mxu0 %v1594
    %v3543 = vpop.f32.mrb[0].mxu0
    %v3544 = vadd.f32 %v3159, %v3543
    %v3545 = vpop.f32.mrb[0].mxu0
    %3546 = vmatprep.mubr.f32.mxu0 0.0
    %3547 = vmatmul.mubr.f32.gmra.mrb[0].mxu0 %v1595
    %v3548 = vpop.f32.mrb[0].mxu0
    %v3549 = vadd.f32 %v3164, %v3548
    %v3550 = vpop.f32.mrb[0].mxu0
    %3551 = vmatprep.mubr.f32.mxu0 0.0
    %3552 = vmatmul.mubr.f32.gmra.mrb[0].mxu0 %v1596
    %v3553 = vpop.f32.mrb[0].mxu0
    %v3554 = vadd.f32 %v3169, %v3553
    %v3555 = vpop.f32.mrb[0].mxu0
    %3556 = vmatprep.mubr.f32.mxu0 0.0
    %3557 = vmatmul.mubr.f32.gmra.mrb[0].mxu0 %v1597
    %v3558 = vpop.f32.mrb[0].mxu0
    %v3559 = vadd.f32 %v3174, %v3558
    %v3560 = vpop.f32.mrb[0].mxu0
    %3561 = vmatprep.mubr.f32.mxu0 0.0
    %3562 = vmatmul.mubr.f32.gmra.mrb[0].mxu0 %v1598
    %v3563 = vpop.f32.mrb[0].mxu0
    %v3564 = vadd.f32 %v3179, %v3563
    %v3565 = vpop.f32.mrb[0].mxu0
    %3566 = vmatprep.mubr.f32.mxu0 0.0
    %3567 = vmatmul.mubr.f32.gmra.mrb[0].mxu0 %v1599
    %v3568 = vpop.f32.mrb[0].mxu0
    %v3569 = vadd.f32 %v3184, %v3568
    %v3570 = vpop.f32.mrb[0].mxu0
    %3571 = vmatprep.mubr.f32.mxu0 0.0
    %3572 = vmatmul.mubr.f32.gmra.mrb[0].mxu0 %v1600
    %v3573 = vpop.f32.mrb[0].mxu0
    %v3574 = vadd.f32 %v3189, %v3573
    %v3575 = vpop.f32.mrb[0].mxu0
    %3576 = vmatprep.mubr.f32.mxu0 0.0
    %3577 = vmatmul.mubr.f32.gmra.mrb[0].mxu0 %v1601
    %v3578 = vpop.f32.mrb[0].mxu0
    %v3579 = vadd.f32 %v3194, %v3578
    %v3580 = vpop.f32.mrb[0].mxu0
    %3581 = vmatprep.mubr.f32.mxu0 0.0
    %3582 = vmatmul.mubr.f32.gmra.mrb[0].mxu0 %v1602
    %v3583 = vpop.f32.mrb[0].mxu0
    %v3584 = vadd.f32 %v3199, %v3583
    %v3585 = vpop.f32.mrb[0].mxu0
    %3586 = vmatprep.mubr.f32.mxu0 0.0
    %3587 = vmatmul.mubr.f32.gmra.mrb[0].mxu0 %v1603
    %v3588 = vpop.f32.mrb[0].mxu0
    %v3589 = vadd.f32 %v3204, %v3588
    %v3590 = vpop.f32.mrb[0].mxu0
    %3591 = vmatprep.mubr.f32.mxu0 0.0
    %3592 = vmatmul.mubr.f32.gmra.mrb[0].mxu0 %v1604
    %v3593 = vpop.f32.mrb[0].mxu0
    %v3594 = vadd.f32 %v3209, %v3593
    %v3595 = vpop.f32.mrb[0].mxu0
    %3596 = vmatprep.mubr.f32.mxu0 0.0
    %3597 = vmatmul.mubr.f32.gmra.mrb[0].mxu0 %v1605
    %v3598 = vpop.f32.mrb[0].mxu0
    %v3599 = vadd.f32 %v3214, %v3598
    %v3600 = vpop.f32.mrb[0].mxu0
    %3601 = vmatprep.mubr.f32.mxu0 0.0
    %3602 = vmatmul.mubr.f32.gmra.mrb[0].mxu0 %v1606
    %v3603 = vpop.f32.mrb[0].mxu0
    %v3604 = vadd.f32 %v3219, %v3603
    %v3605 = vpop.f32.mrb[0].mxu0
    %3606 = vmatprep.mubr.f32.mxu0 0.0
    %3607 = vmatmul.mubr.f32.gmra.mrb[0].mxu0 %v1607
    %v3608 = vpop.f32.mrb[0].mxu0
    %v3609 = vadd.f32 %v3224, %v3608
    %v3610 = vpop.f32.mrb[0].mxu0
    %3611 = vmatprep.mubr.f32.mxu0 0.0
    %3612 = vmatmul.mubr.f32.gmra.mrb[0].mxu0 %v1608
    %v3613 = vpop.f32.mrb[0].mxu0
    %v3614 = vadd.f32 %v3229, %v3613
    %v3615 = vpop.f32.mrb[0].mxu0
    %3616 = vmatprep.mubr.f32.mxu0 0.0
    %3617 = vmatmul.mubr.f32.gmra.mrb[0].mxu0 %v1609
    %v3618 = vpop.f32.mrb[0].mxu0
    %v3619 = vadd.f32 %v3234, %v3618
    %v3620 = vpop.f32.mrb[0].mxu0
    %3621 = vmatprep.mubr.f32.mxu0 0.0
    %3622 = vmatmul.mubr.f32.gmra.mrb[0].mxu0 %v1610
    %v3623 = vpop.f32.mrb[0].mxu0
    %v3624 = vadd.f32 %v3239, %v3623
    %v3625 = vpop.f32.mrb[0].mxu0
    %3626 = vmatprep.mubr.f32.mxu0 0.0
    %3627 = vmatmul.mubr.f32.gmra.mrb[0].mxu0 %v1611
    %v3628 = vpop.f32.mrb[0].mxu0
    %v3629 = vadd.f32 %v3244, %v3628
    %v3630 = vpop.f32.mrb[0].mxu0
    %3631 = vmatprep.mubr.f32.mxu0 0.0
    %3632 = vmatmul.mubr.f32.gmra.mrb[0].mxu0 %v1612
    %v3633 = vpop.f32.mrb[0].mxu0
    %v3634 = vadd.f32 %v3249, %v3633
    %v3635 = vpop.f32.mrb[0].mxu0
    %3636 = vmatprep.mubr.f32.mxu0 0.0
    %3637 = vmatmul.mubr.f32.gmra.mrb[0].mxu0 %v1613
    %v3638 = vpop.f32.mrb[0].mxu0
    %v3639 = vadd.f32 %v3254, %v3638
    %v3640 = vpop.f32.mrb[0].mxu0
    %3641 = vmatprep.mubr.f32.mxu0 0.0
    %3642 = vmatmul.mubr.f32.gmra.mrb[0].mxu0 %v1614
    %v3643 = vpop.f32.mrb[0].mxu0
    %v3644 = vadd.f32 %v3259, %v3643
    %v3645 = vpop.f32.mrb[0].mxu0
    %3646 = vmatprep.mubr.f32.mxu0 0.0
    %3647 = vmatmul.mubr.f32.gmra.mrb[0].mxu0 %v1615
    %v3648 = vpop.f32.mrb[0].mxu0
    %v3649 = vadd.f32 %v3264, %v3648
    %v3650 = vpop.f32.mrb[0].mxu0
    %3651 = vmatprep.mubr.f32.mxu0 0.0
    %3652 = vmatmul.mubr.f32.gmra.mrb[0].mxu0 %v1616
    %v3653 = vpop.f32.mrb[0].mxu0
    %v3654 = vadd.f32 %v3269, %v3653
    %v3655 = vpop.f32.mrb[0].mxu0
    %3656 = vmatprep.mubr.f32.mxu0 0.0
    %3657 = vmatmul.mubr.f32.gmra.mrb[0].mxu0 %v1617
    %v3658 = vpop.f32.mrb[0].mxu0
    %v3659 = vadd.f32 %v3274, %v3658
    %v3660 = vpop.f32.mrb[0].mxu0
    %3661 = vmatprep.mubr.f32.mxu0 0.0
    %3662 = vmatmul.mubr.f32.gmra.mrb[0].mxu0 %v1618
    %v3663 = vpop.f32.mrb[0].mxu0
    %v3664 = vadd.f32 %v3279, %v3663
    %v3665 = vpop.f32.mrb[0].mxu0
    %3666 = vmatprep.mubr.f32.mxu0 0.0
    %3667 = vmatmul.mubr.f32.gmra.mrb[0].mxu0 %v1619
    %v3668 = vpop.f32.mrb[0].mxu0
    %v3669 = vadd.f32 %v3284, %v3668
    %v3670 = vpop.f32.mrb[0].mxu0
    %3671 = vmatprep.mubr.f32.mxu0 0.0
    %3672 = vmatmul.mubr.f32.gmra.mrb[0].mxu0 %v1620
    %v3673 = vpop.f32.mrb[0].mxu0
    %v3674 = vadd.f32 %v3289, %v3673
    %v3675 = vpop.f32.mrb[0].mxu0
    %3676 = vmatprep.mubr.f32.mxu0 0.0
    %3677 = vmatmul.mubr.f32.gmra.mrb[0].mxu0 %v1621
    %v3678 = vpop.f32.mrb[0].mxu0
    %v3679 = vadd.f32 %v3294, %v3678
    %v3680 = vpop.f32.mrb[0].mxu0
    %3681 = vmatprep.mubr.f32.mxu0 0.0
    %3682 = vmatmul.mubr.f32.gmra.mrb[0].mxu0 %v1622
    %v3683 = vpop.f32.mrb[0].mxu0
    %v3684 = vadd.f32 %v3299, %v3683
    %v3685 = vpop.f32.mrb[0].mxu0
    %3686 = vmatprep.mubr.f32.mxu0 0.0
    %3687 = vmatmul.mubr.f32.gmra.mrb[0].mxu0 %v1623
    %v3688 = vpop.f32.mrb[0].mxu0
    %v3689 = vadd.f32 %v3304, %v3688
    %v3690 = vpop.f32.mrb[0].mxu0
    %3691 = vmatprep.mubr.f32.mxu0 0.0
    %3692 = vmatmul.mubr.f32.gmra.mrb[0].mxu0 %v1624
    %v3693 = vpop.f32.mrb[0].mxu0
    %v3694 = vadd.f32 %v3309, %v3693
    %v3695 = vpop.f32.mrb[0].mxu0
    %3696 = vmatprep.mubr.f32.mxu0 0.0
    %3697 = vmatmul.mubr.f32.gmra.mrb[0].mxu0 %v1625
    %v3698 = vpop.f32.mrb[0].mxu0
    %v3699 = vadd.f32 %v3314, %v3698
    %v3700 = vpop.f32.mrb[0].mxu0
    %3701 = vdwg.mxu0
    %v3702 = vmax.f32 %v3384, 0.0
    %v3703 = vmax.f32 %v3389, 0.0
    %v3704 = vmax.f32 %v3394, 0.0
    %v3705 = vmax.f32 %v3399, 0.0
    %v3706 = vmax.f32 %v3404, 0.0
    %v3707 = vmax.f32 %v3409, 0.0
    %v3708 = vmax.f32 %v3414, 0.0
    %v3709 = vmax.f32 %v3419, 0.0
    %v3710 = vmax.f32 %v3424, 0.0
    %v3711 = vmax.f32 %v3429, 0.0
    %v3712 = vmax.f32 %v3434, 0.0
    %v3713 = vmax.f32 %v3439, 0.0
    %v3714 = vmax.f32 %v3444, 0.0
    %v3715 = vmax.f32 %v3449, 0.0
    %v3716 = vmax.f32 %v3454, 0.0
    %v3717 = vmax.f32 %v3459, 0.0
    %v3718 = vmax.f32 %v3464, 0.0
    %v3719 = vmax.f32 %v3469, 0.0
    %v3720 = vmax.f32 %v3474, 0.0
    %v3721 = vmax.f32 %v3479, 0.0
    %v3722 = vmax.f32 %v3484, 0.0
    %v3723 = vmax.f32 %v3489, 0.0
    %v3724 = vmax.f32 %v3494, 0.0
    %v3725 = vmax.f32 %v3499, 0.0
    %v3726 = vmax.f32 %v3504, 0.0
    %v3727 = vmax.f32 %v3509, 0.0
    %v3728 = vmax.f32 %v3514, 0.0
    %v3729 = vmax.f32 %v3519, 0.0
    %v3730 = vmax.f32 %v3524, 0.0
    %v3731 = vmax.f32 %v3529, 0.0
    %v3732 = vmax.f32 %v3534, 0.0
    %v3733 = vmax.f32 %v3539, 0.0
    %v3734 = vmax.f32 %v3544, 0.0
    %v3735 = vmax.f32 %v3549, 0.0
    %v3736 = vmax.f32 %v3554, 0.0
    %v3737 = vmax.f32 %v3559, 0.0
    %v3738 = vmax.f32 %v3564, 0.0
    %v3739 = vmax.f32 %v3569, 0.0
    %v3740 = vmax.f32 %v3574, 0.0
    %v3741 = vmax.f32 %v3579, 0.0
    %v3742 = vmax.f32 %v3584, 0.0
    %v3743 = vmax.f32 %v3589, 0.0
    %v3744 = vmax.f32 %v3594, 0.0
    %v3745 = vmax.f32 %v3599, 0.0
    %v3746 = vmax.f32 %v3604, 0.0
    %v3747 = vmax.f32 %v3609, 0.0
    %v3748 = vmax.f32 %v3614, 0.0
    %v3749 = vmax.f32 %v3619, 0.0
    %v3750 = vmax.f32 %v3624, 0.0
    %v3751 = vmax.f32 %v3629, 0.0
    %v3752 = vmax.f32 %v3634, 0.0
    %v3753 = vmax.f32 %v3639, 0.0
    %v3754 = vmax.f32 %v3644, 0.0
    %v3755 = vmax.f32 %v3649, 0.0
    %v3756 = vmax.f32 %v3654, 0.0
    %v3757 = vmax.f32 %v3659, 0.0
    %v3758 = vmax.f32 %v3664, 0.0
    %v3759 = vmax.f32 %v3669, 0.0
    %v3760 = vmax.f32 %v3674, 0.0
    %v3761 = vmax.f32 %v3679, 0.0
    %v3762 = vmax.f32 %v3684, 0.0
    %v3763 = vmax.f32 %v3689, 0.0
    %v3764 = vmax.f32 %v3694, 0.0
    %v3765 = vmax.f32 %v3699, 0.0
    %v3766 = vld [vmem:[#allocation9] sm:$0xff]
    %v3767 = vld [vmem:[#allocation9 + $0x8] sm:$0xff]
    %v3768 = vld [vmem:[#allocation9 + $0x10] sm:$0xff]
    %v3769 = vld [vmem:[#allocation9 + $0x18] sm:$0xff]
    %v3770 = vld [vmem:[#allocation9 + $0x20] sm:$0xff]
    %v3771 = vld [vmem:[#allocation9 + $0x28] sm:$0xff]
    %v3772 = vld [vmem:[#allocation9 + $0x30] sm:$0xff]
    %v3773 = vld [vmem:[#allocation9 + $0x38] sm:$0xff]
    %v3774 = vld [vmem:[#allocation9 + $0x40] sm:$0xff]
    %v3775 = vld [vmem:[#allocation9 + $0x48] sm:$0xff]
    %v3776 = vld [vmem:[#allocation9 + $0x50] sm:$0xff]
    %v3777 = vld [vmem:[#allocation9 + $0x58] sm:$0xff]
    %v3778 = vld [vmem:[#allocation9 + $0x60] sm:$0xff]
    %v3779 = vld [vmem:[#allocation9 + $0x68] sm:$0xff]
    %v3780 = vld [vmem:[#allocation9 + $0x70] sm:$0xff]
    %v3781 = vld [vmem:[#allocation9 + $0x78] sm:$0xff]
    %v3782 = vld [vmem:[#allocation9 + $0x80] sm:$0xff]
    %v3783 = vld [vmem:[#allocation9 + $0x88] sm:$0xff]
    %v3784 = vld [vmem:[#allocation9 + $0x90] sm:$0xff]
    %v3785 = vld [vmem:[#allocation9 + $0x98] sm:$0xff]
    %v3786 = vld [vmem:[#allocation9 + $0xa0] sm:$0xff]
    %v3787 = vld [vmem:[#allocation9 + $0xa8] sm:$0xff]
    %v3788 = vld [vmem:[#allocation9 + $0xb0] sm:$0xff]
    %v3789 = vld [vmem:[#allocation9 + $0xb8] sm:$0xff]
    %v3790 = vld [vmem:[#allocation9 + $0xc0] sm:$0xff]
    %v3791 = vld [vmem:[#allocation9 + $0xc8] sm:$0xff]
    %v3792 = vld [vmem:[#allocation9 + $0xd0] sm:$0xff]
    %v3793 = vld [vmem:[#allocation9 + $0xd8] sm:$0xff]
    %v3794 = vld [vmem:[#allocation9 + $0xe0] sm:$0xff]
    %v3795 = vld [vmem:[#allocation9 + $0xe8] sm:$0xff]
    %v3796 = vld [vmem:[#allocation9 + $0xf0] sm:$0xff]
    %v3797 = vld [vmem:[#allocation9 + $0xf8] sm:$0xff]
    %v3798 = vld [vmem:[%s6] sm:$0x1]
    %v3800 = vlaneseq
    %v3801 = vshrl.u32 %v3800, 7
    %v3802 = vsub.s32 0, %v3801
    %v3803 = vrot.slane %v3798, %v3802
    %3805 = vmatprep.subr.mxu0 0.0
    %3806 = vmatpush1.msra.mxu0 %v3766
    %3807 = vmatprep.subr.mxu0 0.0
    %3808 = vmatpush1.msra.mxu0 %v3767
    %3809 = vmatprep.subr.mxu0 0.0
    %3810 = vmatpush1.msra.mxu0 %v3768
    %3811 = vmatprep.subr.mxu0 0.0
    %3812 = vmatpush1.msra.mxu0 %v3769
    %3813 = vmatprep.subr.mxu0 0.0
    %3814 = vmatpush1.msra.mxu0 %v3770
    %3815 = vmatprep.subr.mxu0 0.0
    %3816 = vmatpush1.msra.mxu0 %v3771
    %3817 = vmatprep.subr.mxu0 0.0
    %3818 = vmatpush1.msra.mxu0 %v3772
    %3819 = vmatprep.subr.mxu0 0.0
    %3820 = vmatpush1.msra.mxu0 %v3773
    %3821 = vmatprep.subr.mxu0 0.0
    %3822 = vmatpush1.msra.mxu0 %v3774
    %3823 = vmatprep.subr.mxu0 0.0
    %3824 = vmatpush1.msra.mxu0 %v3775
    %3825 = vmatprep.subr.mxu0 0.0
    %3826 = vmatpush1.msra.mxu0 %v3776
    %3827 = vmatprep.subr.mxu0 0.0
    %3828 = vmatpush1.msra.mxu0 %v3777
    %3829 = vmatprep.subr.mxu0 0.0
    %3830 = vmatpush1.msra.mxu0 %v3778
    %3831 = vmatprep.subr.mxu0 0.0
    %3832 = vmatpush1.msra.mxu0 %v3779
    %3833 = vmatprep.subr.mxu0 0.0
    %3834 = vmatpush1.msra.mxu0 %v3780
    %3835 = vmatprep.subr.mxu0 0.0
    %3836 = vmatpush1.msra.mxu0 %v3781
    %3837 = vmatprep.subr.mxu0 0.0
    %3838 = vmatpush1.msra.mxu0 %v3782
    %3839 = vmatprep.subr.mxu0 0.0
    %3840 = vmatpush1.msra.mxu0 %v3783
    %3841 = vmatprep.subr.mxu0 0.0
    %3842 = vmatpush1.msra.mxu0 %v3784
    %3843 = vmatprep.subr.mxu0 0.0
    %3844 = vmatpush1.msra.mxu0 %v3785
    %3845 = vmatprep.subr.mxu0 0.0
    %3846 = vmatpush1.msra.mxu0 %v3786
    %3847 = vmatprep.subr.mxu0 0.0
    %3848 = vmatpush1.msra.mxu0 %v3787
    %3849 = vmatprep.subr.mxu0 0.0
    %3850 = vmatpush1.msra.mxu0 %v3788
    %3851 = vmatprep.subr.mxu0 0.0
    %3852 = vmatpush1.msra.mxu0 %v3789
    %3853 = vmatprep.subr.mxu0 0.0
    %3854 = vmatpush1.msra.mxu0 %v3790
    %3855 = vmatprep.subr.mxu0 0.0
    %3856 = vmatpush1.msra.mxu0 %v3791
    %3857 = vmatprep.subr.mxu0 0.0
    %3858 = vmatpush1.msra.mxu0 %v3792
    %3859 = vmatprep.subr.mxu0 0.0
    %3860 = vmatpush1.msra.mxu0 %v3793
    %3861 = vmatprep.subr.mxu0 0.0
    %3862 = vmatpush1.msra.mxu0 %v3794
    %3863 = vmatprep.subr.mxu0 0.0
    %3864 = vmatpush1.msra.mxu0 %v3795
    %3865 = vmatprep.subr.mxu0 0.0
    %3866 = vmatpush1.msra.mxu0 %v3796
    %3867 = vmatprep.subr.mxu0 0.0
    %3868 = vmatpush1.msra.mxu0 %v3797
    %3869 = vmatprep.mubr.f32.mxu0 %v82
    %3870 = vmatmul.mubr.f32.gmra.mrb[0].mxu0 %v3702
    %v3871 = vpop.f32.mrb[0].mxu0
    %v3872 = vadd.f32 %v3803, %v3871
    %v3873 = vpop.f32.mrb[0].mxu0
    %3874 = vmatprep.mubr.f32.mxu0 %v83
    %3875 = vmatmul.mubr.f32.gmra.mrb[0].mxu0 %v3703
    %v3876 = vpop.f32.mrb[0].mxu0
    %v3877 = vadd.f32 %v3803, %v3876
    %v3878 = vpop.f32.mrb[0].mxu0
    %3879 = vmatprep.mubr.f32.mxu0 %v84
    %3880 = vmatmul.mubr.f32.gmra.mrb[0].mxu0 %v3704
    %v3881 = vpop.f32.mrb[0].mxu0
    %v3882 = vadd.f32 %v3803, %v3881
    %v3883 = vpop.f32.mrb[0].mxu0
    %3884 = vmatprep.mubr.f32.mxu0 %v85
    %3885 = vmatmul.mubr.f32.gmra.mrb[0].mxu0 %v3705
    %v3886 = vpop.f32.mrb[0].mxu0
    %v3887 = vadd.f32 %v3803, %v3886
    %v3888 = vpop.f32.mrb[0].mxu0
    %3889 = vmatprep.mubr.f32.mxu0 %v86
    %3890 = vmatmul.mubr.f32.gmra.mrb[0].mxu0 %v3706
    %v3891 = vpop.f32.mrb[0].mxu0
    %v3892 = vadd.f32 %v3803, %v3891
    %v3893 = vpop.f32.mrb[0].mxu0
    %3894 = vmatprep.mubr.f32.mxu0 %v87
    %3895 = vmatmul.mubr.f32.gmra.mrb[0].mxu0 %v3707
    %v3896 = vpop.f32.mrb[0].mxu0
    %v3897 = vadd.f32 %v3803, %v3896
    %v3898 = vpop.f32.mrb[0].mxu0
    %3899 = vmatprep.mubr.f32.mxu0 %v88
    %3900 = vmatmul.mubr.f32.gmra.mrb[0].mxu0 %v3708
    %v3901 = vpop.f32.mrb[0].mxu0
    %v3902 = vadd.f32 %v3803, %v3901
    %v3903 = vpop.f32.mrb[0].mxu0
    %3904 = vmatprep.mubr.f32.mxu0 %v89
    %3905 = vmatmul.mubr.f32.gmra.mrb[0].mxu0 %v3709
    %v3906 = vpop.f32.mrb[0].mxu0
    %v3907 = vadd.f32 %v3803, %v3906
    %v3908 = vpop.f32.mrb[0].mxu0
    %3909 = vmatprep.mubr.f32.mxu0 %v90
    %3910 = vmatmul.mubr.f32.gmra.mrb[0].mxu0 %v3710
    %v3911 = vpop.f32.mrb[0].mxu0
    %v3912 = vadd.f32 %v3803, %v3911
    %v3913 = vpop.f32.mrb[0].mxu0
    %3914 = vmatprep.mubr.f32.mxu0 %v91
    %3915 = vmatmul.mubr.f32.gmra.mrb[0].mxu0 %v3711
    %v3916 = vpop.f32.mrb[0].mxu0
    %v3917 = vadd.f32 %v3803, %v3916
    %v3918 = vpop.f32.mrb[0].mxu0
    %3919 = vmatprep.mubr.f32.mxu0 %v92
    %3920 = vmatmul.mubr.f32.gmra.mrb[0].mxu0 %v3712
    %v3921 = vpop.f32.mrb[0].mxu0
    %v3922 = vadd.f32 %v3803, %v3921
    %v3923 = vpop.f32.mrb[0].mxu0
    %3924 = vmatprep.mubr.f32.mxu0 %v93
    %3925 = vmatmul.mubr.f32.gmra.mrb[0].mxu0 %v3713
    %v3926 = vpop.f32.mrb[0].mxu0
    %v3927 = vadd.f32 %v3803, %v3926
    %v3928 = vpop.f32.mrb[0].mxu0
    %3929 = vmatprep.mubr.f32.mxu0 %v94
    %3930 = vmatmul.mubr.f32.gmra.mrb[0].mxu0 %v3714
    %v3931 = vpop.f32.mrb[0].mxu0
    %v3932 = vadd.f32 %v3803, %v3931
    %v3933 = vpop.f32.mrb[0].mxu0
    %3934 = vmatprep.mubr.f32.mxu0 %v95
    %3935 = vmatmul.mubr.f32.gmra.mrb[0].mxu0 %v3715
    %v3936 = vpop.f32.mrb[0].mxu0
    %v3937 = vadd.f32 %v3803, %v3936
    %v3938 = vpop.f32.mrb[0].mxu0
    %3939 = vmatprep.mubr.f32.mxu0 %v96
    %3940 = vmatmul.mubr.f32.gmra.mrb[0].mxu0 %v3716
    %v3941 = vpop.f32.mrb[0].mxu0
    %v3942 = vadd.f32 %v3803, %v3941
    %v3943 = vpop.f32.mrb[0].mxu0
    %3944 = vmatprep.mubr.f32.mxu0 %v97
    %3945 = vmatmul.mubr.f32.gmra.mrb[0].mxu0 %v3717
    %v3946 = vpop.f32.mrb[0].mxu0
    %v3947 = vadd.f32 %v3803, %v3946
    %v3948 = vpop.f32.mrb[0].mxu0
    %3949 = vmatprep.mubr.f32.mxu0 %v98
    %3950 = vmatmul.mubr.f32.gmra.mrb[0].mxu0 %v3718
    %v3951 = vpop.f32.mrb[0].mxu0
    %v3952 = vadd.f32 %v3803, %v3951
    %v3953 = vpop.f32.mrb[0].mxu0
    %3954 = vmatprep.mubr.f32.mxu0 %v99
    %3955 = vmatmul.mubr.f32.gmra.mrb[0].mxu0 %v3719
    %v3956 = vpop.f32.mrb[0].mxu0
    %v3957 = vadd.f32 %v3803, %v3956
    %v3958 = vpop.f32.mrb[0].mxu0
    %3959 = vmatprep.mubr.f32.mxu0 %v100
    %3960 = vmatmul.mubr.f32.gmra.mrb[0].mxu0 %v3720
    %v3961 = vpop.f32.mrb[0].mxu0
    %v3962 = vadd.f32 %v3803, %v3961
    %v3963 = vpop.f32.mrb[0].mxu0
    %3964 = vmatprep.mubr.f32.mxu0 %v101
    %3965 = vmatmul.mubr.f32.gmra.mrb[0].mxu0 %v3721
    %v3966 = vpop.f32.mrb[0].mxu0
    %v3967 = vadd.f32 %v3803, %v3966
    %v3968 = vpop.f32.mrb[0].mxu0
    %3969 = vmatprep.mubr.f32.mxu0 %v102
    %3970 = vmatmul.mubr.f32.gmra.mrb[0].mxu0 %v3722
    %v3971 = vpop.f32.mrb[0].mxu0
    %v3972 = vadd.f32 %v3803, %v3971
    %v3973 = vpop.f32.mrb[0].mxu0
    %3974 = vmatprep.mubr.f32.mxu0 %v103
    %3975 = vmatmul.mubr.f32.gmra.mrb[0].mxu0 %v3723
    %v3976 = vpop.f32.mrb[0].mxu0
    %v3977 = vadd.f32 %v3803, %v3976
    %v3978 = vpop.f32.mrb[0].mxu0
    %3979 = vmatprep.mubr.f32.mxu0 %v104
    %3980 = vmatmul.mubr.f32.gmra.mrb[0].mxu0 %v3724
    %v3981 = vpop.f32.mrb[0].mxu0
    %v3982 = vadd.f32 %v3803, %v3981
    %v3983 = vpop.f32.mrb[0].mxu0
    %3984 = vmatprep.mubr.f32.mxu0 %v105
    %3985 = vmatmul.mubr.f32.gmra.mrb[0].mxu0 %v3725
    %v3986 = vpop.f32.mrb[0].mxu0
    %v3987 = vadd.f32 %v3803, %v3986
    %v3988 = vpop.f32.mrb[0].mxu0
    %3989 = vmatprep.mubr.f32.mxu0 %v106
    %3990 = vmatmul.mubr.f32.gmra.mrb[0].mxu0 %v3726
    %v3991 = vpop.f32.mrb[0].mxu0
    %v3992 = vadd.f32 %v3803, %v3991
    %v3993 = vpop.f32.mrb[0].mxu0
    %3994 = vmatprep.mubr.f32.mxu0 %v107
    %3995 = vmatmul.mubr.f32.gmra.mrb[0].mxu0 %v3727
    %v3996 = vpop.f32.mrb[0].mxu0
    %v3997 = vadd.f32 %v3803, %v3996
    %v3998 = vpop.f32.mrb[0].mxu0
    %3999 = vmatprep.mubr.f32.mxu0 %v108
    %4000 = vmatmul.mubr.f32.gmra.mrb[0].mxu0 %v3728
    %v4001 = vpop.f32.mrb[0].mxu0
    %v4002 = vadd.f32 %v3803, %v4001
    %v4003 = vpop.f32.mrb[0].mxu0
    %4004 = vmatprep.mubr.f32.mxu0 %v109
    %4005 = vmatmul.mubr.f32.gmra.mrb[0].mxu0 %v3729
    %v4006 = vpop.f32.mrb[0].mxu0
    %v4007 = vadd.f32 %v3803, %v4006
    %v4008 = vpop.f32.mrb[0].mxu0
    %4009 = vmatprep.mubr.f32.mxu0 %v110
    %4010 = vmatmul.mubr.f32.gmra.mrb[0].mxu0 %v3730
    %v4011 = vpop.f32.mrb[0].mxu0
    %v4012 = vadd.f32 %v3803, %v4011
    %v4013 = vpop.f32.mrb[0].mxu0
    %4014 = vmatprep.mubr.f32.mxu0 %v111
    %4015 = vmatmul.mubr.f32.gmra.mrb[0].mxu0 %v3731
    %v4016 = vpop.f32.mrb[0].mxu0
    %v4017 = vadd.f32 %v3803, %v4016
    %v4018 = vpop.f32.mrb[0].mxu0
    %4019 = vmatprep.mubr.f32.mxu0 %v112
    %4020 = vmatmul.mubr.f32.gmra.mrb[0].mxu0 %v3732
    %v4021 = vpop.f32.mrb[0].mxu0
    %v4022 = vadd.f32 %v3803, %v4021
    %v4023 = vpop.f32.mrb[0].mxu0
    %4024 = vmatprep.mubr.f32.mxu0 %v113
    %4025 = vmatmul.mubr.f32.gmra.mrb[0].mxu0 %v3733
    %v4026 = vpop.f32.mrb[0].mxu0
    %v4027 = vadd.f32 %v3803, %v4026
    %v4028 = vpop.f32.mrb[0].mxu0
    %4029 = vmatprep.mubr.f32.mxu0 %v114
    %4030 = vmatmul.mubr.f32.gmra.mrb[0].mxu0 %v3734
    %v4031 = vpop.f32.mrb[0].mxu0
    %v4032 = vadd.f32 %v3803, %v4031
    %v4033 = vpop.f32.mrb[0].mxu0
    %4034 = vmatprep.mubr.f32.mxu0 %v115
    %4035 = vmatmul.mubr.f32.gmra.mrb[0].mxu0 %v3735
    %v4036 = vpop.f32.mrb[0].mxu0
    %v4037 = vadd.f32 %v3803, %v4036
    %v4038 = vpop.f32.mrb[0].mxu0
    %4039 = vmatprep.mubr.f32.mxu0 %v116
    %4040 = vmatmul.mubr.f32.gmra.mrb[0].mxu0 %v3736
    %v4041 = vpop.f32.mrb[0].mxu0
    %v4042 = vadd.f32 %v3803, %v4041
    %v4043 = vpop.f32.mrb[0].mxu0
    %4044 = vmatprep.mubr.f32.mxu0 %v117
    %4045 = vmatmul.mubr.f32.gmra.mrb[0].mxu0 %v3737
    %v4046 = vpop.f32.mrb[0].mxu0
    %v4047 = vadd.f32 %v3803, %v4046
    %v4048 = vpop.f32.mrb[0].mxu0
    %4049 = vmatprep.mubr.f32.mxu0 %v118
    %4050 = vmatmul.mubr.f32.gmra.mrb[0].mxu0 %v3738
    %v4051 = vpop.f32.mrb[0].mxu0
    %v4052 = vadd.f32 %v3803, %v4051
    %v4053 = vpop.f32.mrb[0].mxu0
    %4054 = vmatprep.mubr.f32.mxu0 %v119
    %4055 = vmatmul.mubr.f32.gmra.mrb[0].mxu0 %v3739
    %v4056 = vpop.f32.mrb[0].mxu0
    %v4057 = vadd.f32 %v3803, %v4056
    %v4058 = vpop.f32.mrb[0].mxu0
    %4059 = vmatprep.mubr.f32.mxu0 %v120
    %4060 = vmatmul.mubr.f32.gmra.mrb[0].mxu0 %v3740
    %v4061 = vpop.f32.mrb[0].mxu0
    %v4062 = vadd.f32 %v3803, %v4061
    %v4063 = vpop.f32.mrb[0].mxu0
    %4064 = vmatprep.mubr.f32.mxu0 %v121
    %4065 = vmatmul.mubr.f32.gmra.mrb[0].mxu0 %v3741
    %v4066 = vpop.f32.mrb[0].mxu0
    %v4067 = vadd.f32 %v3803, %v4066
    %v4068 = vpop.f32.mrb[0].mxu0
    %4069 = vmatprep.mubr.f32.mxu0 %v122
    %4070 = vmatmul.mubr.f32.gmra.mrb[0].mxu0 %v3742
    %v4071 = vpop.f32.mrb[0].mxu0
    %v4072 = vadd.f32 %v3803, %v4071
    %v4073 = vpop.f32.mrb[0].mxu0
    %4074 = vmatprep.mubr.f32.mxu0 %v123
    %4075 = vmatmul.mubr.f32.gmra.mrb[0].mxu0 %v3743
    %v4076 = vpop.f32.mrb[0].mxu0
    %v4077 = vadd.f32 %v3803, %v4076
    %v4078 = vpop.f32.mrb[0].mxu0
    %4079 = vmatprep.mubr.f32.mxu0 %v124
    %4080 = vmatmul.mubr.f32.gmra.mrb[0].mxu0 %v3744
    %v4081 = vpop.f32.mrb[0].mxu0
    %v4082 = vadd.f32 %v3803, %v4081
    %v4083 = vpop.f32.mrb[0].mxu0
    %4084 = vmatprep.mubr.f32.mxu0 %v125
    %4085 = vmatmul.mubr.f32.gmra.mrb[0].mxu0 %v3745
    %v4086 = vpop.f32.mrb[0].mxu0
    %v4087 = vadd.f32 %v3803, %v4086
    %v4088 = vpop.f32.mrb[0].mxu0
    %4089 = vmatprep.mubr.f32.mxu0 %v126
    %4090 = vmatmul.mubr.f32.gmra.mrb[0].mxu0 %v3746
    %v4091 = vpop.f32.mrb[0].mxu0
    %v4092 = vadd.f32 %v3803, %v4091
    %v4093 = vpop.f32.mrb[0].mxu0
    %4094 = vmatprep.mubr.f32.mxu0 %v127
    %4095 = vmatmul.mubr.f32.gmra.mrb[0].mxu0 %v3747
    %v4096 = vpop.f32.mrb[0].mxu0
    %v4097 = vadd.f32 %v3803, %v4096
    %v4098 = vpop.f32.mrb[0].mxu0
    %4099 = vmatprep.mubr.f32.mxu0 %v128
    %4100 = vmatmul.mubr.f32.gmra.mrb[0].mxu0 %v3748
    %v4101 = vpop.f32.mrb[0].mxu0
    %v4102 = vadd.f32 %v3803, %v4101
    %v4103 = vpop.f32.mrb[0].mxu0
    %4104 = vmatprep.mubr.f32.mxu0 %v129
    %4105 = vmatmul.mubr.f32.gmra.mrb[0].mxu0 %v3749
    %v4106 = vpop.f32.mrb[0].mxu0
    %v4107 = vadd.f32 %v3803, %v4106
    %v4108 = vpop.f32.mrb[0].mxu0
    %4109 = vmatprep.mubr.f32.mxu0 %v130
    %4110 = vmatmul.mubr.f32.gmra.mrb[0].mxu0 %v3750
    %v4111 = vpop.f32.mrb[0].mxu0
    %v4112 = vadd.f32 %v3803, %v4111
    %v4113 = vpop.f32.mrb[0].mxu0
    %4114 = vmatprep.mubr.f32.mxu0 %v131
    %4115 = vmatmul.mubr.f32.gmra.mrb[0].mxu0 %v3751
    %v4116 = vpop.f32.mrb[0].mxu0
    %v4117 = vadd.f32 %v3803, %v4116
    %v4118 = vpop.f32.mrb[0].mxu0
    %4119 = vmatprep.mubr.f32.mxu0 %v132
    %4120 = vmatmul.mubr.f32.gmra.mrb[0].mxu0 %v3752
    %v4121 = vpop.f32.mrb[0].mxu0
    %v4122 = vadd.f32 %v3803, %v4121
    %v4123 = vpop.f32.mrb[0].mxu0
    %4124 = vmatprep.mubr.f32.mxu0 %v133
    %4125 = vmatmul.mubr.f32.gmra.mrb[0].mxu0 %v3753
    %v4126 = vpop.f32.mrb[0].mxu0
    %v4127 = vadd.f32 %v3803, %v4126
    %v4128 = vpop.f32.mrb[0].mxu0
    %4129 = vmatprep.mubr.f32.mxu0 %v134
    %4130 = vmatmul.mubr.f32.gmra.mrb[0].mxu0 %v3754
    %v4131 = vpop.f32.mrb[0].mxu0
    %v4132 = vadd.f32 %v3803, %v4131
    %v4133 = vpop.f32.mrb[0].mxu0
    %4134 = vmatprep.mubr.f32.mxu0 %v135
    %4135 = vmatmul.mubr.f32.gmra.mrb[0].mxu0 %v3755
    %v4136 = vpop.f32.mrb[0].mxu0
    %v4137 = vadd.f32 %v3803, %v4136
    %v4138 = vpop.f32.mrb[0].mxu0
    %4139 = vmatprep.mubr.f32.mxu0 %v136
    %4140 = vmatmul.mubr.f32.gmra.mrb[0].mxu0 %v3756
    %v4141 = vpop.f32.mrb[0].mxu0
    %v4142 = vadd.f32 %v3803, %v4141
    %v4143 = vpop.f32.mrb[0].mxu0
    %4144 = vmatprep.mubr.f32.mxu0 %v137
    %4145 = vmatmul.mubr.f32.gmra.mrb[0].mxu0 %v3757
    %v4146 = vpop.f32.mrb[0].mxu0
    %v4147 = vadd.f32 %v3803, %v4146
    %v4148 = vpop.f32.mrb[0].mxu0
    %4149 = vmatprep.mubr.f32.mxu0 %v138
    %4150 = vmatmul.mubr.f32.gmra.mrb[0].mxu0 %v3758
    %v4151 = vpop.f32.mrb[0].mxu0
    %v4152 = vadd.f32 %v3803, %v4151
    %v4153 = vpop.f32.mrb[0].mxu0
    %4154 = vmatprep.mubr.f32.mxu0 %v139
    %4155 = vmatmul.mubr.f32.gmra.mrb[0].mxu0 %v3759
    %v4156 = vpop.f32.mrb[0].mxu0
    %v4157 = vadd.f32 %v3803, %v4156
    %v4158 = vpop.f32.mrb[0].mxu0
    %4159 = vmatprep.mubr.f32.mxu0 %v140
    %4160 = vmatmul.mubr.f32.gmra.mrb[0].mxu0 %v3760
    %v4161 = vpop.f32.mrb[0].mxu0
    %v4162 = vadd.f32 %v3803, %v4161
    %v4163 = vpop.f32.mrb[0].mxu0
    %4164 = vmatprep.mubr.f32.mxu0 %v141
    %4165 = vmatmul.mubr.f32.gmra.mrb[0].mxu0 %v3761
    %v4166 = vpop.f32.mrb[0].mxu0
    %v4167 = vadd.f32 %v3803, %v4166
    %v4168 = vpop.f32.mrb[0].mxu0
    %4169 = vmatprep.mubr.f32.mxu0 %v142
    %4170 = vmatmul.mubr.f32.gmra.mrb[0].mxu0 %v3762
    %v4171 = vpop.f32.mrb[0].mxu0
    %v4172 = vadd.f32 %v3803, %v4171
    %v4173 = vpop.f32.mrb[0].mxu0
    %4174 = vmatprep.mubr.f32.mxu0 %v143
    %4175 = vmatmul.mubr.f32.gmra.mrb[0].mxu0 %v3763
    %v4176 = vpop.f32.mrb[0].mxu0
    %v4177 = vadd.f32 %v3803, %v4176
    %v4178 = vpop.f32.mrb[0].mxu0
    %4179 = vmatprep.mubr.f32.mxu0 %v144
    %4180 = vmatmul.mubr.f32.gmra.mrb[0].mxu0 %v3764
    %v4181 = vpop.f32.mrb[0].mxu0
    %v4182 = vadd.f32 %v3803, %v4181
    %v4183 = vpop.f32.mrb[0].mxu0
    %4184 = vmatprep.mubr.f32.mxu0 %v145
    %4185 = vmatmul.mubr.f32.gmra.mrb[0].mxu0 %v3765
    %v4186 = vpop.f32.mrb[0].mxu0
    %v4187 = vadd.f32 %v3803, %v4186
    %v4188 = vpop.f32.mrb[0].mxu0
    %4189 = vdwg.mxu0
    %v4190 = vmax.f32 %v3872, 0.0
    %v4191 = vmax.f32 %v3877, 0.0
    %v4192 = vmax.f32 %v3882, 0.0
    %v4193 = vmax.f32 %v3887, 0.0
    %v4194 = vmax.f32 %v3892, 0.0
    %v4195 = vmax.f32 %v3897, 0.0
    %v4196 = vmax.f32 %v3902, 0.0
    %v4197 = vmax.f32 %v3907, 0.0
    %v4198 = vmax.f32 %v3912, 0.0
    %v4199 = vmax.f32 %v3917, 0.0
    %v4200 = vmax.f32 %v3922, 0.0
    %v4201 = vmax.f32 %v3927, 0.0
    %v4202 = vmax.f32 %v3932, 0.0
    %v4203 = vmax.f32 %v3937, 0.0
    %v4204 = vmax.f32 %v3942, 0.0
    %v4205 = vmax.f32 %v3947, 0.0
    %v4206 = vmax.f32 %v3952, 0.0
    %v4207 = vmax.f32 %v3957, 0.0
    %v4208 = vmax.f32 %v3962, 0.0
    %v4209 = vmax.f32 %v3967, 0.0
    %v4210 = vmax.f32 %v3972, 0.0
    %v4211 = vmax.f32 %v3977, 0.0
    %v4212 = vmax.f32 %v3982, 0.0
    %v4213 = vmax.f32 %v3987, 0.0
    %v4214 = vmax.f32 %v3992, 0.0
    %v4215 = vmax.f32 %v3997, 0.0
    %v4216 = vmax.f32 %v4002, 0.0
    %v4217 = vmax.f32 %v4007, 0.0
    %v4218 = vmax.f32 %v4012, 0.0
    %v4219 = vmax.f32 %v4017, 0.0
    %v4220 = vmax.f32 %v4022, 0.0
    %v4221 = vmax.f32 %v4027, 0.0
    %v4222 = vmax.f32 %v4032, 0.0
    %v4223 = vmax.f32 %v4037, 0.0
    %v4224 = vmax.f32 %v4042, 0.0
    %v4225 = vmax.f32 %v4047, 0.0
    %v4226 = vmax.f32 %v4052, 0.0
    %v4227 = vmax.f32 %v4057, 0.0
    %v4228 = vmax.f32 %v4062, 0.0
    %v4229 = vmax.f32 %v4067, 0.0
    %v4230 = vmax.f32 %v4072, 0.0
    %v4231 = vmax.f32 %v4077, 0.0
    %v4232 = vmax.f32 %v4082, 0.0
    %v4233 = vmax.f32 %v4087, 0.0
    %v4234 = vmax.f32 %v4092, 0.0
    %v4235 = vmax.f32 %v4097, 0.0
    %v4236 = vmax.f32 %v4102, 0.0
    %v4237 = vmax.f32 %v4107, 0.0
    %v4238 = vmax.f32 %v4112, 0.0
    %v4239 = vmax.f32 %v4117, 0.0
    %v4240 = vmax.f32 %v4122, 0.0
    %v4241 = vmax.f32 %v4127, 0.0
    %v4242 = vmax.f32 %v4132, 0.0
    %v4243 = vmax.f32 %v4137, 0.0
    %v4244 = vmax.f32 %v4142, 0.0
    %v4245 = vmax.f32 %v4147, 0.0
    %v4246 = vmax.f32 %v4152, 0.0
    %v4247 = vmax.f32 %v4157, 0.0
    %v4248 = vmax.f32 %v4162, 0.0
    %v4249 = vmax.f32 %v4167, 0.0
    %v4250 = vmax.f32 %v4172, 0.0
    %v4251 = vmax.f32 %v4177, 0.0
    %v4252 = vmax.f32 %v4182, 0.0
    %v4253 = vmax.f32 %v4187, 0.0
    %4254 = vst [vmem:[#allocation11] sm:$0xff] %v4190
    %4255 = vst [vmem:[#allocation11 + $0x8] sm:$0xff] %v4191
    %4256 = vst [vmem:[#allocation11 + $0x10] sm:$0xff] %v4192
    %4257 = vst [vmem:[#allocation11 + $0x18] sm:$0xff] %v4193
    %4258 = vst [vmem:[#allocation11 + $0x20] sm:$0xff] %v4194
    %4259 = vst [vmem:[#allocation11 + $0x28] sm:$0xff] %v4195
    %4260 = vst [vmem:[#allocation11 + $0x30] sm:$0xff] %v4196
    %4261 = vst [vmem:[#allocation11 + $0x38] sm:$0xff] %v4197
    %4262 = vst [vmem:[#allocation11 + $0x40] sm:$0xff] %v4198
    %4263 = vst [vmem:[#allocation11 + $0x48] sm:$0xff] %v4199
    %4264 = vst [vmem:[#allocation11 + $0x50] sm:$0xff] %v4200
    %4265 = vst [vmem:[#allocation11 + $0x58] sm:$0xff] %v4201
    %4266 = vst [vmem:[#allocation11 + $0x60] sm:$0xff] %v4202
    %4267 = vst [vmem:[#allocation11 + $0x68] sm:$0xff] %v4203
    %4268 = vst [vmem:[#allocation11 + $0x70] sm:$0xff] %v4204
    %4269 = vst [vmem:[#allocation11 + $0x78] sm:$0xff] %v4205
    %4270 = vst [vmem:[#allocation11 + $0x80] sm:$0xff] %v4206
    %4271 = vst [vmem:[#allocation11 + $0x88] sm:$0xff] %v4207
    %4272 = vst [vmem:[#allocation11 + $0x90] sm:$0xff] %v4208
    %4273 = vst [vmem:[#allocation11 + $0x98] sm:$0xff] %v4209
    %4274 = vst [vmem:[#allocation11 + $0xa0] sm:$0xff] %v4210
    %4275 = vst [vmem:[#allocation11 + $0xa8] sm:$0xff] %v4211
    %4276 = vst [vmem:[#allocation11 + $0xb0] sm:$0xff] %v4212
    %4277 = vst [vmem:[#allocation11 + $0xb8] sm:$0xff] %v4213
    %4278 = vst [vmem:[#allocation11 + $0xc0] sm:$0xff] %v4214
    %4279 = vst [vmem:[#allocation11 + $0xc8] sm:$0xff] %v4215
    %4280 = vst [vmem:[#allocation11 + $0xd0] sm:$0xff] %v4216
    %4281 = vst [vmem:[#allocation11 + $0xd8] sm:$0xff] %v4217
    %4282 = vst [vmem:[#allocation11 + $0xe0] sm:$0xff] %v4218
    %4283 = vst [vmem:[#allocation11 + $0xe8] sm:$0xff] %v4219
    %4284 = vst [vmem:[#allocation11 + $0xf0] sm:$0xff] %v4220
    %4285 = vst [vmem:[#allocation11 + $0xf8] sm:$0xff] %v4221
    %4286 = vst [vmem:[#allocation11 + $0x100] sm:$0xff] %v4222
    %4287 = vst [vmem:[#allocation11 + $0x108] sm:$0xff] %v4223
    %4288 = vst [vmem:[#allocation11 + $0x110] sm:$0xff] %v4224
    %4289 = vst [vmem:[#allocation11 + $0x118] sm:$0xff] %v4225
    %4290 = vst [vmem:[#allocation11 + $0x120] sm:$0xff] %v4226
    %4291 = vst [vmem:[#allocation11 + $0x128] sm:$0xff] %v4227
    %4292 = vst [vmem:[#allocation11 + $0x130] sm:$0xff] %v4228
    %4293 = vst [vmem:[#allocation11 + $0x138] sm:$0xff] %v4229
    %4294 = vst [vmem:[#allocation11 + $0x140] sm:$0xff] %v4230
    %4295 = vst [vmem:[#allocation11 + $0x148] sm:$0xff] %v4231
    %4296 = vst [vmem:[#allocation11 + $0x150] sm:$0xff] %v4232
    %4297 = vst [vmem:[#allocation11 + $0x158] sm:$0xff] %v4233
    %4298 = vst [vmem:[#allocation11 + $0x160] sm:$0xff] %v4234
    %4299 = vst [vmem:[#allocation11 + $0x168] sm:$0xff] %v4235
    %4300 = vst [vmem:[#allocation11 + $0x170] sm:$0xff] %v4236
    %4301 = vst [vmem:[#allocation11 + $0x178] sm:$0xff] %v4237
    %4302 = vst [vmem:[#allocation11 + $0x180] sm:$0xff] %v4238
    %4303 = vst [vmem:[#allocation11 + $0x188] sm:$0xff] %v4239
    %4304 = vst [vmem:[#allocation11 + $0x190] sm:$0xff] %v4240
    %4305 = vst [vmem:[#allocation11 + $0x198] sm:$0xff] %v4241
    %4306 = vst [vmem:[#allocation11 + $0x1a0] sm:$0xff] %v4242
    %4307 = vst [vmem:[#allocation11 + $0x1a8] sm:$0xff] %v4243
    %4308 = vst [vmem:[#allocation11 + $0x1b0] sm:$0xff] %v4244
    %4309 = vst [vmem:[#allocation11 + $0x1b8] sm:$0xff] %v4245
    %4310 = vst [vmem:[#allocation11 + $0x1c0] sm:$0xff] %v4246
    %4311 = vst [vmem:[#allocation11 + $0x1c8] sm:$0xff] %v4247
    %4312 = vst [vmem:[#allocation11 + $0x1d0] sm:$0xff] %v4248
    %4313 = vst [vmem:[#allocation11 + $0x1d8] sm:$0xff] %v4249
    %4314 = vst [vmem:[#allocation11 + $0x1e0] sm:$0xff] %v4250
    %4315 = vst [vmem:[#allocation11 + $0x1e8] sm:$0xff] %v4251
    %4316 = vst [vmem:[#allocation11 + $0x1f0] sm:$0xff] %v4252
    %4317 = vst [vmem:[#allocation11 + $0x1f8] sm:$0xff] %v4253
    // Predicated region
    $region46: #{tpu_custom_call.1} parent=1 // pred_check
      _
    $region47: #{tpu_custom_call.1} parent=1 // pred_check_branch
      %4319 = sbr.rel (0) target = $region49
    $region48: #{tpu_custom_call.1} parent=1 // pred_region
      %s4321 = ssub.s32 8192, 8192
      %4322 = vsyncadd [#allocation5], %s4321
      %s4323 = sshll.u32 [#allocation11], 4
      %s4324 = int_to_ptr.vmem [resolvable:$true] %s4323
      %4329 = dma.vmem_to_hbm [thread:$0]  %s4324, 8192, %s7, [#allocation5], 128, 128, 8
    $region49: #{tpu_custom_call.1} parent=1 // pred_fallthru
      _
    // Predicated region
    $region50: #{tpu_custom_call.1} parent=1 // pred_check
      _
    $region51: #{tpu_custom_call.1} parent=1 // pred_check_branch
      %4331 = sbr.rel (0) target = $region53
    $region52: #{tpu_custom_call.1} parent=1 // pred_region
      %4332 = dma.done [#allocation5], 8192
    $region53: #{tpu_custom_call.1} parent=1 // pred_fallthru
      _
    %4333 = vsyncpa [#allocation4], 1
    %4334 = vsyncpa [#allocation7], 1
    %4335 = vsyncpa [#allocation10], 1
    %4336 = vsyncpa [#allocation5], 1

</llo_original>
